<compile_context>
chip_gen: v7x
topology: tpu7x:2x2x1
jax: 0.10.0
libtpu: 0.0.40
codegen_flags: <defaults>
</compile_context>

<pallas_src>
import functools
import math

import jax
import jax.numpy as jnp
from jax import lax
from jax.experimental import pallas as pl
from jax.experimental.pallas import tpu as pltpu

LN_EPS = 1e-5          # torch.nn.LayerNorm default
NEG_INF = -1e9         # masked_fill value used by the reference transformer


def _layer_norm_f32(x, gamma, beta):
    mean = jnp.mean(x, axis=-1, keepdims=True)
    var = jnp.mean((x - mean) ** 2, axis=-1, keepdims=True)
    return (x - mean) * lax.rsqrt(var + LN_EPS) * gamma + beta


# ----------------------------- Pallas kernels ------------------------------

def _attn_sublayer_kernel(x_ref, kv_ref, mask_ref, g_ref, bln_ref,
                          wq_ref, bq_ref, wkv_ref, bkv_ref, wo_ref, bo_ref,
                          o_ref, *, num_heads, self_attn):
    """One batch element: residual + W_o @ MHA(LN(x), kv, mask)."""
    x = x_ref[0].astype(jnp.float32)                       # (Sq, D) pre-LN residual
    D = x.shape[-1]
    Dh = D // num_heads

    xn = _layer_norm_f32(x, g_ref[...], bln_ref[...])      # (Sq, D)

    # 1/sqrt(Dh) is folded into wq/bq by the wrapper, so q is pre-scaled.
    q = jnp.dot(xn, wq_ref[...], preferred_element_type=jnp.float32) + bq_ref[...]
    kv_src = xn if self_attn else kv_ref[0].astype(jnp.float32)
    kv = jnp.dot(kv_src, wkv_ref[...],
                 preferred_element_type=jnp.float32) + bkv_ref[...]   # (Sk, 2D)
    k = kv[:, :D]
    v = kv[:, D:]

    mask = mask_ref[0]                                     # (Sq, Sk) int32, 0 = masked

    ctx_parts = []
    for h in range(num_heads):                             # static unrolled head loop
        sl = slice(h * Dh, (h + 1) * Dh)
        qh, kh, vh = q[:, sl], k[:, sl], v[:, sl]
        # Contract on the last (Dh) axis of BOTH operands: MXU NT matmul, no k.T.
        s = lax.dot_general(qh, kh, (((1,), (1,)), ((), ())),
                            preferred_element_type=jnp.float32)        # (Sq, Sk)
        s = jnp.where(mask == 0, NEG_INF, s)
        s = s - jnp.max(s, axis=-1, keepdims=True)
        p = jnp.exp(s)
        inv_l = pl.reciprocal(jnp.sum(p, axis=-1, keepdims=True), approx=True)
        ctx_parts.append(
            jnp.dot(p, vh, preferred_element_type=jnp.float32) * inv_l)

    ctx = jnp.concatenate(ctx_parts, axis=-1)              # (Sq, D) lane-dense
    y = x + jnp.dot(ctx, wo_ref[...],
                    preferred_element_type=jnp.float32) + bo_ref[...]
    o_ref[0] = y.astype(o_ref.dtype)
    # TODO(synk): dropout inside the sub-layer connection is identity (inference mode).


def _ffn_sublayer_kernel(x_ref, g_ref, bln_ref, w1_ref, b1_ref, w2_ref, b2_ref, o_ref):
    """Row tile: residual + W2 @ relu(W1 @ LN(x) + b1) + b2."""
    x = x_ref[...].astype(jnp.float32)                     # (TM, D)
    xn = _layer_norm_f32(x, g_ref[...], bln_ref[...])
    h = jnp.dot(xn, w1_ref[...], preferred_element_type=jnp.float32) + b1_ref[...]
    h = jnp.maximum(h, 0.0)
    y = x + jnp.dot(h, w2_ref[...], preferred_element_type=jnp.float32) + b2_ref[...]
    o_ref[...] = y.astype(o_ref.dtype)
    # TODO(synk): for production sizes (D~1024, Dff~4096) tile Dff with a VMEM
    # accumulator instead of whole-weight blocks (v7x 64 MiB VMEM budget).


# ------------------------------ wrappers ------------------------------------

def attention_sublayer(x, kv_src, mask, ln_g, ln_b, p, num_heads, self_attn):
    """Fused: x + MHA(LN(x), kv_src (or LN(x)), mask).  One pallas_call, grid=(B,)."""
    B, Sq, D = x.shape
    Sk = kv_src.shape[1]
    Dh = D // num_heads
    scale = 1.0 / math.sqrt(Dh)

    # Fold attention scale into the query projection; merge K/V weights.
    wq = p["wq"] * scale
    bq = (p["bq"] * scale).reshape(1, D)
    wkv = jnp.concatenate([p["wk"], p["wv"]], axis=1)       # (D, 2D)
    bkv = jnp.concatenate([p["bk"], p["bv"]]).reshape(1, 2 * D)
    wo = p["wo"]
    bo = p["bo"].reshape(1, D)
    mask_i = mask.astype(jnp.int32)

    flops = (2 * B * Sq * D * D            # q proj
             + 2 * B * Sk * D * 2 * D      # merged kv proj
             + 4 * B * num_heads * Sq * Sk * Dh   # scores + context
             + 2 * B * Sq * D * D)         # output proj
    transc = B * num_heads * Sq * (Sk + 1)  # exp + reciprocal
    bytes_acc = 4 * (2 * B * Sq * D + B * Sk * D + B * Sq * Sk
                     + 4 * D * D + 6 * D)

    kernel = functools.partial(_attn_sublayer_kernel,
                               num_heads=num_heads, self_attn=self_attn)
    return pl.pallas_call(
        kernel,
        out_shape=jax.ShapeDtypeStruct((B, Sq, D), x.dtype),
        grid=(B,),
        in_specs=[
            pl.BlockSpec((1, Sq, D), lambda b: (b, 0, 0)),      # x (residual + LN input)
            pl.BlockSpec((1, Sk, D), lambda b: (b, 0, 0)),      # kv source
            pl.BlockSpec((1, Sq, Sk), lambda b: (b, 0, 0)),     # mask
            pl.BlockSpec((1, D), lambda b: (0, 0)),             # ln gamma
            pl.BlockSpec((1, D), lambda b: (0, 0)),             # ln beta
            pl.BlockSpec((D, D), lambda b: (0, 0)),             # wq (pre-scaled)
            pl.BlockSpec((1, D), lambda b: (0, 0)),             # bq
            pl.BlockSpec((D, 2 * D), lambda b: (0, 0)),         # wkv
            pl.BlockSpec((1, 2 * D), lambda b: (0, 0)),         # bkv
            pl.BlockSpec((D, D), lambda b: (0, 0)),             # wo
            pl.BlockSpec((1, D), lambda b: (0, 0)),             # bo
        ],
        out_specs=pl.BlockSpec((1, Sq, D), lambda b: (b, 0, 0)),
        compiler_params=pltpu.CompilerParams(dimension_semantics=("parallel",)),
        cost_estimate=pl.CostEstimate(flops=flops, transcendentals=transc,
                                      bytes_accessed=bytes_acc),
    )(x, kv_src, mask_i, ln_g.reshape(1, D), ln_b.reshape(1, D),
      wq, bq, wkv, bkv, wo, bo)


def ffn_sublayer(x, ln_g, ln_b, w1, b1, w2, b2):
    """Fused: x + FFN(LN(x)).  One pallas_call, grid over row tiles of B*S."""
    B, S, D = x.shape
    M = B * S
    Dff = w1.shape[1]
    x2 = x.reshape(M, D)

    TM = M
    for cand in (256, 128, 64, 32, 16, 8):   # row tile, multiple of 8 sublanes
        if M % cand == 0:
            TM = cand
            break

    flops = 4 * M * D * Dff
    bytes_acc = 4 * (2 * M * D + 2 * D * Dff + Dff + 3 * D)

    out = pl.pallas_call(
        _ffn_sublayer_kernel,
        out_shape=jax.ShapeDtypeStruct((M, D), x.dtype),
        grid=(M // TM,),
        in_specs=[
            pl.BlockSpec((TM, D), lambda i: (i, 0)),
            pl.BlockSpec((1, D), lambda i: (0, 0)),
            pl.BlockSpec((1, D), lambda i: (0, 0)),
            pl.BlockSpec((D, Dff), lambda i: (0, 0)),
            pl.BlockSpec((1, Dff), lambda i: (0, 0)),
            pl.BlockSpec((Dff, D), lambda i: (0, 0)),
            pl.BlockSpec((1, D), lambda i: (0, 0)),
        ],
        out_specs=pl.BlockSpec((TM, D), lambda i: (i, 0)),
        compiler_params=pltpu.CompilerParams(dimension_semantics=("parallel",)),
        cost_estimate=pl.CostEstimate(flops=flops, transcendentals=0,
                                      bytes_accessed=bytes_acc),
    )(x2, ln_g.reshape(1, D), ln_b.reshape(1, D),
      w1, b1.reshape(1, Dff), w2, b2.reshape(1, D))
    return out.reshape(B, S, D)


def decoder_block_forward(params, x, encoder_output, source_mask, target_mask,
                          num_heads):
    # sub-layer 0: x + self_attn(LN(x), LN(x), LN(x), target_mask)
    x = attention_sublayer(x, x, target_mask, params["ln0_g"], params["ln0_b"],
                           params["self_attn"], num_heads, self_attn=True)
    # sub-layer 1: x + cross_attn(LN(x), enc, enc, source_mask)
    x = attention_sublayer(x, encoder_output, source_mask,
                           params["ln1_g"], params["ln1_b"],
                           params["cross_attn"], num_heads, self_attn=False)
    # sub-layer 2: x + FFN(LN(x))
    return ffn_sublayer(x, params["ln2_g"], params["ln2_b"],
                        params["w1"], params["b1"], params["w2"], params["b2"])


# ------------------------------ parameters ----------------------------------

def init_params(key, D, Dff):
    ks = jax.random.split(key, 4)

    def w(k, shape):
        return jax.random.normal(k, shape, jnp.float32) * 0.05

    def attn_params(k4):
        kq, kk, kv, ko = jax.random.split(k4, 4)
        return {"wq": w(kq, (D, D)), "bq": jnp.zeros((D,), jnp.float32),
                "wk": w(kk, (D, D)), "bk": jnp.zeros((D,), jnp.float32),
                "wv": w(kv, (D, D)), "bv": jnp.zeros((D,), jnp.float32),
                "wo": w(ko, (D, D)), "bo": jnp.zeros((D,), jnp.float32)}

    return {
        "self_attn": attn_params(ks[0]),
        "cross_attn": attn_params(ks[1]),
        "w1": w(ks[2], (D, Dff)), "b1": jnp.zeros((Dff,), jnp.float32),
        "w2": w(ks[3], (Dff, D)), "b2": jnp.zeros((D,), jnp.float32),
        "ln0_g": jnp.ones((D,), jnp.float32), "ln0_b": jnp.zeros((D,), jnp.float32),
        "ln1_g": jnp.ones((D,), jnp.float32), "ln1_b": jnp.zeros((D,), jnp.float32),
        "ln2_g": jnp.ones((D,), jnp.float32), "ln2_b": jnp.zeros((D,), jnp.float32),
    }


# --------------------------- pure-JAX reference ------------------------------

def _ref_layer_norm(x, g, b):
    mean = jnp.mean(x, axis=-1, keepdims=True)
    var = jnp.mean((x - mean) ** 2, axis=-1, keepdims=True)
    return (x - mean) / jnp.sqrt(var + LN_EPS) * g + b


def _ref_mha(q_in, kv_in, mask, p, num_heads):
    B, Sq, D = q_in.shape
    Sk = kv_in.shape[1]
    Dh = D // num_heads
    q = (q_in @ p["wq"] + p["bq"]).reshape(B, Sq, num_heads, Dh).transpose(0, 2, 1, 3)
    k = (kv_in @ p["wk"] + p["bk"]).reshape(B, Sk, num_heads, Dh).transpose(0, 2, 1, 3)
    v = (kv_in @ p["wv"] + p["bv"]).reshape(B, Sk, num_heads, Dh).transpose(0, 2, 1, 3)
    s = jnp.einsum("bhqd,bhkd->bhqk", q, k) / math.sqrt(Dh)
    s = jnp.where(mask[:, None, :, :] == 0, NEG_INF, s)
    a = jax.nn.softmax(s, axis=-1)
    ctx = jnp.einsum("bhqk,bhkd->bhqd", a, v).transpose(0, 2, 1, 3).reshape(B, Sq, D)
    return ctx @ p["wo"] + p["bo"]


def _ref_decoder_block(params, x, enc, smask, tmask, num_heads):
    xn = _ref_layer_norm(x, params["ln0_g"], params["ln0_b"])
    x = x + _ref_mha(xn, xn, tmask, params["self_attn"], num_heads)
    xn = _ref_layer_norm(x, params["ln1_g"], params["ln1_b"])
    x = x + _ref_mha(xn, enc, smask, params["cross_attn"], num_heads)
    xn = _ref_layer_norm(x, params["ln2_g"], params["ln2_b"])
    h = jnp.maximum(xn @ params["w1"] + params["b1"], 0.0)
    return x + h @ params["w2"] + params["b2"]


# --------------------------------- main --------------------------------------

if __name__ == "__main__":
    B, S_TGT, S_SRC, D, H, DFF = 2, 8, 16, 32, 4, 64

    key = jax.random.PRNGKey(0)
    kx, kenc, kp = jax.random.split(key, 3)
    x = jax.random.normal(kx, (B, S_TGT, D), jnp.float32)
    encoder_output = jax.random.normal(kenc, (B, S_SRC, D), jnp.float32)

    # target mask: causal; source mask: all visible (1 = keep, 0 = mask)
    target_mask = jnp.broadcast_to(
        jnp.tril(jnp.ones((S_TGT, S_TGT), jnp.float32)), (B, S_TGT, S_TGT))
    source_mask = jnp.ones((B, S_TGT, S_SRC), jnp.float32)

    params = init_params(kp, D, DFF)

    fwd = jax.jit(functools.partial(decoder_block_forward, num_heads=H))
    out = jax.block_until_ready(fwd(params, x, encoder_output,
                                    source_mask, target_mask))

    assert out.shape == (B, S_TGT, D)
    assert bool(jnp.all(jnp.isfinite(out)))

    ref = _ref_decoder_block(params, x, encoder_output,
                             source_mask, target_mask, H)
    max_err = float(jnp.max(jnp.abs(out - ref)))
    assert max_err < 5e-2, f"max |pallas - ref| = {max_err}"
    print("KERNEL_OK")
</pallas_src>

<mosaic_0001>
module attributes {stable_mosaic.version = 11 : i64} {
  func.func @_ffn_sublayer_kernel(%arg0: i32, %arg1: memref<16x32xf32, #tpu.memory_space<vmem>>, %arg2: memref<1x32xf32, #tpu.memory_space<vmem>>, %arg3: memref<1x32xf32, #tpu.memory_space<vmem>>, %arg4: memref<32x64xf32, #tpu.memory_space<vmem>>, %arg5: memref<1x64xf32, #tpu.memory_space<vmem>>, %arg6: memref<64x32xf32, #tpu.memory_space<vmem>>, %arg7: memref<1x32xf32, #tpu.memory_space<vmem>>, %arg8: memref<16x32xf32, #tpu.memory_space<vmem>>) attributes {dimension_semantics = [#tpu.dimension_semantics<parallel>], iteration_bounds = array<i64: 1>, scalar_prefetch = 0 : i64, scratch_operands = 0 : i64, tpu.core_type = #tpu.core_type<tc>, window_params = [{transform_indices = @transform_0, window_bounds = array<i64: 16, 32>}, {pipeline_mode = #tpu.pipeline_mode<synchronous>, transform_indices = @transform_1, window_bounds = array<i64: 1, 32>}, {pipeline_mode = #tpu.pipeline_mode<synchronous>, transform_indices = @transform_2, window_bounds = array<i64: 1, 32>}, {pipeline_mode = #tpu.pipeline_mode<synchronous>, transform_indices = @transform_3, window_bounds = array<i64: 32, 64>}, {pipeline_mode = #tpu.pipeline_mode<synchronous>, transform_indices = @transform_4, window_bounds = array<i64: 1, 64>}, {pipeline_mode = #tpu.pipeline_mode<synchronous>, transform_indices = @transform_5, window_bounds = array<i64: 64, 32>}, {pipeline_mode = #tpu.pipeline_mode<synchronous>, transform_indices = @transform_6, window_bounds = array<i64: 1, 32>}, {transform_indices = @transform_7, window_bounds = array<i64: 16, 32>}]} {
    %c0 = arith.constant 0 : index
    %c0_0 = arith.constant 0 : index
    %0 = vector.load %arg1[%c0, %c0_0] : memref<16x32xf32, #tpu.memory_space<vmem>>, vector<16x32xf32>
    %c0_1 = arith.constant 0 : index
    %c0_2 = arith.constant 0 : index
    %1 = vector.load %arg2[%c0_1, %c0_2] : memref<1x32xf32, #tpu.memory_space<vmem>>, vector<1x32xf32>
    %c0_3 = arith.constant 0 : index
    %c0_4 = arith.constant 0 : index
    %2 = vector.load %arg3[%c0_3, %c0_4] : memref<1x32xf32, #tpu.memory_space<vmem>>, vector<1x32xf32>
    %cst = arith.constant dense<0.000000e+00> : vector<16xf32>
    %3 = vector.multi_reduction <add>, %0, %cst [1] : vector<16x32xf32> to vector<16xf32>
    %4 = vector.shape_cast %3 : vector<16xf32> to vector<16x1xf32>
    %cst_5 = arith.constant 3.200000e+01 : f32
    %5 = vector.broadcast %cst_5 : f32 to vector<16x1xf32>
    %6 = arith.divf %4, %5 : vector<16x1xf32>
    %7 = vector.broadcast %6 : vector<16x1xf32> to vector<16x32xf32>
    %8 = arith.subf %0, %7 : vector<16x32xf32>
    %9 = arith.mulf %8, %8 : vector<16x32xf32>
    %cst_6 = arith.constant dense<0.000000e+00> : vector<16xf32>
    %10 = vector.multi_reduction <add>, %9, %cst_6 [1] : vector<16x32xf32> to vector<16xf32>
    %11 = vector.shape_cast %10 : vector<16xf32> to vector<16x1xf32>
    %cst_7 = arith.constant 3.200000e+01 : f32
    %12 = vector.broadcast %cst_7 : f32 to vector<16x1xf32>
    %13 = arith.divf %11, %12 : vector<16x1xf32>
    %14 = vector.broadcast %6 : vector<16x1xf32> to vector<16x32xf32>
    %15 = arith.subf %0, %14 : vector<16x32xf32>
    %cst_8 = arith.constant 9.99999974E-6 : f32
    %16 = vector.broadcast %cst_8 : f32 to vector<16x1xf32>
    %17 = arith.addf %13, %16 : vector<16x1xf32>
    %18 = math.rsqrt %17 : vector<16x1xf32>
    %19 = vector.broadcast %18 : vector<16x1xf32> to vector<16x32xf32>
    %20 = arith.mulf %15, %19 : vector<16x32xf32>
    %21 = vector.broadcast %1 : vector<1x32xf32> to vector<16x32xf32>
    %22 = arith.mulf %20, %21 : vector<16x32xf32>
    %23 = vector.broadcast %2 : vector<1x32xf32> to vector<16x32xf32>
    %24 = arith.addf %22, %23 : vector<16x32xf32>
    %c0_9 = arith.constant 0 : index
    %c0_10 = arith.constant 0 : index
    %25 = vector.load %arg4[%c0_9, %c0_10] : memref<32x64xf32, #tpu.memory_space<vmem>>, vector<32x64xf32>
    %cst_11 = arith.constant dense<0.000000e+00> : vector<16x64xf32>
    %26 = tpu.matmul %24, %25, %cst_11 {dimension_numbers = #tpu.dot_dimension_numbers<[1], [0], [0], [1], [0, 0, 1, 1], [], []>} : vector<16x32xf32>, vector<32x64xf32>, vector<16x64xf32> -> vector<16x64xf32>
    %c0_12 = arith.constant 0 : index
    %c0_13 = arith.constant 0 : index
    %27 = vector.load %arg5[%c0_12, %c0_13] : memref<1x64xf32, #tpu.memory_space<vmem>>, vector<1x64xf32>
    %28 = vector.broadcast %27 : vector<1x64xf32> to vector<16x64xf32>
    %29 = arith.addf %26, %28 : vector<16x64xf32>
    %cst_14 = arith.constant 0.000000e+00 : f32
    %30 = vector.broadcast %cst_14 : f32 to vector<16x64xf32>
    %31 = arith.maximumf %29, %30 : vector<16x64xf32>
    %c0_15 = arith.constant 0 : index
    %c0_16 = arith.constant 0 : index
    %32 = vector.load %arg6[%c0_15, %c0_16] : memref<64x32xf32, #tpu.memory_space<vmem>>, vector<64x32xf32>
    %cst_17 = arith.constant dense<0.000000e+00> : vector<16x32xf32>
    %33 = tpu.matmul %31, %32, %cst_17 {dimension_numbers = #tpu.dot_dimension_numbers<[1], [0], [0], [1], [0, 0, 1, 1], [], []>} : vector<16x64xf32>, vector<64x32xf32>, vector<16x32xf32> -> vector<16x32xf32>
    %34 = arith.addf %0, %33 : vector<16x32xf32>
    %c0_18 = arith.constant 0 : index
    %c0_19 = arith.constant 0 : index
    %35 = vector.load %arg7[%c0_18, %c0_19] : memref<1x32xf32, #tpu.memory_space<vmem>>, vector<1x32xf32>
    %36 = vector.broadcast %35 : vector<1x32xf32> to vector<16x32xf32>
    %37 = arith.addf %34, %36 : vector<16x32xf32>
    %c0_20 = arith.constant 0 : index
    %c0_21 = arith.constant 0 : index
    %38 = vector.load %arg8[%c0_20, %c0_21] : memref<16x32xf32, #tpu.memory_space<vmem>>, vector<16x32xf32>
    tpu.vector_store %arg8[%c0_20, %c0_21], %37 {strides = array<i32>} : memref<16x32xf32, #tpu.memory_space<vmem>>, vector<16x32xf32>,
    return
  }
  func.func @transform_0(%arg0: i32) -> (i32, i32) {
    %c0_i32 = arith.constant 0 : i32
    %c0_i32_0 = arith.constant 0 : i32
    return %arg0, %c0_i32 : i32, i32
  }
  func.func @transform_1(%arg0: i32) -> (i32, i32) {
    %c0_i32 = arith.constant 0 : i32
    %c0_i32_0 = arith.constant 0 : i32
    %c0_i32_1 = arith.constant 0 : i32
    return %c0_i32, %c0_i32_0 : i32, i32
  }
  func.func @transform_2(%arg0: i32) -> (i32, i32) {
    %c0_i32 = arith.constant 0 : i32
    %c0_i32_0 = arith.constant 0 : i32
    %c0_i32_1 = arith.constant 0 : i32
    return %c0_i32, %c0_i32_0 : i32, i32
  }
  func.func @transform_3(%arg0: i32) -> (i32, i32) {
    %c0_i32 = arith.constant 0 : i32
    %c0_i32_0 = arith.constant 0 : i32
    %c0_i32_1 = arith.constant 0 : i32
    return %c0_i32, %c0_i32_0 : i32, i32
  }
  func.func @transform_4(%arg0: i32) -> (i32, i32) {
    %c0_i32 = arith.constant 0 : i32
    %c0_i32_0 = arith.constant 0 : i32
    %c0_i32_1 = arith.constant 0 : i32
    return %c0_i32, %c0_i32_0 : i32, i32
  }
  func.func @transform_5(%arg0: i32) -> (i32, i32) {
    %c0_i32 = arith.constant 0 : i32
    %c0_i32_0 = arith.constant 0 : i32
    %c0_i32_1 = arith.constant 0 : i32
    return %c0_i32, %c0_i32_0 : i32, i32
  }
  func.func @transform_6(%arg0: i32) -> (i32, i32) {
    %c0_i32 = arith.constant 0 : i32
    %c0_i32_0 = arith.constant 0 : i32
    %c0_i32_1 = arith.constant 0 : i32
    return %c0_i32, %c0_i32_0 : i32, i32
  }
  func.func @transform_7(%arg0: i32) -> (i32, i32) {
    %c0_i32 = arith.constant 0 : i32
    %c0_i32_0 = arith.constant 0 : i32
    return %arg0, %c0_i32 : i32, i32
  }
}

module attributes {stable_mosaic.version = 11 : i64} {
  func.func @_attn_sublayer_kernel(%arg0: i32, %arg1: memref<1x8x32xf32, #tpu.memory_space<vmem>>, %arg2: memref<1x16x32xf32, #tpu.memory_space<vmem>>, %arg3: memref<1x8x16xi32, #tpu.memory_space<vmem>>, %arg4: memref<1x32xf32, #tpu.memory_space<vmem>>, %arg5: memref<1x32xf32, #tpu.memory_space<vmem>>, %arg6: memref<32x32xf32, #tpu.memory_space<vmem>>, %arg7: memref<1x32xf32, #tpu.memory_space<vmem>>, %arg8: memref<32x64xf32, #tpu.memory_space<vmem>>, %arg9: memref<1x64xf32, #tpu.memory_space<vmem>>, %arg10: memref<32x32xf32, #tpu.memory_space<vmem>>, %arg11: memref<1x32xf32, #tpu.memory_space<vmem>>, %arg12: memref<1x8x32xf32, #tpu.memory_space<vmem>>) attributes {dimension_semantics = [#tpu.dimension_semantics<parallel>], iteration_bounds = array<i64: 2>, scalar_prefetch = 0 : i64, scratch_operands = 0 : i64, tpu.core_type = #tpu.core_type<tc>, window_params = [{transform_indices = @transform_0, window_bounds = array<i64: 1, 8, 32>}, {transform_indices = @transform_1, window_bounds = array<i64: 1, 16, 32>}, {transform_indices = @transform_2, window_bounds = array<i64: 1, 8, 16>}, {pipeline_mode = #tpu.pipeline_mode<synchronous>, transform_indices = @transform_3, window_bounds = array<i64: 1, 32>}, {pipeline_mode = #tpu.pipeline_mode<synchronous>, transform_indices = @transform_4, window_bounds = array<i64: 1, 32>}, {pipeline_mode = #tpu.pipeline_mode<synchronous>, transform_indices = @transform_5, window_bounds = array<i64: 32, 32>}, {pipeline_mode = #tpu.pipeline_mode<synchronous>, transform_indices = @transform_6, window_bounds = array<i64: 1, 32>}, {pipeline_mode = #tpu.pipeline_mode<synchronous>, transform_indices = @transform_7, window_bounds = array<i64: 32, 64>}, {pipeline_mode = #tpu.pipeline_mode<synchronous>, transform_indices = @transform_8, window_bounds = array<i64: 1, 64>}, {pipeline_mode = #tpu.pipeline_mode<synchronous>, transform_indices = @transform_9, window_bounds = array<i64: 32, 32>}, {pipeline_mode = #tpu.pipeline_mode<synchronous>, transform_indices = @transform_10, window_bounds = array<i64: 1, 32>}, {transform_indices = @transform_11, window_bounds = array<i64: 1, 8, 32>}]} {
    %c0 = arith.constant 0 : index
    %c0_0 = arith.constant 0 : index
    %c0_1 = arith.constant 0 : index
    %0 = vector.load %arg1[%c0, %c0_0, %c0_1] : memref<1x8x32xf32, #tpu.memory_space<vmem>>, vector<1x8x32xf32>
    %1 = vector.shape_cast %0 : vector<1x8x32xf32> to vector<8x32xf32>
    %c0_2 = arith.constant 0 : index
    %c0_3 = arith.constant 0 : index
    %2 = vector.load %arg4[%c0_2, %c0_3] : memref<1x32xf32, #tpu.memory_space<vmem>>, vector<1x32xf32>
    %c0_4 = arith.constant 0 : index
    %c0_5 = arith.constant 0 : index
    %3 = vector.load %arg5[%c0_4, %c0_5] : memref<1x32xf32, #tpu.memory_space<vmem>>, vector<1x32xf32>
    %cst = arith.constant dense<0.000000e+00> : vector<8xf32>
    %4 = vector.multi_reduction <add>, %1, %cst [1] : vector<8x32xf32> to vector<8xf32>
    %5 = vector.shape_cast %4 : vector<8xf32> to vector<8x1xf32>
    %cst_6 = arith.constant 3.200000e+01 : f32
    %6 = vector.broadcast %cst_6 : f32 to vector<8x1xf32>
    %7 = arith.divf %5, %6 : vector<8x1xf32>
    %8 = vector.broadcast %7 : vector<8x1xf32> to vector<8x32xf32>
    %9 = arith.subf %1, %8 : vector<8x32xf32>
    %10 = arith.mulf %9, %9 : vector<8x32xf32>
    %cst_7 = arith.constant dense<0.000000e+00> : vector<8xf32>
    %11 = vector.multi_reduction <add>, %10, %cst_7 [1] : vector<8x32xf32> to vector<8xf32>
    %12 = vector.shape_cast %11 : vector<8xf32> to vector<8x1xf32>
    %cst_8 = arith.constant 3.200000e+01 : f32
    %13 = vector.broadcast %cst_8 : f32 to vector<8x1xf32>
    %14 = arith.divf %12, %13 : vector<8x1xf32>
    %15 = vector.broadcast %7 : vector<8x1xf32> to vector<8x32xf32>
    %16 = arith.subf %1, %15 : vector<8x32xf32>
    %cst_9 = arith.constant 9.99999974E-6 : f32
    %17 = vector.broadcast %cst_9 : f32 to vector<8x1xf32>
    %18 = arith.addf %14, %17 : vector<8x1xf32>
    %19 = math.rsqrt %18 : vector<8x1xf32>
    %20 = vector.broadcast %19 : vector<8x1xf32> to vector<8x32xf32>
    %21 = arith.mulf %16, %20 : vector<8x32xf32>
    %22 = vector.broadcast %2 : vector<1x32xf32> to vector<8x32xf32>
    %23 = arith.mulf %21, %22 : vector<8x32xf32>
    %24 = vector.broadcast %3 : vector<1x32xf32> to vector<8x32xf32>
    %25 = arith.addf %23, %24 : vector<8x32xf32>
    %c0_10 = arith.constant 0 : index
    %c0_11 = arith.constant 0 : index
    %26 = vector.load %arg6[%c0_10, %c0_11] : memref<32x32xf32, #tpu.memory_space<vmem>>, vector<32x32xf32>
    %cst_12 = arith.constant dense<0.000000e+00> : vector<8x32xf32>
    %27 = tpu.matmul %25, %26, %cst_12 {dimension_numbers = #tpu.dot_dimension_numbers<[1], [0], [0], [1], [0, 0, 1, 1], [], []>} : vector<8x32xf32>, vector<32x32xf32>, vector<8x32xf32> -> vector<8x32xf32>
    %c0_13 = arith.constant 0 : index
    %c0_14 = arith.constant 0 : index
    %28 = vector.load %arg7[%c0_13, %c0_14] : memref<1x32xf32, #tpu.memory_space<vmem>>, vector<1x32xf32>
    %29 = vector.broadcast %28 : vector<1x32xf32> to vector<8x32xf32>
    %30 = arith.addf %27, %29 : vector<8x32xf32>
    %c0_15 = arith.constant 0 : index
    %c0_16 = arith.constant 0 : index
    %c0_17 = arith.constant 0 : index
    %31 = vector.load %arg2[%c0_15, %c0_16, %c0_17] : memref<1x16x32xf32, #tpu.memory_space<vmem>>, vector<1x16x32xf32>
    %32 = vector.shape_cast %31 : vector<1x16x32xf32> to vector<16x32xf32>
    %c0_18 = arith.constant 0 : index
    %c0_19 = arith.constant 0 : index
    %33 = vector.load %arg8[%c0_18, %c0_19] : memref<32x64xf32, #tpu.memory_space<vmem>>, vector<32x64xf32>
    %cst_20 = arith.constant dense<0.000000e+00> : vector<16x64xf32>
    %34 = tpu.matmul %32, %33, %cst_20 {dimension_numbers = #tpu.dot_dimension_numbers<[1], [0], [0], [1], [0, 0, 1, 1], [], []>} : vector<16x32xf32>, vector<32x64xf32>, vector<16x64xf32> -> vector<16x64xf32>
    %c0_21 = arith.constant 0 : index
    %c0_22 = arith.constant 0 : index
    %35 = vector.load %arg9[%c0_21, %c0_22] : memref<1x64xf32, #tpu.memory_space<vmem>>, vector<1x64xf32>
    %36 = vector.broadcast %35 : vector<1x64xf32> to vector<16x64xf32>
    %37 = arith.addf %34, %36 : vector<16x64xf32>
    %38 = vector.extract_strided_slice %37 {offsets = [0, 0], sizes = [16, 32], strides = [1, 1]} : vector<16x64xf32> to vector<16x32xf32>
    %39 = vector.extract_strided_slice %37 {offsets = [0, 32], sizes = [16, 32], strides = [1, 1]} : vector<16x64xf32> to vector<16x32xf32>
    %c0_23 = arith.constant 0 : index
    %c0_24 = arith.constant 0 : index
    %c0_25 = arith.constant 0 : index
    %40 = vector.load %arg3[%c0_23, %c0_24, %c0_25] : memref<1x8x16xi32, #tpu.memory_space<vmem>>, vector<1x8x16xi32>
    %41 = vector.shape_cast %40 : vector<1x8x16xi32> to vector<8x16xi32>
    %42 = vector.extract_strided_slice %30 {offsets = [0, 0], sizes = [8, 8], strides = [1, 1]} : vector<8x32xf32> to vector<8x8xf32>
    %43 = vector.extract_strided_slice %38 {offsets = [0, 0], sizes = [16, 8], strides = [1, 1]} : vector<16x32xf32> to vector<16x8xf32>
    %44 = vector.extract_strided_slice %39 {offsets = [0, 0], sizes = [16, 8], strides = [1, 1]} : vector<16x32xf32> to vector<16x8xf32>
    %cst_26 = arith.constant dense<0.000000e+00> : vector<8x16xf32>
    %45 = tpu.matmul %42, %43, %cst_26 {dimension_numbers = #tpu.dot_dimension_numbers<[1], [1], [0], [0], [0, 0, 1, 0], [], []>} : vector<8x8xf32>, vector<16x8xf32>, vector<8x16xf32> -> vector<8x16xf32>
    %c0_i32 = arith.constant 0 : i32
    %46 = vector.broadcast %c0_i32 : i32 to vector<8x16xi32>
    %47 = arith.cmpi eq, %41, %46 : vector<8x16xi32>
    %cst_27 = arith.constant -1.000000e+09 : f32
    %48 = vector.broadcast %cst_27 : f32 to vector<8x16xf32>
    %49 = arith.select %47, %48, %45 : vector<8x16xi1>, vector<8x16xf32>
    %cst_28 = arith.constant dense<0xFF800000> : vector<8xf32>
    %50 = vector.multi_reduction <maximumf>, %49, %cst_28 [1] : vector<8x16xf32> to vector<8xf32>
    %51 = vector.shape_cast %50 : vector<8xf32> to vector<8x1xf32>
    %52 = vector.broadcast %51 : vector<8x1xf32> to vector<8x16xf32>
    %53 = arith.subf %49, %52 : vector<8x16xf32>
    %54 = math.exp %53 : vector<8x16xf32>
    %cst_29 = arith.constant dense<0.000000e+00> : vector<8xf32>
    %55 = vector.multi_reduction <add>, %54, %cst_29 [1] : vector<8x16xf32> to vector<8xf32>
    %56 = vector.shape_cast %55 : vector<8xf32> to vector<8x1xf32>
    %57 = tpu.reciprocal %56 {approx = true} : vector<8x1xf32> -> vector<8x1xf32>
    %cst_30 = arith.constant dense<0.000000e+00> : vector<8x8xf32>
    %58 = tpu.matmul %54, %44, %cst_30 {dimension_numbers = #tpu.dot_dimension_numbers<[1], [0], [0], [1], [0, 0, 1, 1], [], []>} : vector<8x16xf32>, vector<16x8xf32>, vector<8x8xf32> -> vector<8x8xf32>
    %59 = vector.broadcast %57 : vector<8x1xf32> to vector<8x8xf32>
    %60 = arith.mulf %58, %59 : vector<8x8xf32>
    %61 = vector.extract_strided_slice %30 {offsets = [0, 8], sizes = [8, 8], strides = [1, 1]} : vector<8x32xf32> to vector<8x8xf32>
    %62 = vector.extract_strided_slice %38 {offsets = [0, 8], sizes = [16, 8], strides = [1, 1]} : vector<16x32xf32> to vector<16x8xf32>
    %63 = vector.extract_strided_slice %39 {offsets = [0, 8], sizes = [16, 8], strides = [1, 1]} : vector<16x32xf32> to vector<16x8xf32>
    %cst_31 = arith.constant dense<0.000000e+00> : vector<8x16xf32>
    %64 = tpu.matmul %61, %62, %cst_31 {dimension_numbers = #tpu.dot_dimension_numbers<[1], [1], [0], [0], [0, 0, 1, 0], [], []>} : vector<8x8xf32>, vector<16x8xf32>, vector<8x16xf32> -> vector<8x16xf32>
    %c0_i32_32 = arith.constant 0 : i32
    %65 = vector.broadcast %c0_i32_32 : i32 to vector<8x16xi32>
    %66 = arith.cmpi eq, %41, %65 : vector<8x16xi32>
    %cst_33 = arith.constant -1.000000e+09 : f32
    %67 = vector.broadcast %cst_33 : f32 to vector<8x16xf32>
    %68 = arith.select %66, %67, %64 : vector<8x16xi1>, vector<8x16xf32>
    %cst_34 = arith.constant dense<0xFF800000> : vector<8xf32>
    %69 = vector.multi_reduction <maximumf>, %68, %cst_34 [1] : vector<8x16xf32> to vector<8xf32>
    %70 = vector.shape_cast %69 : vector<8xf32> to vector<8x1xf32>
    %71 = vector.broadcast %70 : vector<8x1xf32> to vector<8x16xf32>
    %72 = arith.subf %68, %71 : vector<8x16xf32>
    %73 = math.exp %72 : vector<8x16xf32>
    %cst_35 = arith.constant dense<0.000000e+00> : vector<8xf32>
    %74 = vector.multi_reduction <add>, %73, %cst_35 [1] : vector<8x16xf32> to vector<8xf32>
    %75 = vector.shape_cast %74 : vector<8xf32> to vector<8x1xf32>
    %76 = tpu.reciprocal %75 {approx = true} : vector<8x1xf32> -> vector<8x1xf32>
    %cst_36 = arith.constant dense<0.000000e+00> : vector<8x8xf32>
    %77 = tpu.matmul %73, %63, %cst_36 {dimension_numbers = #tpu.dot_dimension_numbers<[1], [0], [0], [1], [0, 0, 1, 1], [], []>} : vector<8x16xf32>, vector<16x8xf32>, vector<8x8xf32> -> vector<8x8xf32>
    %78 = vector.broadcast %76 : vector<8x1xf32> to vector<8x8xf32>
    %79 = arith.mulf %77, %78 : vector<8x8xf32>
    %80 = vector.extract_strided_slice %30 {offsets = [0, 16], sizes = [8, 8], strides = [1, 1]} : vector<8x32xf32> to vector<8x8xf32>
    %81 = vector.extract_strided_slice %38 {offsets = [0, 16], sizes = [16, 8], strides = [1, 1]} : vector<16x32xf32> to vector<16x8xf32>
    %82 = vector.extract_strided_slice %39 {offsets = [0, 16], sizes = [16, 8], strides = [1, 1]} : vector<16x32xf32> to vector<16x8xf32>
    %cst_37 = arith.constant dense<0.000000e+00> : vector<8x16xf32>
    %83 = tpu.matmul %80, %81, %cst_37 {dimension_numbers = #tpu.dot_dimension_numbers<[1], [1], [0], [0], [0, 0, 1, 0], [], []>} : vector<8x8xf32>, vector<16x8xf32>, vector<8x16xf32> -> vector<8x16xf32>
    %c0_i32_38 = arith.constant 0 : i32
    %84 = vector.broadcast %c0_i32_38 : i32 to vector<8x16xi32>
    %85 = arith.cmpi eq, %41, %84 : vector<8x16xi32>
    %cst_39 = arith.constant -1.000000e+09 : f32
    %86 = vector.broadcast %cst_39 : f32 to vector<8x16xf32>
    %87 = arith.select %85, %86, %83 : vector<8x16xi1>, vector<8x16xf32>
    %cst_40 = arith.constant dense<0xFF800000> : vector<8xf32>
    %88 = vector.multi_reduction <maximumf>, %87, %cst_40 [1] : vector<8x16xf32> to vector<8xf32>
    %89 = vector.shape_cast %88 : vector<8xf32> to vector<8x1xf32>
    %90 = vector.broadcast %89 : vector<8x1xf32> to vector<8x16xf32>
    %91 = arith.subf %87, %90 : vector<8x16xf32>
    %92 = math.exp %91 : vector<8x16xf32>
    %cst_41 = arith.constant dense<0.000000e+00> : vector<8xf32>
    %93 = vector.multi_reduction <add>, %92, %cst_41 [1] : vector<8x16xf32> to vector<8xf32>
    %94 = vector.shape_cast %93 : vector<8xf32> to vector<8x1xf32>
    %95 = tpu.reciprocal %94 {approx = true} : vector<8x1xf32> -> vector<8x1xf32>
    %cst_42 = arith.constant dense<0.000000e+00> : vector<8x8xf32>
    %96 = tpu.matmul %92, %82, %cst_42 {dimension_numbers = #tpu.dot_dimension_numbers<[1], [0], [0], [1], [0, 0, 1, 1], [], []>} : vector<8x16xf32>, vector<16x8xf32>, vector<8x8xf32> -> vector<8x8xf32>
    %97 = vector.broadcast %95 : vector<8x1xf32> to vector<8x8xf32>
    %98 = arith.mulf %96, %97 : vector<8x8xf32>
    %99 = vector.extract_strided_slice %30 {offsets = [0, 24], sizes = [8, 8], strides = [1, 1]} : vector<8x32xf32> to vector<8x8xf32>
    %100 = vector.extract_strided_slice %38 {offsets = [0, 24], sizes = [16, 8], strides = [1, 1]} : vector<16x32xf32> to vector<16x8xf32>
    %101 = vector.extract_strided_slice %39 {offsets = [0, 24], sizes = [16, 8], strides = [1, 1]} : vector<16x32xf32> to vector<16x8xf32>
    %cst_43 = arith.constant dense<0.000000e+00> : vector<8x16xf32>
    %102 = tpu.matmul %99, %100, %cst_43 {dimension_numbers = #tpu.dot_dimension_numbers<[1], [1], [0], [0], [0, 0, 1, 0], [], []>} : vector<8x8xf32>, vector<16x8xf32>, vector<8x16xf32> -> vector<8x16xf32>
    %c0_i32_44 = arith.constant 0 : i32
    %103 = vector.broadcast %c0_i32_44 : i32 to vector<8x16xi32>
    %104 = arith.cmpi eq, %41, %103 : vector<8x16xi32>
    %cst_45 = arith.constant -1.000000e+09 : f32
    %105 = vector.broadcast %cst_45 : f32 to vector<8x16xf32>
    %106 = arith.select %104, %105, %102 : vector<8x16xi1>, vector<8x16xf32>
    %cst_46 = arith.constant dense<0xFF800000> : vector<8xf32>
    %107 = vector.multi_reduction <maximumf>, %106, %cst_46 [1] : vector<8x16xf32> to vector<8xf32>
    %108 = vector.shape_cast %107 : vector<8xf32> to vector<8x1xf32>
    %109 = vector.broadcast %108 : vector<8x1xf32> to vector<8x16xf32>
    %110 = arith.subf %106, %109 : vector<8x16xf32>
    %111 = math.exp %110 : vector<8x16xf32>
    %cst_47 = arith.constant dense<0.000000e+00> : vector<8xf32>
    %112 = vector.multi_reduction <add>, %111, %cst_47 [1] : vector<8x16xf32> to vector<8xf32>
    %113 = vector.shape_cast %112 : vector<8xf32> to vector<8x1xf32>
    %114 = tpu.reciprocal %113 {approx = true} : vector<8x1xf32> -> vector<8x1xf32>
    %cst_48 = arith.constant dense<0.000000e+00> : vector<8x8xf32>
    %115 = tpu.matmul %111, %101, %cst_48 {dimension_numbers = #tpu.dot_dimension_numbers<[1], [0], [0], [1], [0, 0, 1, 1], [], []>} : vector<8x16xf32>, vector<16x8xf32>, vector<8x8xf32> -> vector<8x8xf32>
    %116 = vector.broadcast %114 : vector<8x1xf32> to vector<8x8xf32>
    %117 = arith.mulf %115, %116 : vector<8x8xf32>
    %118 = tpu.concatenate %60, %79, %98, %117 in 1 : vector<8x8xf32>, vector<8x8xf32>, vector<8x8xf32>, vector<8x8xf32> -> vector<8x32xf32>
    %c0_49 = arith.constant 0 : index
    %c0_50 = arith.constant 0 : index
    %119 = vector.load %arg10[%c0_49, %c0_50] : memref<32x32xf32, #tpu.memory_space<vmem>>, vector<32x32xf32>
    %cst_51 = arith.constant dense<0.000000e+00> : vector<8x32xf32>
    %120 = tpu.matmul %118, %119, %cst_51 {dimension_numbers = #tpu.dot_dimension_numbers<[1], [0], [0], [1], [0, 0, 1, 1], [], []>} : vector<8x32xf32>, vector<32x32xf32>, vector<8x32xf32> -> vector<8x32xf32>
    %121 = arith.addf %1, %120 : vector<8x32xf32>
    %c0_52 = arith.constant 0 : index
    %c0_53 = arith.constant 0 : index
    %122 = vector.load %arg11[%c0_52, %c0_53] : memref<1x32xf32, #tpu.memory_space<vmem>>, vector<1x32xf32>
    %123 = vector.broadcast %122 : vector<1x32xf32> to vector<8x32xf32>
    %124 = arith.addf %121, %123 : vector<8x32xf32>
    %c0_54 = arith.constant 0 : index
    %c0_55 = arith.constant 0 : index
    %c0_56 = arith.constant 0 : index
    %125 = vector.load %arg12[%c0_54, %c0_55, %c0_56] : memref<1x8x32xf32, #tpu.memory_space<vmem>>, vector<1x8x32xf32>
    %126 = vector.shape_cast %125 : vector<1x8x32xf32> to vector<8x32xf32>
    %127 = vector.shape_cast %124 : vector<8x32xf32> to vector<1x8x32xf32>
    tpu.vector_store %arg12[%c0_54, %c0_55, %c0_56], %127 {strides = array<i32>} : memref<1x8x32xf32, #tpu.memory_space<vmem>>, vector<1x8x32xf32>,
    return
  }
  func.func @transform_0(%arg0: i32) -> (i32, i32, i32) {
    %c0_i32 = arith.constant 0 : i32
    %c0_i32_0 = arith.constant 0 : i32
    %c0_i32_1 = arith.constant 0 : i32
    return %arg0, %c0_i32, %c0_i32_0 : i32, i32, i32
  }
  func.func @transform_1(%arg0: i32) -> (i32, i32, i32) {
    %c0_i32 = arith.constant 0 : i32
    %c0_i32_0 = arith.constant 0 : i32
    %c0_i32_1 = arith.constant 0 : i32
    return %arg0, %c0_i32, %c0_i32_0 : i32, i32, i32
  }
  func.func @transform_2(%arg0: i32) -> (i32, i32, i32) {
    %c0_i32 = arith.constant 0 : i32
    %c0_i32_0 = arith.constant 0 : i32
    %c0_i32_1 = arith.constant 0 : i32
    return %arg0, %c0_i32, %c0_i32_0 : i32, i32, i32
  }
  func.func @transform_3(%arg0: i32) -> (i32, i32) {
    %c0_i32 = arith.constant 0 : i32
    %c0_i32_0 = arith.constant 0 : i32
    %c0_i32_1 = arith.constant 0 : i32
    return %c0_i32, %c0_i32_0 : i32, i32
  }
  func.func @transform_4(%arg0: i32) -> (i32, i32) {
    %c0_i32 = arith.constant 0 : i32
    %c0_i32_0 = arith.constant 0 : i32
    %c0_i32_1 = arith.constant 0 : i32
    return %c0_i32, %c0_i32_0 : i32, i32
  }
  func.func @transform_5(%arg0: i32) -> (i32, i32) {
    %c0_i32 = arith.constant 0 : i32
    %c0_i32_0 = arith.constant 0 : i32
    %c0_i32_1 = arith.constant 0 : i32
    return %c0_i32, %c0_i32_0 : i32, i32
  }
  func.func @transform_6(%arg0: i32) -> (i32, i32) {
    %c0_i32 = arith.constant 0 : i32
    %c0_i32_0 = arith.constant 0 : i32
    %c0_i32_1 = arith.constant 0 : i32
    return %c0_i32, %c0_i32_0 : i32, i32
  }
  func.func @transform_7(%arg0: i32) -> (i32, i32) {
    %c0_i32 = arith.constant 0 : i32
    %c0_i32_0 = arith.constant 0 : i32
    %c0_i32_1 = arith.constant 0 : i32
    return %c0_i32, %c0_i32_0 : i32, i32
  }
  func.func @transform_8(%arg0: i32) -> (i32, i32) {
    %c0_i32 = arith.constant 0 : i32
    %c0_i32_0 = arith.constant 0 : i32
    %c0_i32_1 = arith.constant 0 : i32
    return %c0_i32, %c0_i32_0 : i32, i32
  }
  func.func @transform_9(%arg0: i32) -> (i32, i32) {
    %c0_i32 = arith.constant 0 : i32
    %c0_i32_0 = arith.constant 0 : i32
    %c0_i32_1 = arith.constant 0 : i32
    return %c0_i32, %c0_i32_0 : i32, i32
  }
  func.func @transform_10(%arg0: i32) -> (i32, i32) {
    %c0_i32 = arith.constant 0 : i32
    %c0_i32_0 = arith.constant 0 : i32
    %c0_i32_1 = arith.constant 0 : i32
    return %c0_i32, %c0_i32_0 : i32, i32
  }
  func.func @transform_11(%arg0: i32) -> (i32, i32, i32) {
    %c0_i32 = arith.constant 0 : i32
    %c0_i32_0 = arith.constant 0 : i32
    %c0_i32_1 = arith.constant 0 : i32
    return %arg0, %c0_i32, %c0_i32_0 : i32, i32, i32
  }
}

module attributes {stable_mosaic.version = 11 : i64} {
  func.func @_attn_sublayer_kernel(%arg0: i32, %arg1: memref<1x8x32xf32, #tpu.memory_space<vmem>>, %arg2: memref<1x8x32xf32, #tpu.memory_space<vmem>>, %arg3: memref<1x8x8xi32, #tpu.memory_space<vmem>>, %arg4: memref<1x32xf32, #tpu.memory_space<vmem>>, %arg5: memref<1x32xf32, #tpu.memory_space<vmem>>, %arg6: memref<32x32xf32, #tpu.memory_space<vmem>>, %arg7: memref<1x32xf32, #tpu.memory_space<vmem>>, %arg8: memref<32x64xf32, #tpu.memory_space<vmem>>, %arg9: memref<1x64xf32, #tpu.memory_space<vmem>>, %arg10: memref<32x32xf32, #tpu.memory_space<vmem>>, %arg11: memref<1x32xf32, #tpu.memory_space<vmem>>, %arg12: memref<1x8x32xf32, #tpu.memory_space<vmem>>) attributes {dimension_semantics = [#tpu.dimension_semantics<parallel>], iteration_bounds = array<i64: 2>, scalar_prefetch = 0 : i64, scratch_operands = 0 : i64, tpu.core_type = #tpu.core_type<tc>, window_params = [{transform_indices = @transform_0, window_bounds = array<i64: 1, 8, 32>}, {transform_indices = @transform_1, window_bounds = array<i64: 1, 8, 32>}, {transform_indices = @transform_2, window_bounds = array<i64: 1, 8, 8>}, {pipeline_mode = #tpu.pipeline_mode<synchronous>, transform_indices = @transform_3, window_bounds = array<i64: 1, 32>}, {pipeline_mode = #tpu.pipeline_mode<synchronous>, transform_indices = @transform_4, window_bounds = array<i64: 1, 32>}, {pipeline_mode = #tpu.pipeline_mode<synchronous>, transform_indices = @transform_5, window_bounds = array<i64: 32, 32>}, {pipeline_mode = #tpu.pipeline_mode<synchronous>, transform_indices = @transform_6, window_bounds = array<i64: 1, 32>}, {pipeline_mode = #tpu.pipeline_mode<synchronous>, transform_indices = @transform_7, window_bounds = array<i64: 32, 64>}, {pipeline_mode = #tpu.pipeline_mode<synchronous>, transform_indices = @transform_8, window_bounds = array<i64: 1, 64>}, {pipeline_mode = #tpu.pipeline_mode<synchronous>, transform_indices = @transform_9, window_bounds = array<i64: 32, 32>}, {pipeline_mode = #tpu.pipeline_mode<synchronous>, transform_indices = @transform_10, window_bounds = array<i64: 1, 32>}, {transform_indices = @transform_11, window_bounds = array<i64: 1, 8, 32>}]} {
    %c0 = arith.constant 0 : index
    %c0_0 = arith.constant 0 : index
    %c0_1 = arith.constant 0 : index
    %0 = vector.load %arg1[%c0, %c0_0, %c0_1] : memref<1x8x32xf32, #tpu.memory_space<vmem>>, vector<1x8x32xf32>
    %1 = vector.shape_cast %0 : vector<1x8x32xf32> to vector<8x32xf32>
    %c0_2 = arith.constant 0 : index
    %c0_3 = arith.constant 0 : index
    %2 = vector.load %arg4[%c0_2, %c0_3] : memref<1x32xf32, #tpu.memory_space<vmem>>, vector<1x32xf32>
    %c0_4 = arith.constant 0 : index
    %c0_5 = arith.constant 0 : index
    %3 = vector.load %arg5[%c0_4, %c0_5] : memref<1x32xf32, #tpu.memory_space<vmem>>, vector<1x32xf32>
    %cst = arith.constant dense<0.000000e+00> : vector<8xf32>
    %4 = vector.multi_reduction <add>, %1, %cst [1] : vector<8x32xf32> to vector<8xf32>
    %5 = vector.shape_cast %4 : vector<8xf32> to vector<8x1xf32>
    %cst_6 = arith.constant 3.200000e+01 : f32
    %6 = vector.broadcast %cst_6 : f32 to vector<8x1xf32>
    %7 = arith.divf %5, %6 : vector<8x1xf32>
    %8 = vector.broadcast %7 : vector<8x1xf32> to vector<8x32xf32>
    %9 = arith.subf %1, %8 : vector<8x32xf32>
    %10 = arith.mulf %9, %9 : vector<8x32xf32>
    %cst_7 = arith.constant dense<0.000000e+00> : vector<8xf32>
    %11 = vector.multi_reduction <add>, %10, %cst_7 [1] : vector<8x32xf32> to vector<8xf32>
    %12 = vector.shape_cast %11 : vector<8xf32> to vector<8x1xf32>
    %cst_8 = arith.constant 3.200000e+01 : f32
    %13 = vector.broadcast %cst_8 : f32 to vector<8x1xf32>
    %14 = arith.divf %12, %13 : vector<8x1xf32>
    %15 = vector.broadcast %7 : vector<8x1xf32> to vector<8x32xf32>
    %16 = arith.subf %1, %15 : vector<8x32xf32>
    %cst_9 = arith.constant 9.99999974E-6 : f32
    %17 = vector.broadcast %cst_9 : f32 to vector<8x1xf32>
    %18 = arith.addf %14, %17 : vector<8x1xf32>
    %19 = math.rsqrt %18 : vector<8x1xf32>
    %20 = vector.broadcast %19 : vector<8x1xf32> to vector<8x32xf32>
    %21 = arith.mulf %16, %20 : vector<8x32xf32>
    %22 = vector.broadcast %2 : vector<1x32xf32> to vector<8x32xf32>
    %23 = arith.mulf %21, %22 : vector<8x32xf32>
    %24 = vector.broadcast %3 : vector<1x32xf32> to vector<8x32xf32>
    %25 = arith.addf %23, %24 : vector<8x32xf32>
    %c0_10 = arith.constant 0 : index
    %c0_11 = arith.constant 0 : index
    %26 = vector.load %arg6[%c0_10, %c0_11] : memref<32x32xf32, #tpu.memory_space<vmem>>, vector<32x32xf32>
    %cst_12 = arith.constant dense<0.000000e+00> : vector<8x32xf32>
    %27 = tpu.matmul %25, %26, %cst_12 {dimension_numbers = #tpu.dot_dimension_numbers<[1], [0], [0], [1], [0, 0, 1, 1], [], []>} : vector<8x32xf32>, vector<32x32xf32>, vector<8x32xf32> -> vector<8x32xf32>
    %c0_13 = arith.constant 0 : index
    %c0_14 = arith.constant 0 : index
    %28 = vector.load %arg7[%c0_13, %c0_14] : memref<1x32xf32, #tpu.memory_space<vmem>>, vector<1x32xf32>
    %29 = vector.broadcast %28 : vector<1x32xf32> to vector<8x32xf32>
    %30 = arith.addf %27, %29 : vector<8x32xf32>
    %c0_15 = arith.constant 0 : index
    %c0_16 = arith.constant 0 : index
    %31 = vector.load %arg8[%c0_15, %c0_16] : memref<32x64xf32, #tpu.memory_space<vmem>>, vector<32x64xf32>
    %cst_17 = arith.constant dense<0.000000e+00> : vector<8x64xf32>
    %32 = tpu.matmul %25, %31, %cst_17 {dimension_numbers = #tpu.dot_dimension_numbers<[1], [0], [0], [1], [0, 0, 1, 1], [], []>} : vector<8x32xf32>, vector<32x64xf32>, vector<8x64xf32> -> vector<8x64xf32>
    %c0_18 = arith.constant 0 : index
    %c0_19 = arith.constant 0 : index
    %33 = vector.load %arg9[%c0_18, %c0_19] : memref<1x64xf32, #tpu.memory_space<vmem>>, vector<1x64xf32>
    %34 = vector.broadcast %33 : vector<1x64xf32> to vector<8x64xf32>
    %35 = arith.addf %32, %34 : vector<8x64xf32>
    %36 = vector.extract_strided_slice %35 {offsets = [0, 0], sizes = [8, 32], strides = [1, 1]} : vector<8x64xf32> to vector<8x32xf32>
    %37 = vector.extract_strided_slice %35 {offsets = [0, 32], sizes = [8, 32], strides = [1, 1]} : vector<8x64xf32> to vector<8x32xf32>
    %c0_20 = arith.constant 0 : index
    %c0_21 = arith.constant 0 : index
    %c0_22 = arith.constant 0 : index
    %38 = vector.load %arg3[%c0_20, %c0_21, %c0_22] : memref<1x8x8xi32, #tpu.memory_space<vmem>>, vector<1x8x8xi32>
    %39 = vector.shape_cast %38 : vector<1x8x8xi32> to vector<8x8xi32>
    %40 = vector.extract_strided_slice %30 {offsets = [0, 0], sizes = [8, 8], strides = [1, 1]} : vector<8x32xf32> to vector<8x8xf32>
    %41 = vector.extract_strided_slice %36 {offsets = [0, 0], sizes = [8, 8], strides = [1, 1]} : vector<8x32xf32> to vector<8x8xf32>
    %42 = vector.extract_strided_slice %37 {offsets = [0, 0], sizes = [8, 8], strides = [1, 1]} : vector<8x32xf32> to vector<8x8xf32>
    %cst_23 = arith.constant dense<0.000000e+00> : vector<8x8xf32>
    %43 = tpu.matmul %40, %41, %cst_23 {dimension_numbers = #tpu.dot_dimension_numbers<[1], [1], [0], [0], [0, 0, 1, 0], [], []>} : vector<8x8xf32>, vector<8x8xf32>, vector<8x8xf32> -> vector<8x8xf32>
    %c0_i32 = arith.constant 0 : i32
    %44 = vector.broadcast %c0_i32 : i32 to vector<8x8xi32>
    %45 = arith.cmpi eq, %39, %44 : vector<8x8xi32>
    %cst_24 = arith.constant -1.000000e+09 : f32
    %46 = vector.broadcast %cst_24 : f32 to vector<8x8xf32>
    %47 = arith.select %45, %46, %43 : vector<8x8xi1>, vector<8x8xf32>
    %cst_25 = arith.constant dense<0xFF800000> : vector<8xf32>
    %48 = vector.multi_reduction <maximumf>, %47, %cst_25 [1] : vector<8x8xf32> to vector<8xf32>
    %49 = vector.shape_cast %48 : vector<8xf32> to vector<8x1xf32>
    %50 = vector.broadcast %49 : vector<8x1xf32> to vector<8x8xf32>
    %51 = arith.subf %47, %50 : vector<8x8xf32>
    %52 = math.exp %51 : vector<8x8xf32>
    %cst_26 = arith.constant dense<0.000000e+00> : vector<8xf32>
    %53 = vector.multi_reduction <add>, %52, %cst_26 [1] : vector<8x8xf32> to vector<8xf32>
    %54 = vector.shape_cast %53 : vector<8xf32> to vector<8x1xf32>
    %55 = tpu.reciprocal %54 {approx = true} : vector<8x1xf32> -> vector<8x1xf32>
    %cst_27 = arith.constant dense<0.000000e+00> : vector<8x8xf32>
    %56 = tpu.matmul %52, %42, %cst_27 {dimension_numbers = #tpu.dot_dimension_numbers<[1], [0], [0], [1], [0, 0, 1, 1], [], []>} : vector<8x8xf32>, vector<8x8xf32>, vector<8x8xf32> -> vector<8x8xf32>
    %57 = vector.broadcast %55 : vector<8x1xf32> to vector<8x8xf32>
    %58 = arith.mulf %56, %57 : vector<8x8xf32>
    %59 = vector.extract_strided_slice %30 {offsets = [0, 8], sizes = [8, 8], strides = [1, 1]} : vector<8x32xf32> to vector<8x8xf32>
    %60 = vector.extract_strided_slice %36 {offsets = [0, 8], sizes = [8, 8], strides = [1, 1]} : vector<8x32xf32> to vector<8x8xf32>
    %61 = vector.extract_strided_slice %37 {offsets = [0, 8], sizes = [8, 8], strides = [1, 1]} : vector<8x32xf32> to vector<8x8xf32>
    %cst_28 = arith.constant dense<0.000000e+00> : vector<8x8xf32>
    %62 = tpu.matmul %59, %60, %cst_28 {dimension_numbers = #tpu.dot_dimension_numbers<[1], [1], [0], [0], [0, 0, 1, 0], [], []>} : vector<8x8xf32>, vector<8x8xf32>, vector<8x8xf32> -> vector<8x8xf32>
    %c0_i32_29 = arith.constant 0 : i32
    %63 = vector.broadcast %c0_i32_29 : i32 to vector<8x8xi32>
    %64 = arith.cmpi eq, %39, %63 : vector<8x8xi32>
    %cst_30 = arith.constant -1.000000e+09 : f32
    %65 = vector.broadcast %cst_30 : f32 to vector<8x8xf32>
    %66 = arith.select %64, %65, %62 : vector<8x8xi1>, vector<8x8xf32>
    %cst_31 = arith.constant dense<0xFF800000> : vector<8xf32>
    %67 = vector.multi_reduction <maximumf>, %66, %cst_31 [1] : vector<8x8xf32> to vector<8xf32>
    %68 = vector.shape_cast %67 : vector<8xf32> to vector<8x1xf32>
    %69 = vector.broadcast %68 : vector<8x1xf32> to vector<8x8xf32>
    %70 = arith.subf %66, %69 : vector<8x8xf32>
    %71 = math.exp %70 : vector<8x8xf32>
    %cst_32 = arith.constant dense<0.000000e+00> : vector<8xf32>
    %72 = vector.multi_reduction <add>, %71, %cst_32 [1] : vector<8x8xf32> to vector<8xf32>
    %73 = vector.shape_cast %72 : vector<8xf32> to vector<8x1xf32>
    %74 = tpu.reciprocal %73 {approx = true} : vector<8x1xf32> -> vector<8x1xf32>
    %cst_33 = arith.constant dense<0.000000e+00> : vector<8x8xf32>
    %75 = tpu.matmul %71, %61, %cst_33 {dimension_numbers = #tpu.dot_dimension_numbers<[1], [0], [0], [1], [0, 0, 1, 1], [], []>} : vector<8x8xf32>, vector<8x8xf32>, vector<8x8xf32> -> vector<8x8xf32>
    %76 = vector.broadcast %74 : vector<8x1xf32> to vector<8x8xf32>
    %77 = arith.mulf %75, %76 : vector<8x8xf32>
    %78 = vector.extract_strided_slice %30 {offsets = [0, 16], sizes = [8, 8], strides = [1, 1]} : vector<8x32xf32> to vector<8x8xf32>
    %79 = vector.extract_strided_slice %36 {offsets = [0, 16], sizes = [8, 8], strides = [1, 1]} : vector<8x32xf32> to vector<8x8xf32>
    %80 = vector.extract_strided_slice %37 {offsets = [0, 16], sizes = [8, 8], strides = [1, 1]} : vector<8x32xf32> to vector<8x8xf32>
    %cst_34 = arith.constant dense<0.000000e+00> : vector<8x8xf32>
    %81 = tpu.matmul %78, %79, %cst_34 {dimension_numbers = #tpu.dot_dimension_numbers<[1], [1], [0], [0], [0, 0, 1, 0], [], []>} : vector<8x8xf32>, vector<8x8xf32>, vector<8x8xf32> -> vector<8x8xf32>
    %c0_i32_35 = arith.constant 0 : i32
    %82 = vector.broadcast %c0_i32_35 : i32 to vector<8x8xi32>
    %83 = arith.cmpi eq, %39, %82 : vector<8x8xi32>
    %cst_36 = arith.constant -1.000000e+09 : f32
    %84 = vector.broadcast %cst_36 : f32 to vector<8x8xf32>
    %85 = arith.select %83, %84, %81 : vector<8x8xi1>, vector<8x8xf32>
    %cst_37 = arith.constant dense<0xFF800000> : vector<8xf32>
    %86 = vector.multi_reduction <maximumf>, %85, %cst_37 [1] : vector<8x8xf32> to vector<8xf32>
    %87 = vector.shape_cast %86 : vector<8xf32> to vector<8x1xf32>
    %88 = vector.broadcast %87 : vector<8x1xf32> to vector<8x8xf32>
    %89 = arith.subf %85, %88 : vector<8x8xf32>
    %90 = math.exp %89 : vector<8x8xf32>
    %cst_38 = arith.constant dense<0.000000e+00> : vector<8xf32>
    %91 = vector.multi_reduction <add>, %90, %cst_38 [1] : vector<8x8xf32> to vector<8xf32>
    %92 = vector.shape_cast %91 : vector<8xf32> to vector<8x1xf32>
    %93 = tpu.reciprocal %92 {approx = true} : vector<8x1xf32> -> vector<8x1xf32>
    %cst_39 = arith.constant dense<0.000000e+00> : vector<8x8xf32>
    %94 = tpu.matmul %90, %80, %cst_39 {dimension_numbers = #tpu.dot_dimension_numbers<[1], [0], [0], [1], [0, 0, 1, 1], [], []>} : vector<8x8xf32>, vector<8x8xf32>, vector<8x8xf32> -> vector<8x8xf32>
    %95 = vector.broadcast %93 : vector<8x1xf32> to vector<8x8xf32>
    %96 = arith.mulf %94, %95 : vector<8x8xf32>
    %97 = vector.extract_strided_slice %30 {offsets = [0, 24], sizes = [8, 8], strides = [1, 1]} : vector<8x32xf32> to vector<8x8xf32>
    %98 = vector.extract_strided_slice %36 {offsets = [0, 24], sizes = [8, 8], strides = [1, 1]} : vector<8x32xf32> to vector<8x8xf32>
    %99 = vector.extract_strided_slice %37 {offsets = [0, 24], sizes = [8, 8], strides = [1, 1]} : vector<8x32xf32> to vector<8x8xf32>
    %cst_40 = arith.constant dense<0.000000e+00> : vector<8x8xf32>
    %100 = tpu.matmul %97, %98, %cst_40 {dimension_numbers = #tpu.dot_dimension_numbers<[1], [1], [0], [0], [0, 0, 1, 0], [], []>} : vector<8x8xf32>, vector<8x8xf32>, vector<8x8xf32> -> vector<8x8xf32>
    %c0_i32_41 = arith.constant 0 : i32
    %101 = vector.broadcast %c0_i32_41 : i32 to vector<8x8xi32>
    %102 = arith.cmpi eq, %39, %101 : vector<8x8xi32>
    %cst_42 = arith.constant -1.000000e+09 : f32
    %103 = vector.broadcast %cst_42 : f32 to vector<8x8xf32>
    %104 = arith.select %102, %103, %100 : vector<8x8xi1>, vector<8x8xf32>
    %cst_43 = arith.constant dense<0xFF800000> : vector<8xf32>
    %105 = vector.multi_reduction <maximumf>, %104, %cst_43 [1] : vector<8x8xf32> to vector<8xf32>
    %106 = vector.shape_cast %105 : vector<8xf32> to vector<8x1xf32>
    %107 = vector.broadcast %106 : vector<8x1xf32> to vector<8x8xf32>
    %108 = arith.subf %104, %107 : vector<8x8xf32>
    %109 = math.exp %108 : vector<8x8xf32>
    %cst_44 = arith.constant dense<0.000000e+00> : vector<8xf32>
    %110 = vector.multi_reduction <add>, %109, %cst_44 [1] : vector<8x8xf32> to vector<8xf32>
    %111 = vector.shape_cast %110 : vector<8xf32> to vector<8x1xf32>
    %112 = tpu.reciprocal %111 {approx = true} : vector<8x1xf32> -> vector<8x1xf32>
    %cst_45 = arith.constant dense<0.000000e+00> : vector<8x8xf32>
    %113 = tpu.matmul %109, %99, %cst_45 {dimension_numbers = #tpu.dot_dimension_numbers<[1], [0], [0], [1], [0, 0, 1, 1], [], []>} : vector<8x8xf32>, vector<8x8xf32>, vector<8x8xf32> -> vector<8x8xf32>
    %114 = vector.broadcast %112 : vector<8x1xf32> to vector<8x8xf32>
    %115 = arith.mulf %113, %114 : vector<8x8xf32>
    %116 = tpu.concatenate %58, %77, %96, %115 in 1 : vector<8x8xf32>, vector<8x8xf32>, vector<8x8xf32>, vector<8x8xf32> -> vector<8x32xf32>
    %c0_46 = arith.constant 0 : index
    %c0_47 = arith.constant 0 : index
    %117 = vector.load %arg10[%c0_46, %c0_47] : memref<32x32xf32, #tpu.memory_space<vmem>>, vector<32x32xf32>
    %cst_48 = arith.constant dense<0.000000e+00> : vector<8x32xf32>
    %118 = tpu.matmul %116, %117, %cst_48 {dimension_numbers = #tpu.dot_dimension_numbers<[1], [0], [0], [1], [0, 0, 1, 1], [], []>} : vector<8x32xf32>, vector<32x32xf32>, vector<8x32xf32> -> vector<8x32xf32>
    %119 = arith.addf %1, %118 : vector<8x32xf32>
    %c0_49 = arith.constant 0 : index
    %c0_50 = arith.constant 0 : index
    %120 = vector.load %arg11[%c0_49, %c0_50] : memref<1x32xf32, #tpu.memory_space<vmem>>, vector<1x32xf32>
    %121 = vector.broadcast %120 : vector<1x32xf32> to vector<8x32xf32>
    %122 = arith.addf %119, %121 : vector<8x32xf32>
    %c0_51 = arith.constant 0 : index
    %c0_52 = arith.constant 0 : index
    %c0_53 = arith.constant 0 : index
    %123 = vector.load %arg12[%c0_51, %c0_52, %c0_53] : memref<1x8x32xf32, #tpu.memory_space<vmem>>, vector<1x8x32xf32>
    %124 = vector.shape_cast %123 : vector<1x8x32xf32> to vector<8x32xf32>
    %125 = vector.shape_cast %122 : vector<8x32xf32> to vector<1x8x32xf32>
    tpu.vector_store %arg12[%c0_51, %c0_52, %c0_53], %125 {strides = array<i32>} : memref<1x8x32xf32, #tpu.memory_space<vmem>>, vector<1x8x32xf32>,
    return
  }
  func.func @transform_0(%arg0: i32) -> (i32, i32, i32) {
    %c0_i32 = arith.constant 0 : i32
    %c0_i32_0 = arith.constant 0 : i32
    %c0_i32_1 = arith.constant 0 : i32
    return %arg0, %c0_i32, %c0_i32_0 : i32, i32, i32
  }
  func.func @transform_1(%arg0: i32) -> (i32, i32, i32) {
    %c0_i32 = arith.constant 0 : i32
    %c0_i32_0 = arith.constant 0 : i32
    %c0_i32_1 = arith.constant 0 : i32
    return %arg0, %c0_i32, %c0_i32_0 : i32, i32, i32
  }
  func.func @transform_2(%arg0: i32) -> (i32, i32, i32) {
    %c0_i32 = arith.constant 0 : i32
    %c0_i32_0 = arith.constant 0 : i32
    %c0_i32_1 = arith.constant 0 : i32
    return %arg0, %c0_i32, %c0_i32_0 : i32, i32, i32
  }
  func.func @transform_3(%arg0: i32) -> (i32, i32) {
    %c0_i32 = arith.constant 0 : i32
    %c0_i32_0 = arith.constant 0 : i32
    %c0_i32_1 = arith.constant 0 : i32
    return %c0_i32, %c0_i32_0 : i32, i32
  }
  func.func @transform_4(%arg0: i32) -> (i32, i32) {
    %c0_i32 = arith.constant 0 : i32
    %c0_i32_0 = arith.constant 0 : i32
    %c0_i32_1 = arith.constant 0 : i32
    return %c0_i32, %c0_i32_0 : i32, i32
  }
  func.func @transform_5(%arg0: i32) -> (i32, i32) {
    %c0_i32 = arith.constant 0 : i32
    %c0_i32_0 = arith.constant 0 : i32
    %c0_i32_1 = arith.constant 0 : i32
    return %c0_i32, %c0_i32_0 : i32, i32
  }
  func.func @transform_6(%arg0: i32) -> (i32, i32) {
    %c0_i32 = arith.constant 0 : i32
    %c0_i32_0 = arith.constant 0 : i32
    %c0_i32_1 = arith.constant 0 : i32
    return %c0_i32, %c0_i32_0 : i32, i32
  }
  func.func @transform_7(%arg0: i32) -> (i32, i32) {
    %c0_i32 = arith.constant 0 : i32
    %c0_i32_0 = arith.constant 0 : i32
    %c0_i32_1 = arith.constant 0 : i32
    return %c0_i32, %c0_i32_0 : i32, i32
  }
  func.func @transform_8(%arg0: i32) -> (i32, i32) {
    %c0_i32 = arith.constant 0 : i32
    %c0_i32_0 = arith.constant 0 : i32
    %c0_i32_1 = arith.constant 0 : i32
    return %c0_i32, %c0_i32_0 : i32, i32
  }
  func.func @transform_9(%arg0: i32) -> (i32, i32) {
    %c0_i32 = arith.constant 0 : i32
    %c0_i32_0 = arith.constant 0 : i32
    %c0_i32_1 = arith.constant 0 : i32
    return %c0_i32, %c0_i32_0 : i32, i32
  }
  func.func @transform_10(%arg0: i32) -> (i32, i32) {
    %c0_i32 = arith.constant 0 : i32
    %c0_i32_0 = arith.constant 0 : i32
    %c0_i32_1 = arith.constant 0 : i32
    return %c0_i32, %c0_i32_0 : i32, i32
  }
  func.func @transform_11(%arg0: i32) -> (i32, i32, i32) {
    %c0_i32 = arith.constant 0 : i32
    %c0_i32_0 = arith.constant 0 : i32
    %c0_i32_1 = arith.constant 0 : i32
    return %arg0, %c0_i32, %c0_i32_0 : i32, i32, i32
  }
}

</mosaic_0001>

<llo_original>
// kernel: decoder_block_forward.5
$region0: #{decoder_block_forward.5}
  #allocation0 [shape = 'u32[]', space=smem, size = 0x4, offset = 0x4, fixed_abs, tag = 'smem constant byte address 0x4 - core index']
  #allocation1 [shape = 'u32[144,128]{1,0:T(1,128)}', space=vmem, size = 0x12000, scoped, tag = 'internal scratch']
  %s0 = inlined_call_operand.vmem [shape: f32[16,32], index: 0, kind: input, shape index: {}]
  %s1 = inlined_call_operand.vmem [shape: f32[1,32], index: 1, kind: input, shape index: {}]
  %s2 = inlined_call_operand.vmem [shape: f32[1,32], index: 2, kind: input, shape index: {}]
  %s3 = inlined_call_operand.vmem [shape: f32[32,64], index: 3, kind: input, shape index: {}]
  %s4 = inlined_call_operand.vmem [shape: f32[1,64], index: 4, kind: input, shape index: {}]
  %s5 = inlined_call_operand.vmem [shape: f32[64,32], index: 5, kind: input, shape index: {}]
  %s6 = inlined_call_operand.vmem [shape: f32[1,32], index: 6, kind: input, shape index: {}]
  %s7 = inlined_call_operand.hbm [shape: f32[16,32], index: 7, kind: output, shape index: {}]
  %s8 = sld [smem:[#allocation0]]
  $region38: #{decoder_block_forward.5} parent=0
    _
  %s10 = ssub.s32 1, %s8
  %s11 = scalar_select 0, %s10, %s8
  $region1: #{decoder_block_forward.5} parent=0
    #allocation2 [shape = 'u8[8192]{0}', space=vmem, size = 0x2000, scoped, tag = 'output window, operand 0, single buffered']
    #allocation3 [shape = 's32[1]{0}', space=sflag, size = 0x4, scoped, tag = 'scoped memory for decoder_block_forward.5']
    %12 = vsyncpa [#allocation3], 0
    // Predicated region
    $region2: #{decoder_block_forward.5} parent=1 // pred_check
      _
    $region3: #{decoder_block_forward.5} parent=1 // pred_check_branch
      %14 = sbr.rel (0) target = $region5
    $region4: #{decoder_block_forward.5} parent=1 // pred_region
      _
    $region5: #{decoder_block_forward.5} parent=1 // pred_fallthru
      _
    // Predicated region
    $region6: #{decoder_block_forward.5} parent=1 // pred_check
      _
    $region7: #{decoder_block_forward.5} parent=1 // pred_check_branch
      %16 = sbr.rel (0) target = $region9
    $region8: #{decoder_block_forward.5} parent=1 // pred_region
      _
    $region9: #{decoder_block_forward.5} parent=1 // pred_fallthru
      _
    // Predicated region
    $region10: #{decoder_block_forward.5} parent=1 // pred_check
      _
    $region11: #{decoder_block_forward.5} parent=1 // pred_check_branch
      %18 = sbr.rel (0) target = $region13
    $region12: #{decoder_block_forward.5} parent=1 // pred_region
      _
    $region13: #{decoder_block_forward.5} parent=1 // pred_fallthru
      _
    // Predicated region
    $region14: #{decoder_block_forward.5} parent=1 // pred_check
      _
    $region15: #{decoder_block_forward.5} parent=1 // pred_check_branch
      %20 = sbr.rel (0) target = $region17
    $region16: #{decoder_block_forward.5} parent=1 // pred_region
      _
    $region17: #{decoder_block_forward.5} parent=1 // pred_fallthru
      _
    // Predicated region
    $region18: #{decoder_block_forward.5} parent=1 // pred_check
      _
    $region19: #{decoder_block_forward.5} parent=1 // pred_check_branch
      %22 = sbr.rel (0) target = $region21
    $region20: #{decoder_block_forward.5} parent=1 // pred_region
      _
    $region21: #{decoder_block_forward.5} parent=1 // pred_fallthru
      _
    // Predicated region
    $region22: #{decoder_block_forward.5} parent=1 // pred_check
      _
    $region23: #{decoder_block_forward.5} parent=1 // pred_check_branch
      %24 = sbr.rel (0) target = $region25
    $region24: #{decoder_block_forward.5} parent=1 // pred_region
      _
    $region25: #{decoder_block_forward.5} parent=1 // pred_fallthru
      _
    // Predicated region
    $region26: #{decoder_block_forward.5} parent=1 // pred_check
      _
    $region27: #{decoder_block_forward.5} parent=1 // pred_check_branch
      %26 = sbr.rel (0) target = $region29
    $region28: #{decoder_block_forward.5} parent=1 // pred_region
      _
    $region29: #{decoder_block_forward.5} parent=1 // pred_fallthru
      _
    %v27 = vld [vmem:[%s0] sm:$0xff]
    %v28 = vld [vmem:[%s0 + $0x8] sm:$0xff]
    %v29 = vld [vmem:[%s1] sm:$0x1]
    %v30 = vld [vmem:[%s2] sm:$0x1]
    %vm31 = vcmask 261120
    %v32 = vsel %vm31, %v27, 0.0
    %33 = vadd.xlane.f32.xlu0 %v32
    %v34 = vpop.xlane.xlu0 %33
    %v35 = vsel %vm31, %v28, 0.0
    %36 = vadd.xlane.f32.xlu0 %v35
    %v37 = vpop.xlane.xlu0 %36
    %v38 = vrcp.pop 32.0
    %v39 = vmul.f32 %v34, %v38
    %v40 = vmul.f32 %v37, %v38
    %v41 = vsub.f32 %v27, %v39
    %v42 = vsub.f32 %v28, %v40
    %v43 = vmul.f32 %v41, %v41
    %v44 = vmul.f32 %v42, %v42
    %v45 = vsel %vm31, %v43, 0.0
    %46 = vadd.xlane.f32.xlu0 %v45
    %v47 = vpop.xlane.xlu0 %46
    %v48 = vsel %vm31, %v44, 0.0
    %49 = vadd.xlane.f32.xlu0 %v48
    %v50 = vpop.xlane.xlu0 %49
    %v51 = vmul.f32 %v47, %v38
    %v52 = vmul.f32 %v50, %v38
    %v53 = vadd.f32 %v51, 1e-05
    %v54 = vadd.f32 %v52, 1e-05
    %v55 = vrsqrt.pop %v53
    %v56 = vrsqrt.pop %v54
    %v57 = vmul.f32 %v41, %v55
    %v58 = vmul.f32 %v42, %v56
    %v60 = vlaneseq
    %v61 = vshrl.u32 %v60, 7
    %v62 = vsub.s32 0, %v61
    %v63 = vrot.slane %v29, %v62
    %v65 = vmul.f32 %v57, %v63
    %v66 = vmul.f32 %v58, %v63
    %v68 = vlaneseq
    %v69 = vshrl.u32 %v68, 7
    %v70 = vsub.s32 0, %v69
    %v71 = vrot.slane %v30, %v70
    %v73 = vadd.f32 %v65, %v71
    %v74 = vadd.f32 %v66, %v71
    %v75 = vld [vmem:[%s3] sm:$0xff]
    %v76 = vld [vmem:[%s3 + $0x8] sm:$0xff]
    %v77 = vld [vmem:[%s3 + $0x10] sm:$0xff]
    %v78 = vld [vmem:[%s3 + $0x18] sm:$0xff]
    %v79 = vld [vmem:[%s4] sm:$0x1]
    %v81 = vlaneseq
    %v82 = vshrl.u32 %v81, 7
    %v83 = vsub.s32 0, %v82
    %v84 = vrot.slane %v79, %v83
    %v87 = vsel %vm31, %v73, 0
    %v90 = vsel %vm31, %v74, 0
    %92 = vmatprep.subr.mxu0 0.0
    %93 = vmatpush1.msra.mxu0 %v75
    %94 = vmatprep.subr.mxu0 0.0
    %95 = vmatpush1.msra.mxu0 %v76
    %96 = vmatprep.subr.mxu0 0.0
    %97 = vmatpush1.msra.mxu0 %v77
    %98 = vmatprep.subr.mxu0 0.0
    %99 = vmatpush1.msra.mxu0 %v78
    %100 = vmatprep.subr.mxu0 0.0
    %101 = vmatpush1.msra.mxu0 0.0
    %102 = vmatprep.subr.mxu0 0.0
    %103 = vmatpush1.msra.mxu0 0.0
    %104 = vmatprep.subr.mxu0 0.0
    %105 = vmatpush1.msra.mxu0 0.0
    %106 = vmatprep.subr.mxu0 0.0
    %107 = vmatpush1.msra.mxu0 0.0
    %108 = vmatprep.subr.mxu0 0.0
    %109 = vmatpush1.msra.mxu0 0.0
    %110 = vmatprep.subr.mxu0 0.0
    %111 = vmatpush1.msra.mxu0 0.0
    %112 = vmatprep.subr.mxu0 0.0
    %113 = vmatpush1.msra.mxu0 0.0
    %114 = vmatprep.subr.mxu0 0.0
    %115 = vmatpush1.msra.mxu0 0.0
    %116 = vmatprep.subr.mxu0 0.0
    %117 = vmatpush1.msra.mxu0 0.0
    %118 = vmatprep.subr.mxu0 0.0
    %119 = vmatpush1.msra.mxu0 0.0
    %120 = vmatprep.subr.mxu0 0.0
    %121 = vmatpush1.msra.mxu0 0.0
    %122 = vmatprep.subr.mxu0 0.0
    %123 = vmatpush1.msra.mxu0 0.0
    %124 = vmatprep.subr.mxu0 0.0
    %125 = vmatpush1.msra.mxu0 0.0
    %126 = vmatprep.subr.mxu0 0.0
    %127 = vmatpush1.msra.mxu0 0.0
    %128 = vmatprep.subr.mxu0 0.0
    %129 = vmatpush1.msra.mxu0 0.0
    %130 = vmatprep.subr.mxu0 0.0
    %131 = vmatpush1.msra.mxu0 0.0
    %132 = vmatprep.subr.mxu0 0.0
    %133 = vmatpush1.msra.mxu0 0.0
    %134 = vmatprep.subr.mxu0 0.0
    %135 = vmatpush1.msra.mxu0 0.0
    %136 = vmatprep.subr.mxu0 0.0
    %137 = vmatpush1.msra.mxu0 0.0
    %138 = vmatprep.subr.mxu0 0.0
    %139 = vmatpush1.msra.mxu0 0.0
    %140 = vmatprep.subr.mxu0 0.0
    %141 = vmatpush1.msra.mxu0 0.0
    %142 = vmatprep.subr.mxu0 0.0
    %143 = vmatpush1.msra.mxu0 0.0
    %144 = vmatprep.subr.mxu0 0.0
    %145 = vmatpush1.msra.mxu0 0.0
    %146 = vmatprep.subr.mxu0 0.0
    %147 = vmatpush1.msra.mxu0 0.0
    %148 = vmatprep.subr.mxu0 0.0
    %149 = vmatpush1.msra.mxu0 0.0
    %150 = vmatprep.subr.mxu0 0.0
    %151 = vmatpush1.msra.mxu0 0.0
    %152 = vmatprep.subr.mxu0 0.0
    %153 = vmatpush1.msra.mxu0 0.0
    %154 = vmatprep.subr.mxu0 0.0
    %155 = vmatpush1.msra.mxu0 0.0
    %156 = vmatprep.mubr.f32.mxu0 0.0
    %157 = vmatmul.mubr.f32.gmra.mrb[0].mxu0 %v87
    %v158 = vpop.f32.mrb[0].mxu0
    %v159 = vadd.f32 %v84, %v158
    %v160 = vpop.f32.mrb[0].mxu0
    %161 = vmatprep.mubr.f32.mxu0 0.0
    %162 = vmatmul.mubr.f32.gmra.mrb[0].mxu0 %v90
    %v163 = vpop.f32.mrb[0].mxu0
    %v164 = vadd.f32 %v84, %v163
    %v165 = vpop.f32.mrb[0].mxu0
    %166 = vdwg.mxu0
    %v167 = vmax.f32 %v159, 0.0
    %v168 = vmax.f32 %v164, 0.0
    %v169 = vld [vmem:[%s5] sm:$0xff]
    %v170 = vld [vmem:[%s5 + $0x8] sm:$0xff]
    %v171 = vld [vmem:[%s5 + $0x10] sm:$0xff]
    %v172 = vld [vmem:[%s5 + $0x18] sm:$0xff]
    %v173 = vld [vmem:[%s5 + $0x20] sm:$0xff]
    %v174 = vld [vmem:[%s5 + $0x28] sm:$0xff]
    %v175 = vld [vmem:[%s5 + $0x30] sm:$0xff]
    %v176 = vld [vmem:[%s5 + $0x38] sm:$0xff]
    %vm177 = vcmask 523264
    %v179 = vsel %vm177, %v167, 0
    %v182 = vsel %vm177, %v168, 0
    %184 = vmatprep.subr.mxu0 0.0
    %185 = vmatpush1.msra.mxu0 %v169
    %186 = vmatprep.subr.mxu0 0.0
    %187 = vmatpush1.msra.mxu0 %v170
    %188 = vmatprep.subr.mxu0 0.0
    %189 = vmatpush1.msra.mxu0 %v171
    %190 = vmatprep.subr.mxu0 0.0
    %191 = vmatpush1.msra.mxu0 %v172
    %192 = vmatprep.subr.mxu0 0.0
    %193 = vmatpush1.msra.mxu0 %v173
    %194 = vmatprep.subr.mxu0 0.0
    %195 = vmatpush1.msra.mxu0 %v174
    %196 = vmatprep.subr.mxu0 0.0
    %197 = vmatpush1.msra.mxu0 %v175
    %198 = vmatprep.subr.mxu0 0.0
    %199 = vmatpush1.msra.mxu0 %v176
    %200 = vmatprep.subr.mxu0 0.0
    %201 = vmatpush1.msra.mxu0 0.0
    %202 = vmatprep.subr.mxu0 0.0
    %203 = vmatpush1.msra.mxu0 0.0
    %204 = vmatprep.subr.mxu0 0.0
    %205 = vmatpush1.msra.mxu0 0.0
    %206 = vmatprep.subr.mxu0 0.0
    %207 = vmatpush1.msra.mxu0 0.0
    %208 = vmatprep.subr.mxu0 0.0
    %209 = vmatpush1.msra.mxu0 0.0
    %210 = vmatprep.subr.mxu0 0.0
    %211 = vmatpush1.msra.mxu0 0.0
    %212 = vmatprep.subr.mxu0 0.0
    %213 = vmatpush1.msra.mxu0 0.0
    %214 = vmatprep.subr.mxu0 0.0
    %215 = vmatpush1.msra.mxu0 0.0
    %216 = vmatprep.subr.mxu0 0.0
    %217 = vmatpush1.msra.mxu0 0.0
    %218 = vmatprep.subr.mxu0 0.0
    %219 = vmatpush1.msra.mxu0 0.0
    %220 = vmatprep.subr.mxu0 0.0
    %221 = vmatpush1.msra.mxu0 0.0
    %222 = vmatprep.subr.mxu0 0.0
    %223 = vmatpush1.msra.mxu0 0.0
    %224 = vmatprep.subr.mxu0 0.0
    %225 = vmatpush1.msra.mxu0 0.0
    %226 = vmatprep.subr.mxu0 0.0
    %227 = vmatpush1.msra.mxu0 0.0
    %228 = vmatprep.subr.mxu0 0.0
    %229 = vmatpush1.msra.mxu0 0.0
    %230 = vmatprep.subr.mxu0 0.0
    %231 = vmatpush1.msra.mxu0 0.0
    %232 = vmatprep.subr.mxu0 0.0
    %233 = vmatpush1.msra.mxu0 0.0
    %234 = vmatprep.subr.mxu0 0.0
    %235 = vmatpush1.msra.mxu0 0.0
    %236 = vmatprep.subr.mxu0 0.0
    %237 = vmatpush1.msra.mxu0 0.0
    %238 = vmatprep.subr.mxu0 0.0
    %239 = vmatpush1.msra.mxu0 0.0
    %240 = vmatprep.subr.mxu0 0.0
    %241 = vmatpush1.msra.mxu0 0.0
    %242 = vmatprep.subr.mxu0 0.0
    %243 = vmatpush1.msra.mxu0 0.0
    %244 = vmatprep.subr.mxu0 0.0
    %245 = vmatpush1.msra.mxu0 0.0
    %246 = vmatprep.subr.mxu0 0.0
    %247 = vmatpush1.msra.mxu0 0.0
    %248 = vmatprep.mubr.f32.mxu0 0.0
    %249 = vmatmul.mubr.f32.gmra.mrb[0].mxu0 %v179
    %v250 = vpop.f32.mrb[0].mxu0
    %v251 = vadd.f32 0.0, %v250
    %v252 = vpop.f32.mrb[0].mxu0
    %253 = vmatprep.mubr.f32.mxu0 0.0
    %254 = vmatmul.mubr.f32.gmra.mrb[0].mxu0 %v182
    %v255 = vpop.f32.mrb[0].mxu0
    %v256 = vadd.f32 0.0, %v255
    %v257 = vpop.f32.mrb[0].mxu0
    %258 = vdwg.mxu0
    %v259 = vadd.f32 %v27, %v251
    %v260 = vadd.f32 %v28, %v256
    %v261 = vld [vmem:[%s6] sm:$0x1]
    %v263 = vlaneseq
    %v264 = vshrl.u32 %v263, 7
    %v265 = vsub.s32 0, %v264
    %v266 = vrot.slane %v261, %v265
    %v268 = vadd.f32 %v259, %v266
    %v269 = vadd.f32 %v260, %v266
    %270 = vst.msk [vmem:[#allocation2] sm:$0xff] %vm31, %v268
    %271 = vst.msk [vmem:[#allocation2 + $0x8] sm:$0xff] %vm31, %v269
    // Predicated region
    $region30: #{decoder_block_forward.5} parent=1 // pred_check
      _
    $region31: #{decoder_block_forward.5} parent=1 // pred_check_branch
      %273 = sbr.rel (0) target = $region33
    $region32: #{decoder_block_forward.5} parent=1 // pred_region
      %s275 = ssub.s32 256, 256
      %276 = vsyncadd [#allocation3], %s275
      %s277 = sshll.u32 [#allocation2], 4
      %s278 = int_to_ptr.vmem [resolvable:$true] %s277
      %283 = dma.vmem_to_hbm [thread:$0]  %s278, 256, %s7, [#allocation3], 128, 128, 8
    $region33: #{decoder_block_forward.5} parent=1 // pred_fallthru
      _
    // Predicated region
    $region34: #{decoder_block_forward.5} parent=1 // pred_check
      _
    $region35: #{decoder_block_forward.5} parent=1 // pred_check_branch
      %285 = sbr.rel (0) target = $region37
    $region36: #{decoder_block_forward.5} parent=1 // pred_region
      %286 = dma.done [#allocation3], 256
    $region37: #{decoder_block_forward.5} parent=1 // pred_fallthru
      _
    %287 = vsyncpa [#allocation3], 1

// kernel: decoder_block_forward.4
$region0: #{decoder_block_forward.4}
  #allocation0 [shape = 'u32[]', space=smem, size = 0x4, offset = 0x4, fixed_abs, tag = 'smem constant byte address 0x4 - core index']
  #allocation1 [shape = 'u32[144,128]{1,0:T(1,128)}', space=vmem, size = 0x12000, scoped, tag = 'internal scratch']
  %s0 = inlined_call_operand.vmem [shape: f32[2,8,32], index: 0, kind: input, shape index: {}]
  %s1 = inlined_call_operand.vmem [shape: f32[2,16,32], index: 1, kind: input, shape index: {}]
  %s2 = inlined_call_operand.vmem [shape: s32[2,8,16], index: 2, kind: input, shape index: {}]
  %s3 = inlined_call_operand.vmem [shape: f32[1,32], index: 3, kind: input, shape index: {}]
  %s4 = inlined_call_operand.vmem [shape: f32[1,32], index: 4, kind: input, shape index: {}]
  %s5 = inlined_call_operand.vmem [shape: f32[32,32], index: 5, kind: input, shape index: {}]
  %s6 = inlined_call_operand.vmem [shape: f32[1,32], index: 6, kind: input, shape index: {}]
  %s7 = inlined_call_operand.vmem [shape: f32[32,64], index: 7, kind: input, shape index: {}]
  %s8 = inlined_call_operand.vmem [shape: f32[1,64], index: 8, kind: input, shape index: {}]
  %s9 = inlined_call_operand.vmem [shape: f32[32,32], index: 9, kind: input, shape index: {}]
  %s10 = inlined_call_operand.vmem [shape: f32[1,32], index: 10, kind: input, shape index: {}]
  %s11 = inlined_call_operand.vmem [shape: f32[2,8,32], index: 11, kind: output, shape index: {}]
  %s12 = sld [smem:[#allocation0]]
  $region77: #{decoder_block_forward.4} parent=0
    _
  %s14 = ssub.s32 1, %s12
  %s15 = scalar_select 0, %s14, %s12
  loop: start=0, step=1, limit=4
  $region2: #{decoder_block_forward.4} parent=0 // loop_pre_header
    _
  $region3: #{decoder_block_forward.4} parent=0 // loop_header
    %s17 = sphi 0, %s21
    %p18 = scmp.ge.s32.totalorder %s17, 4
    %s27 = sphi 0, %s29
    %s30 = sphi 0, %s27
    %s31 = sphi 0, %s30
    %s47 = sphi 0, %s31
    %s53 = sphi 0, %s55
    %s56 = sphi 0, %s53
    %s57 = sphi 0, %s56
    %s73 = sphi 0, %s57
    %s79 = sphi 0, %s81
    %s82 = sphi 0, %s79
    %s83 = sphi 0, %s82
    %s99 = sphi 0, %s83
    %s103 = sphi 0, %s103
    %s105 = sphi 0, %s103
    %s106 = sphi 0, %s105
    %s120 = sphi 0, %s106
    %s124 = sphi 0, %s124
    %s126 = sphi 0, %s124
    %s127 = sphi 0, %s126
    %s141 = sphi 0, %s127
    %s145 = sphi 0, %s145
    %s147 = sphi 0, %s145
    %s148 = sphi 0, %s147
    %s162 = sphi 0, %s148
    %s166 = sphi 0, %s166
    %s168 = sphi 0, %s166
    %s169 = sphi 0, %s168
    %s183 = sphi 0, %s169
    %s187 = sphi 0, %s187
    %s189 = sphi 0, %s187
    %s190 = sphi 0, %s189
    %s204 = sphi 0, %s190
    %s208 = sphi 0, %s208
    %s210 = sphi 0, %s208
    %s211 = sphi 0, %s210
    %s225 = sphi 0, %s211
    %s229 = sphi 0, %s229
    %s231 = sphi 0, %s229
    %s232 = sphi 0, %s231
    %s246 = sphi 0, %s232
    %s250 = sphi 0, %s250
    %s252 = sphi 0, %s250
    %s253 = sphi 0, %s252
    %s267 = sphi 0, %s253
    %s273 = sphi 0, %s275
    %s276 = sphi 0, %s273
    %s277 = sphi 0, %s276
    %s293 = sphi 0, %s277
  $region4: #{decoder_block_forward.4} parent=0 // loop_header_branch
    %20 = sbr.rel (%p18) target = $region8
  $region5: #{decoder_block_forward.4} parent=0 // loop_body
    %s22 = ssub.s32 %s17, 1
    %s23 = ssub.s32 %s17, 2
    %s24 = sadd.s32 %s17, 1
    %s25 = ssub.s32 %s17, %s24
    %p26 = scmp.eq.s32.totalorder %s25, 0
    %s28 = sadd.s32 %s27, 1
    %s29 = scalar_select %p26, %s27, %s28
    %p32 = pneg %p26
    %p33 = scmp.eq.s32.totalorder %s17, 1
    %p34 = por %p32, %p33
    %p35 = scmp.ne.s32.totalorder %s27, %s30
    %p36 = scmp.eq.s32.totalorder %s17, 0
    %p37 = por %p35, %p36
    %p38 = scmp.ne.s32.totalorder %s27, %s30
    %p39 = scmp.eq.s32.totalorder %s22, 1
    %p40 = por %p38, %p39
    %p41 = scmp.ne.s32.totalorder %s30, %s31
    %p42 = scmp.eq.s32.totalorder %s22, 0
    %p43 = por %p41, %p42
    %p44 = scmp.ne.s32.totalorder %s30, %s31
    %p45 = scmp.eq.s32.totalorder %s23, 1
    %p46 = por %p44, %p45
    %p48 = scmp.ne.s32.totalorder %s31, %s47
    %p49 = scmp.eq.s32.totalorder %s23, 0
    %p50 = por %p48, %p49
    %s51 = ssub.s32 %s17, %s24
    %p52 = scmp.eq.s32.totalorder %s51, 0
    %s54 = sadd.s32 %s53, 1
    %s55 = scalar_select %p52, %s53, %s54
    %p58 = pneg %p52
    %p59 = scmp.eq.s32.totalorder %s17, 1
    %p60 = por %p58, %p59
    %p61 = scmp.ne.s32.totalorder %s53, %s56
    %p62 = scmp.eq.s32.totalorder %s17, 0
    %p63 = por %p61, %p62
    %p64 = scmp.ne.s32.totalorder %s53, %s56
    %p65 = scmp.eq.s32.totalorder %s22, 1
    %p66 = por %p64, %p65
    %p67 = scmp.ne.s32.totalorder %s56, %s57
    %p68 = scmp.eq.s32.totalorder %s22, 0
    %p69 = por %p67, %p68
    %p70 = scmp.ne.s32.totalorder %s56, %s57
    %p71 = scmp.eq.s32.totalorder %s23, 1
    %p72 = por %p70, %p71
    %p74 = scmp.ne.s32.totalorder %s57, %s73
    %p75 = scmp.eq.s32.totalorder %s23, 0
    %p76 = por %p74, %p75
    %s77 = ssub.s32 %s17, %s24
    %p78 = scmp.eq.s32.totalorder %s77, 0
    %s80 = sadd.s32 %s79, 1
    %s81 = scalar_select %p78, %s79, %s80
    %p84 = pneg %p78
    %p85 = scmp.eq.s32.totalorder %s17, 1
    %p86 = por %p84, %p85
    %p87 = scmp.ne.s32.totalorder %s79, %s82
    %p88 = scmp.eq.s32.totalorder %s17, 0
    %p89 = por %p87, %p88
    %p90 = scmp.ne.s32.totalorder %s79, %s82
    %p91 = scmp.eq.s32.totalorder %s22, 1
    %p92 = por %p90, %p91
    %p93 = scmp.ne.s32.totalorder %s82, %s83
    %p94 = scmp.eq.s32.totalorder %s22, 0
    %p95 = por %p93, %p94
    %p96 = scmp.ne.s32.totalorder %s82, %s83
    %p97 = scmp.eq.s32.totalorder %s23, 1
    %p98 = por %p96, %p97
    %p100 = scmp.ne.s32.totalorder %s83, %s99
    %p101 = scmp.eq.s32.totalorder %s23, 0
    %p102 = por %p100, %p101
    %s104 = sadd.s32 %s103, 1
    %p107 = scmp.eq.s32.totalorder %s17, 1
    %p108 = scmp.ne.s32.totalorder %s103, %s105
    %p109 = scmp.eq.s32.totalorder %s17, 0
    %p110 = por %p108, %p109
    %p111 = scmp.ne.s32.totalorder %s103, %s105
    %p112 = scmp.eq.s32.totalorder %s22, 1
    %p113 = por %p111, %p112
    %p114 = scmp.ne.s32.totalorder %s105, %s106
    %p115 = scmp.eq.s32.totalorder %s22, 0
    %p116 = por %p114, %p115
    %p117 = scmp.ne.s32.totalorder %s105, %s106
    %p118 = scmp.eq.s32.totalorder %s23, 1
    %p119 = por %p117, %p118
    %p121 = scmp.ne.s32.totalorder %s106, %s120
    %p122 = scmp.eq.s32.totalorder %s23, 0
    %p123 = por %p121, %p122
    %s125 = sadd.s32 %s124, 1
    %p128 = scmp.eq.s32.totalorder %s17, 1
    %p129 = scmp.ne.s32.totalorder %s124, %s126
    %p130 = scmp.eq.s32.totalorder %s17, 0
    %p131 = por %p129, %p130
    %p132 = scmp.ne.s32.totalorder %s124, %s126
    %p133 = scmp.eq.s32.totalorder %s22, 1
    %p134 = por %p132, %p133
    %p135 = scmp.ne.s32.totalorder %s126, %s127
    %p136 = scmp.eq.s32.totalorder %s22, 0
    %p137 = por %p135, %p136
    %p138 = scmp.ne.s32.totalorder %s126, %s127
    %p139 = scmp.eq.s32.totalorder %s23, 1
    %p140 = por %p138, %p139
    %p142 = scmp.ne.s32.totalorder %s127, %s141
    %p143 = scmp.eq.s32.totalorder %s23, 0
    %p144 = por %p142, %p143
    %s146 = sadd.s32 %s145, 1
    %p149 = scmp.eq.s32.totalorder %s17, 1
    %p150 = scmp.ne.s32.totalorder %s145, %s147
    %p151 = scmp.eq.s32.totalorder %s17, 0
    %p152 = por %p150, %p151
    %p153 = scmp.ne.s32.totalorder %s145, %s147
    %p154 = scmp.eq.s32.totalorder %s22, 1
    %p155 = por %p153, %p154
    %p156 = scmp.ne.s32.totalorder %s147, %s148
    %p157 = scmp.eq.s32.totalorder %s22, 0
    %p158 = por %p156, %p157
    %p159 = scmp.ne.s32.totalorder %s147, %s148
    %p160 = scmp.eq.s32.totalorder %s23, 1
    %p161 = por %p159, %p160
    %p163 = scmp.ne.s32.totalorder %s148, %s162
    %p164 = scmp.eq.s32.totalorder %s23, 0
    %p165 = por %p163, %p164
    %s167 = sadd.s32 %s166, 1
    %p170 = scmp.eq.s32.totalorder %s17, 1
    %p171 = scmp.ne.s32.totalorder %s166, %s168
    %p172 = scmp.eq.s32.totalorder %s17, 0
    %p173 = por %p171, %p172
    %p174 = scmp.ne.s32.totalorder %s166, %s168
    %p175 = scmp.eq.s32.totalorder %s22, 1
    %p176 = por %p174, %p175
    %p177 = scmp.ne.s32.totalorder %s168, %s169
    %p178 = scmp.eq.s32.totalorder %s22, 0
    %p179 = por %p177, %p178
    %p180 = scmp.ne.s32.totalorder %s168, %s169
    %p181 = scmp.eq.s32.totalorder %s23, 1
    %p182 = por %p180, %p181
    %p184 = scmp.ne.s32.totalorder %s169, %s183
    %p185 = scmp.eq.s32.totalorder %s23, 0
    %p186 = por %p184, %p185
    %s188 = sadd.s32 %s187, 1
    %p191 = scmp.eq.s32.totalorder %s17, 1
    %p192 = scmp.ne.s32.totalorder %s187, %s189
    %p193 = scmp.eq.s32.totalorder %s17, 0
    %p194 = por %p192, %p193
    %p195 = scmp.ne.s32.totalorder %s187, %s189
    %p196 = scmp.eq.s32.totalorder %s22, 1
    %p197 = por %p195, %p196
    %p198 = scmp.ne.s32.totalorder %s189, %s190
    %p199 = scmp.eq.s32.totalorder %s22, 0
    %p200 = por %p198, %p199
    %p201 = scmp.ne.s32.totalorder %s189, %s190
    %p202 = scmp.eq.s32.totalorder %s23, 1
    %p203 = por %p201, %p202
    %p205 = scmp.ne.s32.totalorder %s190, %s204
    %p206 = scmp.eq.s32.totalorder %s23, 0
    %p207 = por %p205, %p206
    %s209 = sadd.s32 %s208, 1
    %p212 = scmp.eq.s32.totalorder %s17, 1
    %p213 = scmp.ne.s32.totalorder %s208, %s210
    %p214 = scmp.eq.s32.totalorder %s17, 0
    %p215 = por %p213, %p214
    %p216 = scmp.ne.s32.totalorder %s208, %s210
    %p217 = scmp.eq.s32.totalorder %s22, 1
    %p218 = por %p216, %p217
    %p219 = scmp.ne.s32.totalorder %s210, %s211
    %p220 = scmp.eq.s32.totalorder %s22, 0
    %p221 = por %p219, %p220
    %p222 = scmp.ne.s32.totalorder %s210, %s211
    %p223 = scmp.eq.s32.totalorder %s23, 1
    %p224 = por %p222, %p223
    %p226 = scmp.ne.s32.totalorder %s211, %s225
    %p227 = scmp.eq.s32.totalorder %s23, 0
    %p228 = por %p226, %p227
    %s230 = sadd.s32 %s229, 1
    %p233 = scmp.eq.s32.totalorder %s17, 1
    %p234 = scmp.ne.s32.totalorder %s229, %s231
    %p235 = scmp.eq.s32.totalorder %s17, 0
    %p236 = por %p234, %p235
    %p237 = scmp.ne.s32.totalorder %s229, %s231
    %p238 = scmp.eq.s32.totalorder %s22, 1
    %p239 = por %p237, %p238
    %p240 = scmp.ne.s32.totalorder %s231, %s232
    %p241 = scmp.eq.s32.totalorder %s22, 0
    %p242 = por %p240, %p241
    %p243 = scmp.ne.s32.totalorder %s231, %s232
    %p244 = scmp.eq.s32.totalorder %s23, 1
    %p245 = por %p243, %p244
    %p247 = scmp.ne.s32.totalorder %s232, %s246
    %p248 = scmp.eq.s32.totalorder %s23, 0
    %p249 = por %p247, %p248
    %s251 = sadd.s32 %s250, 1
    %p254 = scmp.eq.s32.totalorder %s17, 1
    %p255 = scmp.ne.s32.totalorder %s250, %s252
    %p256 = scmp.eq.s32.totalorder %s17, 0
    %p257 = por %p255, %p256
    %p258 = scmp.ne.s32.totalorder %s250, %s252
    %p259 = scmp.eq.s32.totalorder %s22, 1
    %p260 = por %p258, %p259
    %p261 = scmp.ne.s32.totalorder %s252, %s253
    %p262 = scmp.eq.s32.totalorder %s22, 0
    %p263 = por %p261, %p262
    %p264 = scmp.ne.s32.totalorder %s252, %s253
    %p265 = scmp.eq.s32.totalorder %s23, 1
    %p266 = por %p264, %p265
    %p268 = scmp.ne.s32.totalorder %s253, %s267
    %p269 = scmp.eq.s32.totalorder %s23, 0
    %p270 = por %p268, %p269
    %s271 = ssub.s32 %s17, %s24
    %p272 = scmp.eq.s32.totalorder %s271, 0
    %s274 = sadd.s32 %s273, 1
    %s275 = scalar_select %p272, %s273, %s274
    %p278 = pneg %p272
    %p279 = scmp.eq.s32.totalorder %s17, 1
    %p280 = por %p278, %p279
    %p281 = scmp.ne.s32.totalorder %s273, %s276
    %p282 = scmp.eq.s32.totalorder %s17, 0
    %p283 = por %p281, %p282
    %p284 = scmp.ne.s32.totalorder %s273, %s276
    %p285 = scmp.eq.s32.totalorder %s22, 1
    %p286 = por %p284, %p285
    %p287 = scmp.ne.s32.totalorder %s276, %s277
    %p288 = scmp.eq.s32.totalorder %s22, 0
    %p289 = por %p287, %p288
    %p290 = scmp.ne.s32.totalorder %s276, %s277
    %p291 = scmp.eq.s32.totalorder %s23, 1
    %p292 = por %p290, %p291
    %p294 = scmp.ne.s32.totalorder %s277, %s293
    %p295 = scmp.eq.s32.totalorder %s23, 0
    %p296 = por %p294, %p295
    %p297 = scmp.le.s32.totalorder 1, %s17
    %p298 = scmp.lt.s32.totalorder %s17, 3
    %p299 = pnand %p297, %p298
    %p300 = pneg %p299
    // Predicated region
    $region9: #{decoder_block_forward.4} parent=5 // pred_check
      _
    $region10: #{decoder_block_forward.4} parent=5 // pred_check_branch
      %302 = sbr.rel (%p299) target = $region12
    $region11: #{decoder_block_forward.4} parent=5 // pred_region
      %s303 = ssub.s32 %s17, 1
      // Predicated region
      $region13: #{decoder_block_forward.4} parent=11 // pred_check
        %p304 = pneg %p116
      $region14: #{decoder_block_forward.4} parent=11 // pred_check_branch
        %306 = sbr.rel (%p304) target = $region16
      $region15: #{decoder_block_forward.4} parent=11 // pred_region
        _
      $region16: #{decoder_block_forward.4} parent=11 // pred_fallthru
        _
      // Predicated region
      $region17: #{decoder_block_forward.4} parent=11 // pred_check
        %p307 = pneg %p137
      $region18: #{decoder_block_forward.4} parent=11 // pred_check_branch
        %309 = sbr.rel (%p307) target = $region20
      $region19: #{decoder_block_forward.4} parent=11 // pred_region
        _
      $region20: #{decoder_block_forward.4} parent=11 // pred_fallthru
        _
      // Predicated region
      $region21: #{decoder_block_forward.4} parent=11 // pred_check
        %p310 = pneg %p158
      $region22: #{decoder_block_forward.4} parent=11 // pred_check_branch
        %312 = sbr.rel (%p310) target = $region24
      $region23: #{decoder_block_forward.4} parent=11 // pred_region
        _
      $region24: #{decoder_block_forward.4} parent=11 // pred_fallthru
        _
      // Predicated region
      $region25: #{decoder_block_forward.4} parent=11 // pred_check
        %p313 = pneg %p179
      $region26: #{decoder_block_forward.4} parent=11 // pred_check_branch
        %315 = sbr.rel (%p313) target = $region28
      $region27: #{decoder_block_forward.4} parent=11 // pred_region
        _
      $region28: #{decoder_block_forward.4} parent=11 // pred_fallthru
        _
      // Predicated region
      $region29: #{decoder_block_forward.4} parent=11 // pred_check
        %p316 = pneg %p200
      $region30: #{decoder_block_forward.4} parent=11 // pred_check_branch
        %318 = sbr.rel (%p316) target = $region32
      $region31: #{decoder_block_forward.4} parent=11 // pred_region
        _
      $region32: #{decoder_block_forward.4} parent=11 // pred_fallthru
        _
      // Predicated region
      $region33: #{decoder_block_forward.4} parent=11 // pred_check
        %p319 = pneg %p221
      $region34: #{decoder_block_forward.4} parent=11 // pred_check_branch
        %321 = sbr.rel (%p319) target = $region36
      $region35: #{decoder_block_forward.4} parent=11 // pred_region
        _
      $region36: #{decoder_block_forward.4} parent=11 // pred_fallthru
        _
      // Predicated region
      $region37: #{decoder_block_forward.4} parent=11 // pred_check
        %p322 = pneg %p242
      $region38: #{decoder_block_forward.4} parent=11 // pred_check_branch
        %324 = sbr.rel (%p322) target = $region40
      $region39: #{decoder_block_forward.4} parent=11 // pred_region
        _
      $region40: #{decoder_block_forward.4} parent=11 // pred_fallthru
        _
      // Predicated region
      $region41: #{decoder_block_forward.4} parent=11 // pred_check
        %p325 = pneg %p263
      $region42: #{decoder_block_forward.4} parent=11 // pred_check_branch
        %327 = sbr.rel (%p325) target = $region44
      $region43: #{decoder_block_forward.4} parent=11 // pred_region
        _
      $region44: #{decoder_block_forward.4} parent=11 // pred_fallthru
        _
    $region12: #{decoder_block_forward.4} parent=5 // pred_fallthru
      _
    %p328 = scmp.lt.s32.totalorder %s17, 2
    // Predicated region
    $region45: #{decoder_block_forward.4} parent=5 // pred_check
      %p329 = pneg %p328
    $region46: #{decoder_block_forward.4} parent=5 // pred_check_branch
      %331 = sbr.rel (%p329) target = $region48
    $region47: #{decoder_block_forward.4} parent=5 // pred_region
      // Predicated region
      $region49: #{decoder_block_forward.4} parent=47 // pred_check
        %p332 = pneg %p37
      $region50: #{decoder_block_forward.4} parent=47 // pred_check_branch
        %334 = sbr.rel (%p332) target = $region52
      $region51: #{decoder_block_forward.4} parent=47 // pred_region
        %p335 = scmp.lt.s32.totalorder %s17, 1
        %s336 = scalar_select %p335, %s17, 1
        %s337 = smul.addr %s336, 8
        %s338 = scalar_lea.vmem %s0, %s337
      $region52: #{decoder_block_forward.4} parent=47 // pred_fallthru
        _
      // Predicated region
      $region53: #{decoder_block_forward.4} parent=47 // pred_check
        %p339 = pneg %p63
      $region54: #{decoder_block_forward.4} parent=47 // pred_check_branch
        %341 = sbr.rel (%p339) target = $region56
      $region55: #{decoder_block_forward.4} parent=47 // pred_region
        %p342 = scmp.lt.s32.totalorder %s17, 1
        %s343 = scalar_select %p342, %s17, 1
        %s344 = smul.addr %s343, 2
        %s345 = smul.addr %s344, 8
        %s346 = scalar_lea.vmem %s1, %s345
      $region56: #{decoder_block_forward.4} parent=47 // pred_fallthru
        _
      // Predicated region
      $region57: #{decoder_block_forward.4} parent=47 // pred_check
        %p347 = pneg %p89
      $region58: #{decoder_block_forward.4} parent=47 // pred_check_branch
        %349 = sbr.rel (%p347) target = $region60
      $region59: #{decoder_block_forward.4} parent=47 // pred_region
        %p350 = scmp.lt.s32.totalorder %s17, 1
        %s351 = scalar_select %p350, %s17, 1
        %s352 = smul.addr %s351, 8
        %s353 = scalar_lea.vmem %s2, %s352
      $region60: #{decoder_block_forward.4} parent=47 // pred_fallthru
        _
    $region48: #{decoder_block_forward.4} parent=5 // pred_fallthru
      _
    %p354 = scmp.le.s32.totalorder 1, %s17
    %p355 = scmp.lt.s32.totalorder %s17, 3
    %p356 = pnand %p354, %p355
    %p357 = pneg %p356
    // Predicated region
    $region61: #{decoder_block_forward.4} parent=5 // pred_check
      _
    $region62: #{decoder_block_forward.4} parent=5 // pred_check_branch
      %359 = sbr.rel (%p356) target = $region64
    $region63: #{decoder_block_forward.4} parent=5 // pred_region
      %s360 = ssub.s32 %s17, 1
      %p361 = scmp.lt.s32.totalorder %s22, 1
      %s362 = scalar_select %p361, %s22, 1
      %s363 = smul.addr %s362, 8
      %s364 = scalar_lea.vmem %s0, %s363
      %p365 = pneg %p43
      %p366 = pneg %p40
      %p367 = scmp.lt.s32.totalorder %s22, 1
      %s368 = scalar_select %p367, %s22, 1
      %s369 = smul.addr %s368, 2
      %s370 = smul.addr %s369, 8
      %s371 = scalar_lea.vmem %s1, %s370
      %p372 = pneg %p69
      %p373 = pneg %p66
      %p374 = scmp.lt.s32.totalorder %s22, 1
      %s375 = scalar_select %p374, %s22, 1
      %s376 = smul.addr %s375, 8
      %s377 = scalar_lea.vmem %s2, %s376
      %p378 = pneg %p95
      %p379 = pneg %p92
      %p380 = pneg %p116
      %p381 = pneg %p113
      %p382 = pneg %p137
      %p383 = pneg %p134
      %p384 = pneg %p158
      %p385 = pneg %p155
      %p386 = pneg %p179
      %p387 = pneg %p176
      %p388 = pneg %p200
      %p389 = pneg %p197
      %p390 = pneg %p221
      %p391 = pneg %p218
      %p392 = pneg %p242
      %p393 = pneg %p239
      %p394 = pneg %p263
      %p395 = pneg %p260
      %p396 = pneg %p289
      %p397 = pneg %p286
      %p398 = scmp.lt.s32.totalorder %s22, 1
      %s399 = scalar_select %p398, %s22, 1
      %s400 = smul.addr %s399, 8
      %s401 = scalar_lea.vmem %s11, %s400
      %p402 = scmp.lt.s32.totalorder %s22, 1
      %s403 = scalar_select %p402, %s22, 1
      %s404 = smul.addr %s403, 8
      %s405 = scalar_lea.vmem %s0, %s404
      %p406 = scmp.lt.s32.totalorder %s22, 1
      %s407 = scalar_select %p406, %s22, 1
      %s408 = smul.addr %s407, 2
      %s409 = smul.addr %s408, 8
      %s410 = scalar_lea.vmem %s1, %s409
      %p411 = scmp.lt.s32.totalorder %s22, 1
      %s412 = scalar_select %p411, %s22, 1
      %s413 = smul.addr %s412, 8
      %s414 = scalar_lea.vmem %s2, %s413
      %p415 = scmp.lt.s32.totalorder %s22, 1
      %s416 = scalar_select %p415, %s22, 1
      %s417 = smul.addr %s416, 8
      %s418 = scalar_lea.vmem %s11, %s417
      %v419 = vld [vmem:[%s405] sm:$0xff]
      %v420 = vld [vmem:[%s3] sm:$0x1]
      %v421 = vld [vmem:[%s4] sm:$0x1]
      %vm422 = vcmask 261120
      %v423 = vsel %vm422, %v419, 0.0
      %424 = vadd.xlane.f32.xlu0 %v423
      %v425 = vpop.xlane.xlu0 %424
      %v426 = vrcp.pop 32.0
      %v427 = vmul.f32 %v425, %v426
      %v428 = vsub.f32 %v419, %v427
      %v429 = vmul.f32 %v428, %v428
      %v430 = vsel %vm422, %v429, 0.0
      %431 = vadd.xlane.f32.xlu0 %v430
      %v432 = vpop.xlane.xlu0 %431
      %v433 = vmul.f32 %v432, %v426
      %v434 = vadd.f32 %v433, 1e-05
      %v435 = vrsqrt.pop %v434
      %v436 = vmul.f32 %v428, %v435
      %v438 = vlaneseq
      %v439 = vshrl.u32 %v438, 7
      %v440 = vsub.s32 0, %v439
      %v441 = vrot.slane %v420, %v440
      %v443 = vmul.f32 %v436, %v441
      %v445 = vlaneseq
      %v446 = vshrl.u32 %v445, 7
      %v447 = vsub.s32 0, %v446
      %v448 = vrot.slane %v421, %v447
      %v450 = vadd.f32 %v443, %v448
      %v451 = vld [vmem:[%s5] sm:$0xff]
      %v452 = vld [vmem:[%s5 + $0x8] sm:$0xff]
      %v453 = vld [vmem:[%s5 + $0x10] sm:$0xff]
      %v454 = vld [vmem:[%s5 + $0x18] sm:$0xff]
      %v455 = vld [vmem:[%s6] sm:$0x1]
      %v457 = vlaneseq
      %v458 = vshrl.u32 %v457, 7
      %v459 = vsub.s32 0, %v458
      %v460 = vrot.slane %v455, %v459
      %v463 = vsel %vm422, %v450, 0
      %465 = vmatprep.subr.mxu0 0.0
      %466 = vmatpush1.msra.mxu0 %v451
      %467 = vmatprep.subr.mxu0 0.0
      %468 = vmatpush1.msra.mxu0 %v452
      %469 = vmatprep.subr.mxu0 0.0
      %470 = vmatpush1.msra.mxu0 %v453
      %471 = vmatprep.subr.mxu0 0.0
      %472 = vmatpush1.msra.mxu0 %v454
      %473 = vmatprep.subr.mxu0 0.0
      %474 = vmatpush1.msra.mxu0 0.0
      %475 = vmatprep.subr.mxu0 0.0
      %476 = vmatpush1.msra.mxu0 0.0
      %477 = vmatprep.subr.mxu0 0.0
      %478 = vmatpush1.msra.mxu0 0.0
      %479 = vmatprep.subr.mxu0 0.0
      %480 = vmatpush1.msra.mxu0 0.0
      %481 = vmatprep.subr.mxu0 0.0
      %482 = vmatpush1.msra.mxu0 0.0
      %483 = vmatprep.subr.mxu0 0.0
      %484 = vmatpush1.msra.mxu0 0.0
      %485 = vmatprep.subr.mxu0 0.0
      %486 = vmatpush1.msra.mxu0 0.0
      %487 = vmatprep.subr.mxu0 0.0
      %488 = vmatpush1.msra.mxu0 0.0
      %489 = vmatprep.subr.mxu0 0.0
      %490 = vmatpush1.msra.mxu0 0.0
      %491 = vmatprep.subr.mxu0 0.0
      %492 = vmatpush1.msra.mxu0 0.0
      %493 = vmatprep.subr.mxu0 0.0
      %494 = vmatpush1.msra.mxu0 0.0
      %495 = vmatprep.subr.mxu0 0.0
      %496 = vmatpush1.msra.mxu0 0.0
      %497 = vmatprep.subr.mxu0 0.0
      %498 = vmatpush1.msra.mxu0 0.0
      %499 = vmatprep.subr.mxu0 0.0
      %500 = vmatpush1.msra.mxu0 0.0
      %501 = vmatprep.subr.mxu0 0.0
      %502 = vmatpush1.msra.mxu0 0.0
      %503 = vmatprep.subr.mxu0 0.0
      %504 = vmatpush1.msra.mxu0 0.0
      %505 = vmatprep.subr.mxu0 0.0
      %506 = vmatpush1.msra.mxu0 0.0
      %507 = vmatprep.subr.mxu0 0.0
      %508 = vmatpush1.msra.mxu0 0.0
      %509 = vmatprep.subr.mxu0 0.0
      %510 = vmatpush1.msra.mxu0 0.0
      %511 = vmatprep.subr.mxu0 0.0
      %512 = vmatpush1.msra.mxu0 0.0
      %513 = vmatprep.subr.mxu0 0.0
      %514 = vmatpush1.msra.mxu0 0.0
      %515 = vmatprep.subr.mxu0 0.0
      %516 = vmatpush1.msra.mxu0 0.0
      %517 = vmatprep.subr.mxu0 0.0
      %518 = vmatpush1.msra.mxu0 0.0
      %519 = vmatprep.subr.mxu0 0.0
      %520 = vmatpush1.msra.mxu0 0.0
      %521 = vmatprep.subr.mxu0 0.0
      %522 = vmatpush1.msra.mxu0 0.0
      %523 = vmatprep.subr.mxu0 0.0
      %524 = vmatpush1.msra.mxu0 0.0
      %525 = vmatprep.subr.mxu0 0.0
      %526 = vmatpush1.msra.mxu0 0.0
      %527 = vmatprep.subr.mxu0 0.0
      %528 = vmatpush1.msra.mxu0 0.0
      %529 = vmatprep.mubr.f32.mxu0 0.0
      %530 = vmatmul.mubr.f32.gmra.mrb[0].mxu0 %v463
      %v531 = vpop.f32.mrb[0].mxu0
      %v532 = vadd.f32 %v460, %v531
      %v533 = vpop.f32.mrb[0].mxu0
      %534 = vdwg.mxu0
      %v535 = vld [vmem:[%s410] sm:$0xff]
      %v536 = vld [vmem:[%s410 + $0x8] sm:$0xff]
      %v537 = vld [vmem:[%s7] sm:$0xff]
      %v538 = vld [vmem:[%s7 + $0x8] sm:$0xff]
      %v539 = vld [vmem:[%s7 + $0x10] sm:$0xff]
      %v540 = vld [vmem:[%s7 + $0x18] sm:$0xff]
      %v541 = vld [vmem:[%s8] sm:$0x1]
      %v543 = vlaneseq
      %v544 = vshrl.u32 %v543, 7
      %v545 = vsub.s32 0, %v544
      %v546 = vrot.slane %v541, %v545
      %v549 = vsel %vm422, %v535, 0
      %v552 = vsel %vm422, %v536, 0
      %554 = vmatprep.subr.mxu0 0.0
      %555 = vmatpush1.msra.mxu0 %v537
      %556 = vmatprep.subr.mxu0 0.0
      %557 = vmatpush1.msra.mxu0 %v538
      %558 = vmatprep.subr.mxu0 0.0
      %559 = vmatpush1.msra.mxu0 %v539
      %560 = vmatprep.subr.mxu0 0.0
      %561 = vmatpush1.msra.mxu0 %v540
      %562 = vmatprep.subr.mxu0 0.0
      %563 = vmatpush1.msra.mxu0 0.0
      %564 = vmatprep.subr.mxu0 0.0
      %565 = vmatpush1.msra.mxu0 0.0
      %566 = vmatprep.subr.mxu0 0.0
      %567 = vmatpush1.msra.mxu0 0.0
      %568 = vmatprep.subr.mxu0 0.0
      %569 = vmatpush1.msra.mxu0 0.0
      %570 = vmatprep.subr.mxu0 0.0
      %571 = vmatpush1.msra.mxu0 0.0
      %572 = vmatprep.subr.mxu0 0.0
      %573 = vmatpush1.msra.mxu0 0.0
      %574 = vmatprep.subr.mxu0 0.0
      %575 = vmatpush1.msra.mxu0 0.0
      %576 = vmatprep.subr.mxu0 0.0
      %577 = vmatpush1.msra.mxu0 0.0
      %578 = vmatprep.subr.mxu0 0.0
      %579 = vmatpush1.msra.mxu0 0.0
      %580 = vmatprep.subr.mxu0 0.0
      %581 = vmatpush1.msra.mxu0 0.0
      %582 = vmatprep.subr.mxu0 0.0
      %583 = vmatpush1.msra.mxu0 0.0
      %584 = vmatprep.subr.mxu0 0.0
      %585 = vmatpush1.msra.mxu0 0.0
      %586 = vmatprep.subr.mxu0 0.0
      %587 = vmatpush1.msra.mxu0 0.0
      %588 = vmatprep.subr.mxu0 0.0
      %589 = vmatpush1.msra.mxu0 0.0
      %590 = vmatprep.subr.mxu0 0.0
      %591 = vmatpush1.msra.mxu0 0.0
      %592 = vmatprep.subr.mxu0 0.0
      %593 = vmatpush1.msra.mxu0 0.0
      %594 = vmatprep.subr.mxu0 0.0
      %595 = vmatpush1.msra.mxu0 0.0
      %596 = vmatprep.subr.mxu0 0.0
      %597 = vmatpush1.msra.mxu0 0.0
      %598 = vmatprep.subr.mxu0 0.0
      %599 = vmatpush1.msra.mxu0 0.0
      %600 = vmatprep.subr.mxu0 0.0
      %601 = vmatpush1.msra.mxu0 0.0
      %602 = vmatprep.subr.mxu0 0.0
      %603 = vmatpush1.msra.mxu0 0.0
      %604 = vmatprep.subr.mxu0 0.0
      %605 = vmatpush1.msra.mxu0 0.0
      %606 = vmatprep.subr.mxu0 0.0
      %607 = vmatpush1.msra.mxu0 0.0
      %608 = vmatprep.subr.mxu0 0.0
      %609 = vmatpush1.msra.mxu0 0.0
      %610 = vmatprep.subr.mxu0 0.0
      %611 = vmatpush1.msra.mxu0 0.0
      %612 = vmatprep.subr.mxu0 0.0
      %613 = vmatpush1.msra.mxu0 0.0
      %614 = vmatprep.subr.mxu0 0.0
      %615 = vmatpush1.msra.mxu0 0.0
      %616 = vmatprep.subr.mxu0 0.0
      %617 = vmatpush1.msra.mxu0 0.0
      %618 = vmatprep.mubr.f32.mxu0 0.0
      %619 = vmatmul.mubr.f32.gmra.mrb[0].mxu0 %v549
      %v620 = vpop.f32.mrb[0].mxu0
      %v621 = vadd.f32 %v546, %v620
      %v622 = vpop.f32.mrb[0].mxu0
      %623 = vmatprep.mubr.f32.mxu0 0.0
      %624 = vmatmul.mubr.f32.gmra.mrb[0].mxu0 %v552
      %v625 = vpop.f32.mrb[0].mxu0
      %v626 = vadd.f32 %v546, %v625
      %v627 = vpop.f32.mrb[0].mxu0
      %628 = vdwg.mxu0
      %v629 = vld [vmem:[%s414] sm:$0xff]
      %vm630 = vcmask 64512
      %v632 = vsel %vm630, %v532, 0
      %v635 = vsel %vm630, %v621, 0
      %v638 = vsel %vm630, %v626, 0
      %640 = vmatprep.subr.mxu0 0.0
      %641 = vmatpush1.xpose.msra.mxu0 %v635
      %642 = vmatprep.subr.mxu0 0.0
      %643 = vmatpush1.xpose.msra.mxu0 %v638
      %644 = vmatprep.subr.mxu0 0.0
      %645 = vmatpush1.xpose.msra.mxu0 0.0
      %646 = vmatprep.subr.mxu0 0.0
      %647 = vmatpush1.xpose.msra.mxu0 0.0
      %648 = vmatprep.subr.mxu0 0.0
      %649 = vmatpush1.xpose.msra.mxu0 0.0
      %650 = vmatprep.subr.mxu0 0.0
      %651 = vmatpush1.xpose.msra.mxu0 0.0
      %652 = vmatprep.subr.mxu0 0.0
      %653 = vmatpush1.xpose.msra.mxu0 0.0
      %654 = vmatprep.subr.mxu0 0.0
      %655 = vmatpush1.xpose.msra.mxu0 0.0
      %656 = vmatprep.subr.mxu0 0.0
      %657 = vmatpush1.xpose.msra.mxu0 0.0
      %658 = vmatprep.subr.mxu0 0.0
      %659 = vmatpush1.xpose.msra.mxu0 0.0
      %660 = vmatprep.subr.mxu0 0.0
      %661 = vmatpush1.xpose.msra.mxu0 0.0
      %662 = vmatprep.subr.mxu0 0.0
      %663 = vmatpush1.xpose.msra.mxu0 0.0
      %664 = vmatprep.subr.mxu0 0.0
      %665 = vmatpush1.xpose.msra.mxu0 0.0
      %666 = vmatprep.subr.mxu0 0.0
      %667 = vmatpush1.xpose.msra.mxu0 0.0
      %668 = vmatprep.subr.mxu0 0.0
      %669 = vmatpush1.xpose.msra.mxu0 0.0
      %670 = vmatprep.subr.mxu0 0.0
      %671 = vmatpush1.xpose.msra.mxu0 0.0
      %672 = vmatprep.subr.mxu0 0.0
      %673 = vmatpush1.xpose.msra.mxu0 0.0
      %674 = vmatprep.subr.mxu0 0.0
      %675 = vmatpush1.xpose.msra.mxu0 0.0
      %676 = vmatprep.subr.mxu0 0.0
      %677 = vmatpush1.xpose.msra.mxu0 0.0
      %678 = vmatprep.subr.mxu0 0.0
      %679 = vmatpush1.xpose.msra.mxu0 0.0
      %680 = vmatprep.subr.mxu0 0.0
      %681 = vmatpush1.xpose.msra.mxu0 0.0
      %682 = vmatprep.subr.mxu0 0.0
      %683 = vmatpush1.xpose.msra.mxu0 0.0
      %684 = vmatprep.subr.mxu0 0.0
      %685 = vmatpush1.xpose.msra.mxu0 0.0
      %686 = vmatprep.subr.mxu0 0.0
      %687 = vmatpush1.xpose.msra.mxu0 0.0
      %688 = vmatprep.subr.mxu0 0.0
      %689 = vmatpush1.xpose.msra.mxu0 0.0
      %690 = vmatprep.subr.mxu0 0.0
      %691 = vmatpush1.xpose.msra.mxu0 0.0
      %692 = vmatprep.subr.mxu0 0.0
      %693 = vmatpush1.xpose.msra.mxu0 0.0
      %694 = vmatprep.subr.mxu0 0.0
      %695 = vmatpush1.xpose.msra.mxu0 0.0
      %696 = vmatprep.subr.mxu0 0.0
      %697 = vmatpush1.xpose.msra.mxu0 0.0
      %698 = vmatprep.subr.mxu0 0.0
      %699 = vmatpush1.xpose.msra.mxu0 0.0
      %700 = vmatprep.subr.mxu0 0.0
      %701 = vmatpush1.xpose.msra.mxu0 0.0
      %702 = vmatprep.subr.mxu0 0.0
      %703 = vmatpush1.xpose.msra.mxu0 0.0
      %704 = vmatprep.mubr.f32.mxu0 0.0
      %705 = vmatmul.mubr.f32.gmra.mrb[0].mxu0 %v632
      %v706 = vpop.f32.mrb[0].mxu0
      %v707 = vadd.f32 0.0, %v706
      %v708 = vpop.f32.mrb[0].mxu0
      %709 = vdwg.mxu0
      %vm710 = vcmp.eq.s32.totalorder %v629, 0
      %v711 = vsel %vm710, -1e+09, %v707
      %vm712 = vcmask 130048
      %v713 = vsel %vm712, %v711, -inf
      %714 = vmax.xlane.f32.xlu0 %v713
      %v715 = vpop.xlane.xlu0 %714
      %v716 = vsub.f32 %v711, %v715
      %v717 = vmul.f32 %v716, 1.442695
      %v718 = vpow.pop %v717
      %v719 = vsel %vm712, %v718, 0.0
      %720 = vadd.xlane.f32.xlu0 %v719
      %v721 = vpop.xlane.xlu0 %720
      %v722 = vrcp.pop %v721
      %723 = vrot.lane.b32.xlu0 %v621, 96
      %v724 = vpop.permute.xlu0 %723
      %725 = vrot.lane.b32.xlu0 %v626, 96
      %v726 = vpop.permute.xlu0 %725
      %v730 = vsel %vm712, %v718, 0
      %732 = vmatprep.subr.mxu0 0.0
      %733 = vmatpush1.msra.mxu0 %v724
      %734 = vmatprep.subr.mxu0 0.0
      %735 = vmatpush1.msra.mxu0 %v726
      %736 = vmatprep.subr.mxu0 0.0
      %737 = vmatpush1.msra.mxu0 0.0
      %738 = vmatprep.subr.mxu0 0.0
      %739 = vmatpush1.msra.mxu0 0.0
      %740 = vmatprep.subr.mxu0 0.0
      %741 = vmatpush1.msra.mxu0 0.0
      %742 = vmatprep.subr.mxu0 0.0
      %743 = vmatpush1.msra.mxu0 0.0
      %744 = vmatprep.subr.mxu0 0.0
      %745 = vmatpush1.msra.mxu0 0.0
      %746 = vmatprep.subr.mxu0 0.0
      %747 = vmatpush1.msra.mxu0 0.0
      %748 = vmatprep.subr.mxu0 0.0
      %749 = vmatpush1.msra.mxu0 0.0
      %750 = vmatprep.subr.mxu0 0.0
      %751 = vmatpush1.msra.mxu0 0.0
      %752 = vmatprep.subr.mxu0 0.0
      %753 = vmatpush1.msra.mxu0 0.0
      %754 = vmatprep.subr.mxu0 0.0
      %755 = vmatpush1.msra.mxu0 0.0
      %756 = vmatprep.subr.mxu0 0.0
      %757 = vmatpush1.msra.mxu0 0.0
      %758 = vmatprep.subr.mxu0 0.0
      %759 = vmatpush1.msra.mxu0 0.0
      %760 = vmatprep.subr.mxu0 0.0
      %761 = vmatpush1.msra.mxu0 0.0
      %762 = vmatprep.subr.mxu0 0.0
      %763 = vmatpush1.msra.mxu0 0.0
      %764 = vmatprep.subr.mxu0 0.0
      %765 = vmatpush1.msra.mxu0 0.0
      %766 = vmatprep.subr.mxu0 0.0
      %767 = vmatpush1.msra.mxu0 0.0
      %768 = vmatprep.subr.mxu0 0.0
      %769 = vmatpush1.msra.mxu0 0.0
      %770 = vmatprep.subr.mxu0 0.0
      %771 = vmatpush1.msra.mxu0 0.0
      %772 = vmatprep.subr.mxu0 0.0
      %773 = vmatpush1.msra.mxu0 0.0
      %774 = vmatprep.subr.mxu0 0.0
      %775 = vmatpush1.msra.mxu0 0.0
      %776 = vmatprep.subr.mxu0 0.0
      %777 = vmatpush1.msra.mxu0 0.0
      %778 = vmatprep.subr.mxu0 0.0
      %779 = vmatpush1.msra.mxu0 0.0
      %780 = vmatprep.subr.mxu0 0.0
      %781 = vmatpush1.msra.mxu0 0.0
      %782 = vmatprep.subr.mxu0 0.0
      %783 = vmatpush1.msra.mxu0 0.0
      %784 = vmatprep.subr.mxu0 0.0
      %785 = vmatpush1.msra.mxu0 0.0
      %786 = vmatprep.subr.mxu0 0.0
      %787 = vmatpush1.msra.mxu0 0.0
      %788 = vmatprep.subr.mxu0 0.0
      %789 = vmatpush1.msra.mxu0 0.0
      %790 = vmatprep.subr.mxu0 0.0
      %791 = vmatpush1.msra.mxu0 0.0
      %792 = vmatprep.subr.mxu0 0.0
      %793 = vmatpush1.msra.mxu0 0.0
      %794 = vmatprep.subr.mxu0 0.0
      %795 = vmatpush1.msra.mxu0 0.0
      %796 = vmatprep.mubr.f32.mxu0 0.0
      %797 = vmatmul.mubr.f32.gmra.mrb[0].mxu0 %v730
      %v798 = vpop.f32.mrb[0].mxu0
      %v799 = vadd.f32 0.0, %v798
      %v800 = vpop.f32.mrb[0].mxu0
      %801 = vdwg.mxu0
      %v802 = vmul.f32 %v799, %v722
      %803 = vrot.lane.b32.xlu0 %v532, 120
      %v804 = vpop.permute.xlu0 %803
      %805 = vrot.lane.b32.xlu0 %v621, 120
      %v806 = vpop.permute.xlu0 %805
      %807 = vrot.lane.b32.xlu0 %v626, 120
      %v808 = vpop.permute.xlu0 %807
      %v809 = vsel %vm630, %v804, 0
      %v811 = vsel %vm630, %v806, 0
      %v813 = vsel %vm630, %v808, 0
      %815 = vmatprep.subr.mxu0 0.0
      %816 = vmatpush1.xpose.msra.mxu0 %v811
      %817 = vmatprep.subr.mxu0 0.0
      %818 = vmatpush1.xpose.msra.mxu0 %v813
      %819 = vmatprep.subr.mxu0 0.0
      %820 = vmatpush1.xpose.msra.mxu0 0.0
      %821 = vmatprep.subr.mxu0 0.0
      %822 = vmatpush1.xpose.msra.mxu0 0.0
      %823 = vmatprep.subr.mxu0 0.0
      %824 = vmatpush1.xpose.msra.mxu0 0.0
      %825 = vmatprep.subr.mxu0 0.0
      %826 = vmatpush1.xpose.msra.mxu0 0.0
      %827 = vmatprep.subr.mxu0 0.0
      %828 = vmatpush1.xpose.msra.mxu0 0.0
      %829 = vmatprep.subr.mxu0 0.0
      %830 = vmatpush1.xpose.msra.mxu0 0.0
      %831 = vmatprep.subr.mxu0 0.0
      %832 = vmatpush1.xpose.msra.mxu0 0.0
      %833 = vmatprep.subr.mxu0 0.0
      %834 = vmatpush1.xpose.msra.mxu0 0.0
      %835 = vmatprep.subr.mxu0 0.0
      %836 = vmatpush1.xpose.msra.mxu0 0.0
      %837 = vmatprep.subr.mxu0 0.0
      %838 = vmatpush1.xpose.msra.mxu0 0.0
      %839 = vmatprep.subr.mxu0 0.0
      %840 = vmatpush1.xpose.msra.mxu0 0.0
      %841 = vmatprep.subr.mxu0 0.0
      %842 = vmatpush1.xpose.msra.mxu0 0.0
      %843 = vmatprep.subr.mxu0 0.0
      %844 = vmatpush1.xpose.msra.mxu0 0.0
      %845 = vmatprep.subr.mxu0 0.0
      %846 = vmatpush1.xpose.msra.mxu0 0.0
      %847 = vmatprep.subr.mxu0 0.0
      %848 = vmatpush1.xpose.msra.mxu0 0.0
      %849 = vmatprep.subr.mxu0 0.0
      %850 = vmatpush1.xpose.msra.mxu0 0.0
      %851 = vmatprep.subr.mxu0 0.0
      %852 = vmatpush1.xpose.msra.mxu0 0.0
      %853 = vmatprep.subr.mxu0 0.0
      %854 = vmatpush1.xpose.msra.mxu0 0.0
      %855 = vmatprep.subr.mxu0 0.0
      %856 = vmatpush1.xpose.msra.mxu0 0.0
      %857 = vmatprep.subr.mxu0 0.0
      %858 = vmatpush1.xpose.msra.mxu0 0.0
      %859 = vmatprep.subr.mxu0 0.0
      %860 = vmatpush1.xpose.msra.mxu0 0.0
      %861 = vmatprep.subr.mxu0 0.0
      %862 = vmatpush1.xpose.msra.mxu0 0.0
      %863 = vmatprep.subr.mxu0 0.0
      %864 = vmatpush1.xpose.msra.mxu0 0.0
      %865 = vmatprep.subr.mxu0 0.0
      %866 = vmatpush1.xpose.msra.mxu0 0.0
      %867 = vmatprep.subr.mxu0 0.0
      %868 = vmatpush1.xpose.msra.mxu0 0.0
      %869 = vmatprep.subr.mxu0 0.0
      %870 = vmatpush1.xpose.msra.mxu0 0.0
      %871 = vmatprep.subr.mxu0 0.0
      %872 = vmatpush1.xpose.msra.mxu0 0.0
      %873 = vmatprep.subr.mxu0 0.0
      %874 = vmatpush1.xpose.msra.mxu0 0.0
      %875 = vmatprep.subr.mxu0 0.0
      %876 = vmatpush1.xpose.msra.mxu0 0.0
      %877 = vmatprep.subr.mxu0 0.0
      %878 = vmatpush1.xpose.msra.mxu0 0.0
      %879 = vmatprep.mubr.f32.mxu0 0.0
      %880 = vmatmul.mubr.f32.gmra.mrb[0].mxu0 %v809
      %v881 = vpop.f32.mrb[0].mxu0
      %v882 = vadd.f32 0.0, %v881
      %v883 = vpop.f32.mrb[0].mxu0
      %884 = vdwg.mxu0
      %v885 = vsel %vm710, -1e+09, %v882
      %v886 = vsel %vm712, %v885, -inf
      %887 = vmax.xlane.f32.xlu0 %v886
      %v888 = vpop.xlane.xlu0 %887
      %v889 = vsub.f32 %v885, %v888
      %v890 = vmul.f32 %v889, 1.442695
      %v891 = vpow.pop %v890
      %v892 = vsel %vm712, %v891, 0.0
      %893 = vadd.xlane.f32.xlu0 %v892
      %v894 = vpop.xlane.xlu0 %893
      %v895 = vrcp.pop %v894
      %896 = vrot.lane.b32.xlu0 %v621, 88
      %v897 = vpop.permute.xlu0 %896
      %898 = vrot.lane.b32.xlu0 %v626, 88
      %v899 = vpop.permute.xlu0 %898
      %v903 = vsel %vm712, %v891, 0
      %905 = vmatprep.subr.mxu0 0.0
      %906 = vmatpush1.msra.mxu0 %v897
      %907 = vmatprep.subr.mxu0 0.0
      %908 = vmatpush1.msra.mxu0 %v899
      %909 = vmatprep.subr.mxu0 0.0
      %910 = vmatpush1.msra.mxu0 0.0
      %911 = vmatprep.subr.mxu0 0.0
      %912 = vmatpush1.msra.mxu0 0.0
      %913 = vmatprep.subr.mxu0 0.0
      %914 = vmatpush1.msra.mxu0 0.0
      %915 = vmatprep.subr.mxu0 0.0
      %916 = vmatpush1.msra.mxu0 0.0
      %917 = vmatprep.subr.mxu0 0.0
      %918 = vmatpush1.msra.mxu0 0.0
      %919 = vmatprep.subr.mxu0 0.0
      %920 = vmatpush1.msra.mxu0 0.0
      %921 = vmatprep.subr.mxu0 0.0
      %922 = vmatpush1.msra.mxu0 0.0
      %923 = vmatprep.subr.mxu0 0.0
      %924 = vmatpush1.msra.mxu0 0.0
      %925 = vmatprep.subr.mxu0 0.0
      %926 = vmatpush1.msra.mxu0 0.0
      %927 = vmatprep.subr.mxu0 0.0
      %928 = vmatpush1.msra.mxu0 0.0
      %929 = vmatprep.subr.mxu0 0.0
      %930 = vmatpush1.msra.mxu0 0.0
      %931 = vmatprep.subr.mxu0 0.0
      %932 = vmatpush1.msra.mxu0 0.0
      %933 = vmatprep.subr.mxu0 0.0
      %934 = vmatpush1.msra.mxu0 0.0
      %935 = vmatprep.subr.mxu0 0.0
      %936 = vmatpush1.msra.mxu0 0.0
      %937 = vmatprep.subr.mxu0 0.0
      %938 = vmatpush1.msra.mxu0 0.0
      %939 = vmatprep.subr.mxu0 0.0
      %940 = vmatpush1.msra.mxu0 0.0
      %941 = vmatprep.subr.mxu0 0.0
      %942 = vmatpush1.msra.mxu0 0.0
      %943 = vmatprep.subr.mxu0 0.0
      %944 = vmatpush1.msra.mxu0 0.0
      %945 = vmatprep.subr.mxu0 0.0
      %946 = vmatpush1.msra.mxu0 0.0
      %947 = vmatprep.subr.mxu0 0.0
      %948 = vmatpush1.msra.mxu0 0.0
      %949 = vmatprep.subr.mxu0 0.0
      %950 = vmatpush1.msra.mxu0 0.0
      %951 = vmatprep.subr.mxu0 0.0
      %952 = vmatpush1.msra.mxu0 0.0
      %953 = vmatprep.subr.mxu0 0.0
      %954 = vmatpush1.msra.mxu0 0.0
      %955 = vmatprep.subr.mxu0 0.0
      %956 = vmatpush1.msra.mxu0 0.0
      %957 = vmatprep.subr.mxu0 0.0
      %958 = vmatpush1.msra.mxu0 0.0
      %959 = vmatprep.subr.mxu0 0.0
      %960 = vmatpush1.msra.mxu0 0.0
      %961 = vmatprep.subr.mxu0 0.0
      %962 = vmatpush1.msra.mxu0 0.0
      %963 = vmatprep.subr.mxu0 0.0
      %964 = vmatpush1.msra.mxu0 0.0
      %965 = vmatprep.subr.mxu0 0.0
      %966 = vmatpush1.msra.mxu0 0.0
      %967 = vmatprep.subr.mxu0 0.0
      %968 = vmatpush1.msra.mxu0 0.0
      %969 = vmatprep.mubr.f32.mxu0 0.0
      %970 = vmatmul.mubr.f32.gmra.mrb[0].mxu0 %v903
      %v971 = vpop.f32.mrb[0].mxu0
      %v972 = vadd.f32 0.0, %v971
      %v973 = vpop.f32.mrb[0].mxu0
      %974 = vdwg.mxu0
      %v975 = vmul.f32 %v972, %v895
      %976 = vrot.lane.b32.xlu0 %v532, 112
      %v977 = vpop.permute.xlu0 %976
      %978 = vrot.lane.b32.xlu0 %v621, 112
      %v979 = vpop.permute.xlu0 %978
      %980 = vrot.lane.b32.xlu0 %v626, 112
      %v981 = vpop.permute.xlu0 %980
      %v982 = vsel %vm630, %v977, 0
      %v984 = vsel %vm630, %v979, 0
      %v986 = vsel %vm630, %v981, 0
      %988 = vmatprep.subr.mxu0 0.0
      %989 = vmatpush1.xpose.msra.mxu0 %v984
      %990 = vmatprep.subr.mxu0 0.0
      %991 = vmatpush1.xpose.msra.mxu0 %v986
      %992 = vmatprep.subr.mxu0 0.0
      %993 = vmatpush1.xpose.msra.mxu0 0.0
      %994 = vmatprep.subr.mxu0 0.0
      %995 = vmatpush1.xpose.msra.mxu0 0.0
      %996 = vmatprep.subr.mxu0 0.0
      %997 = vmatpush1.xpose.msra.mxu0 0.0
      %998 = vmatprep.subr.mxu0 0.0
      %999 = vmatpush1.xpose.msra.mxu0 0.0
      %1000 = vmatprep.subr.mxu0 0.0
      %1001 = vmatpush1.xpose.msra.mxu0 0.0
      %1002 = vmatprep.subr.mxu0 0.0
      %1003 = vmatpush1.xpose.msra.mxu0 0.0
      %1004 = vmatprep.subr.mxu0 0.0
      %1005 = vmatpush1.xpose.msra.mxu0 0.0
      %1006 = vmatprep.subr.mxu0 0.0
      %1007 = vmatpush1.xpose.msra.mxu0 0.0
      %1008 = vmatprep.subr.mxu0 0.0
      %1009 = vmatpush1.xpose.msra.mxu0 0.0
      %1010 = vmatprep.subr.mxu0 0.0
      %1011 = vmatpush1.xpose.msra.mxu0 0.0
      %1012 = vmatprep.subr.mxu0 0.0
      %1013 = vmatpush1.xpose.msra.mxu0 0.0
      %1014 = vmatprep.subr.mxu0 0.0
      %1015 = vmatpush1.xpose.msra.mxu0 0.0
      %1016 = vmatprep.subr.mxu0 0.0
      %1017 = vmatpush1.xpose.msra.mxu0 0.0
      %1018 = vmatprep.subr.mxu0 0.0
      %1019 = vmatpush1.xpose.msra.mxu0 0.0
      %1020 = vmatprep.subr.mxu0 0.0
      %1021 = vmatpush1.xpose.msra.mxu0 0.0
      %1022 = vmatprep.subr.mxu0 0.0
      %1023 = vmatpush1.xpose.msra.mxu0 0.0
      %1024 = vmatprep.subr.mxu0 0.0
      %1025 = vmatpush1.xpose.msra.mxu0 0.0
      %1026 = vmatprep.subr.mxu0 0.0
      %1027 = vmatpush1.xpose.msra.mxu0 0.0
      %1028 = vmatprep.subr.mxu0 0.0
      %1029 = vmatpush1.xpose.msra.mxu0 0.0
      %1030 = vmatprep.subr.mxu0 0.0
      %1031 = vmatpush1.xpose.msra.mxu0 0.0
      %1032 = vmatprep.subr.mxu0 0.0
      %1033 = vmatpush1.xpose.msra.mxu0 0.0
      %1034 = vmatprep.subr.mxu0 0.0
      %1035 = vmatpush1.xpose.msra.mxu0 0.0
      %1036 = vmatprep.subr.mxu0 0.0
      %1037 = vmatpush1.xpose.msra.mxu0 0.0
      %1038 = vmatprep.subr.mxu0 0.0
      %1039 = vmatpush1.xpose.msra.mxu0 0.0
      %1040 = vmatprep.subr.mxu0 0.0
      %1041 = vmatpush1.xpose.msra.mxu0 0.0
      %1042 = vmatprep.subr.mxu0 0.0
      %1043 = vmatpush1.xpose.msra.mxu0 0.0
      %1044 = vmatprep.subr.mxu0 0.0
      %1045 = vmatpush1.xpose.msra.mxu0 0.0
      %1046 = vmatprep.subr.mxu0 0.0
      %1047 = vmatpush1.xpose.msra.mxu0 0.0
      %1048 = vmatprep.subr.mxu0 0.0
      %1049 = vmatpush1.xpose.msra.mxu0 0.0
      %1050 = vmatprep.subr.mxu0 0.0
      %1051 = vmatpush1.xpose.msra.mxu0 0.0
      %1052 = vmatprep.mubr.f32.mxu0 0.0
      %1053 = vmatmul.mubr.f32.gmra.mrb[0].mxu0 %v982
      %v1054 = vpop.f32.mrb[0].mxu0
      %v1055 = vadd.f32 0.0, %v1054
      %v1056 = vpop.f32.mrb[0].mxu0
      %1057 = vdwg.mxu0
      %v1058 = vsel %vm710, -1e+09, %v1055
      %v1059 = vsel %vm712, %v1058, -inf
      %1060 = vmax.xlane.f32.xlu0 %v1059
      %v1061 = vpop.xlane.xlu0 %1060
      %v1062 = vsub.f32 %v1058, %v1061
      %v1063 = vmul.f32 %v1062, 1.442695
      %v1064 = vpow.pop %v1063
      %v1065 = vsel %vm712, %v1064, 0.0
      %1066 = vadd.xlane.f32.xlu0 %v1065
      %v1067 = vpop.xlane.xlu0 %1066
      %v1068 = vrcp.pop %v1067
      %1069 = vrot.lane.b32.xlu0 %v621, 80
      %v1070 = vpop.permute.xlu0 %1069
      %1071 = vrot.lane.b32.xlu0 %v626, 80
      %v1072 = vpop.permute.xlu0 %1071
      %v1076 = vsel %vm712, %v1064, 0
      %1078 = vmatprep.subr.mxu0 0.0
      %1079 = vmatpush1.msra.mxu0 %v1070
      %1080 = vmatprep.subr.mxu0 0.0
      %1081 = vmatpush1.msra.mxu0 %v1072
      %1082 = vmatprep.subr.mxu0 0.0
      %1083 = vmatpush1.msra.mxu0 0.0
      %1084 = vmatprep.subr.mxu0 0.0
      %1085 = vmatpush1.msra.mxu0 0.0
      %1086 = vmatprep.subr.mxu0 0.0
      %1087 = vmatpush1.msra.mxu0 0.0
      %1088 = vmatprep.subr.mxu0 0.0
      %1089 = vmatpush1.msra.mxu0 0.0
      %1090 = vmatprep.subr.mxu0 0.0
      %1091 = vmatpush1.msra.mxu0 0.0
      %1092 = vmatprep.subr.mxu0 0.0
      %1093 = vmatpush1.msra.mxu0 0.0
      %1094 = vmatprep.subr.mxu0 0.0
      %1095 = vmatpush1.msra.mxu0 0.0
      %1096 = vmatprep.subr.mxu0 0.0
      %1097 = vmatpush1.msra.mxu0 0.0
      %1098 = vmatprep.subr.mxu0 0.0
      %1099 = vmatpush1.msra.mxu0 0.0
      %1100 = vmatprep.subr.mxu0 0.0
      %1101 = vmatpush1.msra.mxu0 0.0
      %1102 = vmatprep.subr.mxu0 0.0
      %1103 = vmatpush1.msra.mxu0 0.0
      %1104 = vmatprep.subr.mxu0 0.0
      %1105 = vmatpush1.msra.mxu0 0.0
      %1106 = vmatprep.subr.mxu0 0.0
      %1107 = vmatpush1.msra.mxu0 0.0
      %1108 = vmatprep.subr.mxu0 0.0
      %1109 = vmatpush1.msra.mxu0 0.0
      %1110 = vmatprep.subr.mxu0 0.0
      %1111 = vmatpush1.msra.mxu0 0.0
      %1112 = vmatprep.subr.mxu0 0.0
      %1113 = vmatpush1.msra.mxu0 0.0
      %1114 = vmatprep.subr.mxu0 0.0
      %1115 = vmatpush1.msra.mxu0 0.0
      %1116 = vmatprep.subr.mxu0 0.0
      %1117 = vmatpush1.msra.mxu0 0.0
      %1118 = vmatprep.subr.mxu0 0.0
      %1119 = vmatpush1.msra.mxu0 0.0
      %1120 = vmatprep.subr.mxu0 0.0
      %1121 = vmatpush1.msra.mxu0 0.0
      %1122 = vmatprep.subr.mxu0 0.0
      %1123 = vmatpush1.msra.mxu0 0.0
      %1124 = vmatprep.subr.mxu0 0.0
      %1125 = vmatpush1.msra.mxu0 0.0
      %1126 = vmatprep.subr.mxu0 0.0
      %1127 = vmatpush1.msra.mxu0 0.0
      %1128 = vmatprep.subr.mxu0 0.0
      %1129 = vmatpush1.msra.mxu0 0.0
      %1130 = vmatprep.subr.mxu0 0.0
      %1131 = vmatpush1.msra.mxu0 0.0
      %1132 = vmatprep.subr.mxu0 0.0
      %1133 = vmatpush1.msra.mxu0 0.0
      %1134 = vmatprep.subr.mxu0 0.0
      %1135 = vmatpush1.msra.mxu0 0.0
      %1136 = vmatprep.subr.mxu0 0.0
      %1137 = vmatpush1.msra.mxu0 0.0
      %1138 = vmatprep.subr.mxu0 0.0
      %1139 = vmatpush1.msra.mxu0 0.0
      %1140 = vmatprep.subr.mxu0 0.0
      %1141 = vmatpush1.msra.mxu0 0.0
      %1142 = vmatprep.mubr.f32.mxu0 0.0
      %1143 = vmatmul.mubr.f32.gmra.mrb[0].mxu0 %v1076
      %v1144 = vpop.f32.mrb[0].mxu0
      %v1145 = vadd.f32 0.0, %v1144
      %v1146 = vpop.f32.mrb[0].mxu0
      %1147 = vdwg.mxu0
      %v1148 = vmul.f32 %v1145, %v1068
      %1149 = vrot.lane.b32.xlu0 %v532, 104
      %v1150 = vpop.permute.xlu0 %1149
      %1151 = vrot.lane.b32.xlu0 %v621, 104
      %v1152 = vpop.permute.xlu0 %1151
      %1153 = vrot.lane.b32.xlu0 %v626, 104
      %v1154 = vpop.permute.xlu0 %1153
      %v1155 = vsel %vm630, %v1150, 0
      %v1157 = vsel %vm630, %v1152, 0
      %v1159 = vsel %vm630, %v1154, 0
      %1161 = vmatprep.subr.mxu0 0.0
      %1162 = vmatpush1.xpose.msra.mxu0 %v1157
      %1163 = vmatprep.subr.mxu0 0.0
      %1164 = vmatpush1.xpose.msra.mxu0 %v1159
      %1165 = vmatprep.subr.mxu0 0.0
      %1166 = vmatpush1.xpose.msra.mxu0 0.0
      %1167 = vmatprep.subr.mxu0 0.0
      %1168 = vmatpush1.xpose.msra.mxu0 0.0
      %1169 = vmatprep.subr.mxu0 0.0
      %1170 = vmatpush1.xpose.msra.mxu0 0.0
      %1171 = vmatprep.subr.mxu0 0.0
      %1172 = vmatpush1.xpose.msra.mxu0 0.0
      %1173 = vmatprep.subr.mxu0 0.0
      %1174 = vmatpush1.xpose.msra.mxu0 0.0
      %1175 = vmatprep.subr.mxu0 0.0
      %1176 = vmatpush1.xpose.msra.mxu0 0.0
      %1177 = vmatprep.subr.mxu0 0.0
      %1178 = vmatpush1.xpose.msra.mxu0 0.0
      %1179 = vmatprep.subr.mxu0 0.0
      %1180 = vmatpush1.xpose.msra.mxu0 0.0
      %1181 = vmatprep.subr.mxu0 0.0
      %1182 = vmatpush1.xpose.msra.mxu0 0.0
      %1183 = vmatprep.subr.mxu0 0.0
      %1184 = vmatpush1.xpose.msra.mxu0 0.0
      %1185 = vmatprep.subr.mxu0 0.0
      %1186 = vmatpush1.xpose.msra.mxu0 0.0
      %1187 = vmatprep.subr.mxu0 0.0
      %1188 = vmatpush1.xpose.msra.mxu0 0.0
      %1189 = vmatprep.subr.mxu0 0.0
      %1190 = vmatpush1.xpose.msra.mxu0 0.0
      %1191 = vmatprep.subr.mxu0 0.0
      %1192 = vmatpush1.xpose.msra.mxu0 0.0
      %1193 = vmatprep.subr.mxu0 0.0
      %1194 = vmatpush1.xpose.msra.mxu0 0.0
      %1195 = vmatprep.subr.mxu0 0.0
      %1196 = vmatpush1.xpose.msra.mxu0 0.0
      %1197 = vmatprep.subr.mxu0 0.0
      %1198 = vmatpush1.xpose.msra.mxu0 0.0
      %1199 = vmatprep.subr.mxu0 0.0
      %1200 = vmatpush1.xpose.msra.mxu0 0.0
      %1201 = vmatprep.subr.mxu0 0.0
      %1202 = vmatpush1.xpose.msra.mxu0 0.0
      %1203 = vmatprep.subr.mxu0 0.0
      %1204 = vmatpush1.xpose.msra.mxu0 0.0
      %1205 = vmatprep.subr.mxu0 0.0
      %1206 = vmatpush1.xpose.msra.mxu0 0.0
      %1207 = vmatprep.subr.mxu0 0.0
      %1208 = vmatpush1.xpose.msra.mxu0 0.0
      %1209 = vmatprep.subr.mxu0 0.0
      %1210 = vmatpush1.xpose.msra.mxu0 0.0
      %1211 = vmatprep.subr.mxu0 0.0
      %1212 = vmatpush1.xpose.msra.mxu0 0.0
      %1213 = vmatprep.subr.mxu0 0.0
      %1214 = vmatpush1.xpose.msra.mxu0 0.0
      %1215 = vmatprep.subr.mxu0 0.0
      %1216 = vmatpush1.xpose.msra.mxu0 0.0
      %1217 = vmatprep.subr.mxu0 0.0
      %1218 = vmatpush1.xpose.msra.mxu0 0.0
      %1219 = vmatprep.subr.mxu0 0.0
      %1220 = vmatpush1.xpose.msra.mxu0 0.0
      %1221 = vmatprep.subr.mxu0 0.0
      %1222 = vmatpush1.xpose.msra.mxu0 0.0
      %1223 = vmatprep.subr.mxu0 0.0
      %1224 = vmatpush1.xpose.msra.mxu0 0.0
      %1225 = vmatprep.mubr.f32.mxu0 0.0
      %1226 = vmatmul.mubr.f32.gmra.mrb[0].mxu0 %v1155
      %v1227 = vpop.f32.mrb[0].mxu0
      %v1228 = vadd.f32 0.0, %v1227
      %v1229 = vpop.f32.mrb[0].mxu0
      %1230 = vdwg.mxu0
      %v1231 = vsel %vm710, -1e+09, %v1228
      %v1232 = vsel %vm712, %v1231, -inf
      %1233 = vmax.xlane.f32.xlu0 %v1232
      %v1234 = vpop.xlane.xlu0 %1233
      %v1235 = vsub.f32 %v1231, %v1234
      %v1236 = vmul.f32 %v1235, 1.442695
      %v1237 = vpow.pop %v1236
      %v1238 = vsel %vm712, %v1237, 0.0
      %1239 = vadd.xlane.f32.xlu0 %v1238
      %v1240 = vpop.xlane.xlu0 %1239
      %v1241 = vrcp.pop %v1240
      %1242 = vrot.lane.b32.xlu0 %v621, 72
      %v1243 = vpop.permute.xlu0 %1242
      %1244 = vrot.lane.b32.xlu0 %v626, 72
      %v1245 = vpop.permute.xlu0 %1244
      %v1249 = vsel %vm712, %v1237, 0
      %1251 = vmatprep.subr.mxu0 0.0
      %1252 = vmatpush1.msra.mxu0 %v1243
      %1253 = vmatprep.subr.mxu0 0.0
      %1254 = vmatpush1.msra.mxu0 %v1245
      %1255 = vmatprep.subr.mxu0 0.0
      %1256 = vmatpush1.msra.mxu0 0.0
      %1257 = vmatprep.subr.mxu0 0.0
      %1258 = vmatpush1.msra.mxu0 0.0
      %1259 = vmatprep.subr.mxu0 0.0
      %1260 = vmatpush1.msra.mxu0 0.0
      %1261 = vmatprep.subr.mxu0 0.0
      %1262 = vmatpush1.msra.mxu0 0.0
      %1263 = vmatprep.subr.mxu0 0.0
      %1264 = vmatpush1.msra.mxu0 0.0
      %1265 = vmatprep.subr.mxu0 0.0
      %1266 = vmatpush1.msra.mxu0 0.0
      %1267 = vmatprep.subr.mxu0 0.0
      %1268 = vmatpush1.msra.mxu0 0.0
      %1269 = vmatprep.subr.mxu0 0.0
      %1270 = vmatpush1.msra.mxu0 0.0
      %1271 = vmatprep.subr.mxu0 0.0
      %1272 = vmatpush1.msra.mxu0 0.0
      %1273 = vmatprep.subr.mxu0 0.0
      %1274 = vmatpush1.msra.mxu0 0.0
      %1275 = vmatprep.subr.mxu0 0.0
      %1276 = vmatpush1.msra.mxu0 0.0
      %1277 = vmatprep.subr.mxu0 0.0
      %1278 = vmatpush1.msra.mxu0 0.0
      %1279 = vmatprep.subr.mxu0 0.0
      %1280 = vmatpush1.msra.mxu0 0.0
      %1281 = vmatprep.subr.mxu0 0.0
      %1282 = vmatpush1.msra.mxu0 0.0
      %1283 = vmatprep.subr.mxu0 0.0
      %1284 = vmatpush1.msra.mxu0 0.0
      %1285 = vmatprep.subr.mxu0 0.0
      %1286 = vmatpush1.msra.mxu0 0.0
      %1287 = vmatprep.subr.mxu0 0.0
      %1288 = vmatpush1.msra.mxu0 0.0
      %1289 = vmatprep.subr.mxu0 0.0
      %1290 = vmatpush1.msra.mxu0 0.0
      %1291 = vmatprep.subr.mxu0 0.0
      %1292 = vmatpush1.msra.mxu0 0.0
      %1293 = vmatprep.subr.mxu0 0.0
      %1294 = vmatpush1.msra.mxu0 0.0
      %1295 = vmatprep.subr.mxu0 0.0
      %1296 = vmatpush1.msra.mxu0 0.0
      %1297 = vmatprep.subr.mxu0 0.0
      %1298 = vmatpush1.msra.mxu0 0.0
      %1299 = vmatprep.subr.mxu0 0.0
      %1300 = vmatpush1.msra.mxu0 0.0
      %1301 = vmatprep.subr.mxu0 0.0
      %1302 = vmatpush1.msra.mxu0 0.0
      %1303 = vmatprep.subr.mxu0 0.0
      %1304 = vmatpush1.msra.mxu0 0.0
      %1305 = vmatprep.subr.mxu0 0.0
      %1306 = vmatpush1.msra.mxu0 0.0
      %1307 = vmatprep.subr.mxu0 0.0
      %1308 = vmatpush1.msra.mxu0 0.0
      %1309 = vmatprep.subr.mxu0 0.0
      %1310 = vmatpush1.msra.mxu0 0.0
      %1311 = vmatprep.subr.mxu0 0.0
      %1312 = vmatpush1.msra.mxu0 0.0
      %1313 = vmatprep.subr.mxu0 0.0
      %1314 = vmatpush1.msra.mxu0 0.0
      %1315 = vmatprep.mubr.f32.mxu0 0.0
      %1316 = vmatmul.mubr.f32.gmra.mrb[0].mxu0 %v1249
      %v1317 = vpop.f32.mrb[0].mxu0
      %v1318 = vadd.f32 0.0, %v1317
      %v1319 = vpop.f32.mrb[0].mxu0
      %1320 = vdwg.mxu0
      %v1321 = vmul.f32 %v1318, %v1241
      %1323 = vrot.lane.b32.xlu0 %v975, 8
      %v1324 = vpop.permute.xlu0 %1323
      %1327 = vrot.lane.b32.xlu0 %v1148, 16
      %v1328 = vpop.permute.xlu0 %1327
      %1331 = vrot.lane.b32.xlu0 %v1321, 24
      %v1332 = vpop.permute.xlu0 %1331
      %v1334 = vsel %vm630, %v802, %v1324
      %v1335 = vsel %vm712, %v1334, %v1328
      %vm1336 = vcmask 195584
      %v1337 = vsel %vm1336, %v1335, %v1332
      %v1338 = vld [vmem:[%s9] sm:$0xff]
      %v1339 = vld [vmem:[%s9 + $0x8] sm:$0xff]
      %v1340 = vld [vmem:[%s9 + $0x10] sm:$0xff]
      %v1341 = vld [vmem:[%s9 + $0x18] sm:$0xff]
      %v1343 = vsel %vm422, %v1337, 0
      %1345 = vmatprep.subr.mxu0 0.0
      %1346 = vmatpush1.msra.mxu0 %v1338
      %1347 = vmatprep.subr.mxu0 0.0
      %1348 = vmatpush1.msra.mxu0 %v1339
      %1349 = vmatprep.subr.mxu0 0.0
      %1350 = vmatpush1.msra.mxu0 %v1340
      %1351 = vmatprep.subr.mxu0 0.0
      %1352 = vmatpush1.msra.mxu0 %v1341
      %1353 = vmatprep.subr.mxu0 0.0
      %1354 = vmatpush1.msra.mxu0 0.0
      %1355 = vmatprep.subr.mxu0 0.0
      %1356 = vmatpush1.msra.mxu0 0.0
      %1357 = vmatprep.subr.mxu0 0.0
      %1358 = vmatpush1.msra.mxu0 0.0
      %1359 = vmatprep.subr.mxu0 0.0
      %1360 = vmatpush1.msra.mxu0 0.0
      %1361 = vmatprep.subr.mxu0 0.0
      %1362 = vmatpush1.msra.mxu0 0.0
      %1363 = vmatprep.subr.mxu0 0.0
      %1364 = vmatpush1.msra.mxu0 0.0
      %1365 = vmatprep.subr.mxu0 0.0
      %1366 = vmatpush1.msra.mxu0 0.0
      %1367 = vmatprep.subr.mxu0 0.0
      %1368 = vmatpush1.msra.mxu0 0.0
      %1369 = vmatprep.subr.mxu0 0.0
      %1370 = vmatpush1.msra.mxu0 0.0
      %1371 = vmatprep.subr.mxu0 0.0
      %1372 = vmatpush1.msra.mxu0 0.0
      %1373 = vmatprep.subr.mxu0 0.0
      %1374 = vmatpush1.msra.mxu0 0.0
      %1375 = vmatprep.subr.mxu0 0.0
      %1376 = vmatpush1.msra.mxu0 0.0
      %1377 = vmatprep.subr.mxu0 0.0
      %1378 = vmatpush1.msra.mxu0 0.0
      %1379 = vmatprep.subr.mxu0 0.0
      %1380 = vmatpush1.msra.mxu0 0.0
      %1381 = vmatprep.subr.mxu0 0.0
      %1382 = vmatpush1.msra.mxu0 0.0
      %1383 = vmatprep.subr.mxu0 0.0
      %1384 = vmatpush1.msra.mxu0 0.0
      %1385 = vmatprep.subr.mxu0 0.0
      %1386 = vmatpush1.msra.mxu0 0.0
      %1387 = vmatprep.subr.mxu0 0.0
      %1388 = vmatpush1.msra.mxu0 0.0
      %1389 = vmatprep.subr.mxu0 0.0
      %1390 = vmatpush1.msra.mxu0 0.0
      %1391 = vmatprep.subr.mxu0 0.0
      %1392 = vmatpush1.msra.mxu0 0.0
      %1393 = vmatprep.subr.mxu0 0.0
      %1394 = vmatpush1.msra.mxu0 0.0
      %1395 = vmatprep.subr.mxu0 0.0
      %1396 = vmatpush1.msra.mxu0 0.0
      %1397 = vmatprep.subr.mxu0 0.0
      %1398 = vmatpush1.msra.mxu0 0.0
      %1399 = vmatprep.subr.mxu0 0.0
      %1400 = vmatpush1.msra.mxu0 0.0
      %1401 = vmatprep.subr.mxu0 0.0
      %1402 = vmatpush1.msra.mxu0 0.0
      %1403 = vmatprep.subr.mxu0 0.0
      %1404 = vmatpush1.msra.mxu0 0.0
      %1405 = vmatprep.subr.mxu0 0.0
      %1406 = vmatpush1.msra.mxu0 0.0
      %1407 = vmatprep.subr.mxu0 0.0
      %1408 = vmatpush1.msra.mxu0 0.0
      %1409 = vmatprep.mubr.f32.mxu0 0.0
      %1410 = vmatmul.mubr.f32.gmra.mrb[0].mxu0 %v1343
      %v1411 = vpop.f32.mrb[0].mxu0
      %v1412 = vadd.f32 0.0, %v1411
      %v1413 = vpop.f32.mrb[0].mxu0
      %1414 = vdwg.mxu0
      %v1415 = vadd.f32 %v419, %v1412
      %v1416 = vld [vmem:[%s10] sm:$0x1]
      %v1418 = vlaneseq
      %v1419 = vshrl.u32 %v1418, 7
      %v1420 = vsub.s32 0, %v1419
      %v1421 = vrot.slane %v1416, %v1420
      %v1423 = vadd.f32 %v1415, %v1421
      %1424 = vst.msk [vmem:[%s418] sm:$0xff] %vm422, %v1423
      %p1425 = scmp.lt.s32.totalorder %s22, 1
      %s1426 = scalar_select %p1425, %s22, 1
      %s1427 = smul.addr %s1426, 8
      %s1428 = scalar_lea.vmem %s11, %s1427
      // Predicated region
      $region65: #{decoder_block_forward.4} parent=63 // pred_check
        %p1429 = pneg %p286
      $region66: #{decoder_block_forward.4} parent=63 // pred_check_branch
        %1431 = sbr.rel (%p1429) target = $region68
      $region67: #{decoder_block_forward.4} parent=63 // pred_region
        _
      $region68: #{decoder_block_forward.4} parent=63 // pred_fallthru
        _
    $region64: #{decoder_block_forward.4} parent=5 // pred_fallthru
      _
    %p1432 = scmp.le.s32.totalorder 2, %s17
    // Predicated region
    $region69: #{decoder_block_forward.4} parent=5 // pred_check
      %p1433 = pneg %p1432
    $region70: #{decoder_block_forward.4} parent=5 // pred_check_branch
      %1435 = sbr.rel (%p1433) target = $region72
    $region71: #{decoder_block_forward.4} parent=5 // pred_region
      %s1436 = ssub.s32 %s17, 2
      // Predicated region
      $region73: #{decoder_block_forward.4} parent=71 // pred_check
        %p1437 = pneg %p292
      $region74: #{decoder_block_forward.4} parent=71 // pred_check_branch
        %1439 = sbr.rel (%p1437) target = $region76
      $region75: #{decoder_block_forward.4} parent=71 // pred_region
        %p1440 = scmp.lt.s32.totalorder %s23, 1
        %s1441 = scalar_select %p1440, %s23, 1
        %s1442 = smul.addr %s1441, 8
        %s1443 = scalar_lea.vmem %s11, %s1442
      $region76: #{decoder_block_forward.4} parent=71 // pred_fallthru
        _
    $region72: #{decoder_block_forward.4} parent=5 // pred_fallthru
      _
  $region6: #{decoder_block_forward.4} parent=0 // loop_footer
    %s21 = sadd.s32 1, %s17
  $region7: #{decoder_block_forward.4} parent=0 // loop_footer_branch
    %16 = sbr.rel target = $region3
  $region8: #{decoder_block_forward.4} parent=0 // loop_exit
    _

// kernel: decoder_block_forward.3
$region0: #{decoder_block_forward.3}
  #allocation0 [shape = 'u32[]', space=smem, size = 0x4, offset = 0x4, fixed_abs, tag = 'smem constant byte address 0x4 - core index']
  #allocation1 [shape = 'u32[144,128]{1,0:T(1,128)}', space=vmem, size = 0x12000, scoped, tag = 'internal scratch']
  %s0 = inlined_call_operand.vmem [shape: f32[2,8,32], index: 0, kind: input, shape index: {}, may-alias: {0,1}]
  %s1 = inlined_call_operand.vmem [shape: f32[2,8,32], index: 1, kind: input, shape index: {}, may-alias: {0,1}]
  %s2 = inlined_call_operand.vmem [shape: s32[2,8,8], index: 2, kind: input, shape index: {}]
  %s3 = inlined_call_operand.vmem [shape: f32[1,32], index: 3, kind: input, shape index: {}]
  %s4 = inlined_call_operand.vmem [shape: f32[1,32], index: 4, kind: input, shape index: {}]
  %s5 = inlined_call_operand.vmem [shape: f32[32,32], index: 5, kind: input, shape index: {}]
  %s6 = inlined_call_operand.vmem [shape: f32[1,32], index: 6, kind: input, shape index: {}]
  %s7 = inlined_call_operand.vmem [shape: f32[32,64], index: 7, kind: input, shape index: {}]
  %s8 = inlined_call_operand.vmem [shape: f32[1,64], index: 8, kind: input, shape index: {}]
  %s9 = inlined_call_operand.vmem [shape: f32[32,32], index: 9, kind: input, shape index: {}]
  %s10 = inlined_call_operand.vmem [shape: f32[1,32], index: 10, kind: input, shape index: {}]
  %s11 = inlined_call_operand.vmem [shape: f32[2,8,32], index: 11, kind: output, shape index: {}]
  %s12 = sld [smem:[#allocation0]]
  $region77: #{decoder_block_forward.3} parent=0
    _
  %s14 = ssub.s32 1, %s12
  %s15 = scalar_select 0, %s14, %s12
  loop: start=0, step=1, limit=4
  $region2: #{decoder_block_forward.3} parent=0 // loop_pre_header
    _
  $region3: #{decoder_block_forward.3} parent=0 // loop_header
    %s17 = sphi 0, %s21
    %p18 = scmp.ge.s32.totalorder %s17, 4
    %s27 = sphi 0, %s29
    %s30 = sphi 0, %s27
    %s31 = sphi 0, %s30
    %s47 = sphi 0, %s31
    %s53 = sphi 0, %s55
    %s56 = sphi 0, %s53
    %s57 = sphi 0, %s56
    %s73 = sphi 0, %s57
    %s79 = sphi 0, %s81
    %s82 = sphi 0, %s79
    %s83 = sphi 0, %s82
    %s99 = sphi 0, %s83
    %s103 = sphi 0, %s103
    %s105 = sphi 0, %s103
    %s106 = sphi 0, %s105
    %s120 = sphi 0, %s106
    %s124 = sphi 0, %s124
    %s126 = sphi 0, %s124
    %s127 = sphi 0, %s126
    %s141 = sphi 0, %s127
    %s145 = sphi 0, %s145
    %s147 = sphi 0, %s145
    %s148 = sphi 0, %s147
    %s162 = sphi 0, %s148
    %s166 = sphi 0, %s166
    %s168 = sphi 0, %s166
    %s169 = sphi 0, %s168
    %s183 = sphi 0, %s169
    %s187 = sphi 0, %s187
    %s189 = sphi 0, %s187
    %s190 = sphi 0, %s189
    %s204 = sphi 0, %s190
    %s208 = sphi 0, %s208
    %s210 = sphi 0, %s208
    %s211 = sphi 0, %s210
    %s225 = sphi 0, %s211
    %s229 = sphi 0, %s229
    %s231 = sphi 0, %s229
    %s232 = sphi 0, %s231
    %s246 = sphi 0, %s232
    %s250 = sphi 0, %s250
    %s252 = sphi 0, %s250
    %s253 = sphi 0, %s252
    %s267 = sphi 0, %s253
    %s273 = sphi 0, %s275
    %s276 = sphi 0, %s273
    %s277 = sphi 0, %s276
    %s293 = sphi 0, %s277
  $region4: #{decoder_block_forward.3} parent=0 // loop_header_branch
    %20 = sbr.rel (%p18) target = $region8
  $region5: #{decoder_block_forward.3} parent=0 // loop_body
    %s22 = ssub.s32 %s17, 1
    %s23 = ssub.s32 %s17, 2
    %s24 = sadd.s32 %s17, 1
    %s25 = ssub.s32 %s17, %s24
    %p26 = scmp.eq.s32.totalorder %s25, 0
    %s28 = sadd.s32 %s27, 1
    %s29 = scalar_select %p26, %s27, %s28
    %p32 = pneg %p26
    %p33 = scmp.eq.s32.totalorder %s17, 1
    %p34 = por %p32, %p33
    %p35 = scmp.ne.s32.totalorder %s27, %s30
    %p36 = scmp.eq.s32.totalorder %s17, 0
    %p37 = por %p35, %p36
    %p38 = scmp.ne.s32.totalorder %s27, %s30
    %p39 = scmp.eq.s32.totalorder %s22, 1
    %p40 = por %p38, %p39
    %p41 = scmp.ne.s32.totalorder %s30, %s31
    %p42 = scmp.eq.s32.totalorder %s22, 0
    %p43 = por %p41, %p42
    %p44 = scmp.ne.s32.totalorder %s30, %s31
    %p45 = scmp.eq.s32.totalorder %s23, 1
    %p46 = por %p44, %p45
    %p48 = scmp.ne.s32.totalorder %s31, %s47
    %p49 = scmp.eq.s32.totalorder %s23, 0
    %p50 = por %p48, %p49
    %s51 = ssub.s32 %s17, %s24
    %p52 = scmp.eq.s32.totalorder %s51, 0
    %s54 = sadd.s32 %s53, 1
    %s55 = scalar_select %p52, %s53, %s54
    %p58 = pneg %p52
    %p59 = scmp.eq.s32.totalorder %s17, 1
    %p60 = por %p58, %p59
    %p61 = scmp.ne.s32.totalorder %s53, %s56
    %p62 = scmp.eq.s32.totalorder %s17, 0
    %p63 = por %p61, %p62
    %p64 = scmp.ne.s32.totalorder %s53, %s56
    %p65 = scmp.eq.s32.totalorder %s22, 1
    %p66 = por %p64, %p65
    %p67 = scmp.ne.s32.totalorder %s56, %s57
    %p68 = scmp.eq.s32.totalorder %s22, 0
    %p69 = por %p67, %p68
    %p70 = scmp.ne.s32.totalorder %s56, %s57
    %p71 = scmp.eq.s32.totalorder %s23, 1
    %p72 = por %p70, %p71
    %p74 = scmp.ne.s32.totalorder %s57, %s73
    %p75 = scmp.eq.s32.totalorder %s23, 0
    %p76 = por %p74, %p75
    %s77 = ssub.s32 %s17, %s24
    %p78 = scmp.eq.s32.totalorder %s77, 0
    %s80 = sadd.s32 %s79, 1
    %s81 = scalar_select %p78, %s79, %s80
    %p84 = pneg %p78
    %p85 = scmp.eq.s32.totalorder %s17, 1
    %p86 = por %p84, %p85
    %p87 = scmp.ne.s32.totalorder %s79, %s82
    %p88 = scmp.eq.s32.totalorder %s17, 0
    %p89 = por %p87, %p88
    %p90 = scmp.ne.s32.totalorder %s79, %s82
    %p91 = scmp.eq.s32.totalorder %s22, 1
    %p92 = por %p90, %p91
    %p93 = scmp.ne.s32.totalorder %s82, %s83
    %p94 = scmp.eq.s32.totalorder %s22, 0
    %p95 = por %p93, %p94
    %p96 = scmp.ne.s32.totalorder %s82, %s83
    %p97 = scmp.eq.s32.totalorder %s23, 1
    %p98 = por %p96, %p97
    %p100 = scmp.ne.s32.totalorder %s83, %s99
    %p101 = scmp.eq.s32.totalorder %s23, 0
    %p102 = por %p100, %p101
    %s104 = sadd.s32 %s103, 1
    %p107 = scmp.eq.s32.totalorder %s17, 1
    %p108 = scmp.ne.s32.totalorder %s103, %s105
    %p109 = scmp.eq.s32.totalorder %s17, 0
    %p110 = por %p108, %p109
    %p111 = scmp.ne.s32.totalorder %s103, %s105
    %p112 = scmp.eq.s32.totalorder %s22, 1
    %p113 = por %p111, %p112
    %p114 = scmp.ne.s32.totalorder %s105, %s106
    %p115 = scmp.eq.s32.totalorder %s22, 0
    %p116 = por %p114, %p115
    %p117 = scmp.ne.s32.totalorder %s105, %s106
    %p118 = scmp.eq.s32.totalorder %s23, 1
    %p119 = por %p117, %p118
    %p121 = scmp.ne.s32.totalorder %s106, %s120
    %p122 = scmp.eq.s32.totalorder %s23, 0
    %p123 = por %p121, %p122
    %s125 = sadd.s32 %s124, 1
    %p128 = scmp.eq.s32.totalorder %s17, 1
    %p129 = scmp.ne.s32.totalorder %s124, %s126
    %p130 = scmp.eq.s32.totalorder %s17, 0
    %p131 = por %p129, %p130
    %p132 = scmp.ne.s32.totalorder %s124, %s126
    %p133 = scmp.eq.s32.totalorder %s22, 1
    %p134 = por %p132, %p133
    %p135 = scmp.ne.s32.totalorder %s126, %s127
    %p136 = scmp.eq.s32.totalorder %s22, 0
    %p137 = por %p135, %p136
    %p138 = scmp.ne.s32.totalorder %s126, %s127
    %p139 = scmp.eq.s32.totalorder %s23, 1
    %p140 = por %p138, %p139
    %p142 = scmp.ne.s32.totalorder %s127, %s141
    %p143 = scmp.eq.s32.totalorder %s23, 0
    %p144 = por %p142, %p143
    %s146 = sadd.s32 %s145, 1
    %p149 = scmp.eq.s32.totalorder %s17, 1
    %p150 = scmp.ne.s32.totalorder %s145, %s147
    %p151 = scmp.eq.s32.totalorder %s17, 0
    %p152 = por %p150, %p151
    %p153 = scmp.ne.s32.totalorder %s145, %s147
    %p154 = scmp.eq.s32.totalorder %s22, 1
    %p155 = por %p153, %p154
    %p156 = scmp.ne.s32.totalorder %s147, %s148
    %p157 = scmp.eq.s32.totalorder %s22, 0
    %p158 = por %p156, %p157
    %p159 = scmp.ne.s32.totalorder %s147, %s148
    %p160 = scmp.eq.s32.totalorder %s23, 1
    %p161 = por %p159, %p160
    %p163 = scmp.ne.s32.totalorder %s148, %s162
    %p164 = scmp.eq.s32.totalorder %s23, 0
    %p165 = por %p163, %p164
    %s167 = sadd.s32 %s166, 1
    %p170 = scmp.eq.s32.totalorder %s17, 1
    %p171 = scmp.ne.s32.totalorder %s166, %s168
    %p172 = scmp.eq.s32.totalorder %s17, 0
    %p173 = por %p171, %p172
    %p174 = scmp.ne.s32.totalorder %s166, %s168
    %p175 = scmp.eq.s32.totalorder %s22, 1
    %p176 = por %p174, %p175
    %p177 = scmp.ne.s32.totalorder %s168, %s169
    %p178 = scmp.eq.s32.totalorder %s22, 0
    %p179 = por %p177, %p178
    %p180 = scmp.ne.s32.totalorder %s168, %s169
    %p181 = scmp.eq.s32.totalorder %s23, 1
    %p182 = por %p180, %p181
    %p184 = scmp.ne.s32.totalorder %s169, %s183
    %p185 = scmp.eq.s32.totalorder %s23, 0
    %p186 = por %p184, %p185
    %s188 = sadd.s32 %s187, 1
    %p191 = scmp.eq.s32.totalorder %s17, 1
    %p192 = scmp.ne.s32.totalorder %s187, %s189
    %p193 = scmp.eq.s32.totalorder %s17, 0
    %p194 = por %p192, %p193
    %p195 = scmp.ne.s32.totalorder %s187, %s189
    %p196 = scmp.eq.s32.totalorder %s22, 1
    %p197 = por %p195, %p196
    %p198 = scmp.ne.s32.totalorder %s189, %s190
    %p199 = scmp.eq.s32.totalorder %s22, 0
    %p200 = por %p198, %p199
    %p201 = scmp.ne.s32.totalorder %s189, %s190
    %p202 = scmp.eq.s32.totalorder %s23, 1
    %p203 = por %p201, %p202
    %p205 = scmp.ne.s32.totalorder %s190, %s204
    %p206 = scmp.eq.s32.totalorder %s23, 0
    %p207 = por %p205, %p206
    %s209 = sadd.s32 %s208, 1
    %p212 = scmp.eq.s32.totalorder %s17, 1
    %p213 = scmp.ne.s32.totalorder %s208, %s210
    %p214 = scmp.eq.s32.totalorder %s17, 0
    %p215 = por %p213, %p214
    %p216 = scmp.ne.s32.totalorder %s208, %s210
    %p217 = scmp.eq.s32.totalorder %s22, 1
    %p218 = por %p216, %p217
    %p219 = scmp.ne.s32.totalorder %s210, %s211
    %p220 = scmp.eq.s32.totalorder %s22, 0
    %p221 = por %p219, %p220
    %p222 = scmp.ne.s32.totalorder %s210, %s211
    %p223 = scmp.eq.s32.totalorder %s23, 1
    %p224 = por %p222, %p223
    %p226 = scmp.ne.s32.totalorder %s211, %s225
    %p227 = scmp.eq.s32.totalorder %s23, 0
    %p228 = por %p226, %p227
    %s230 = sadd.s32 %s229, 1
    %p233 = scmp.eq.s32.totalorder %s17, 1
    %p234 = scmp.ne.s32.totalorder %s229, %s231
    %p235 = scmp.eq.s32.totalorder %s17, 0
    %p236 = por %p234, %p235
    %p237 = scmp.ne.s32.totalorder %s229, %s231
    %p238 = scmp.eq.s32.totalorder %s22, 1
    %p239 = por %p237, %p238
    %p240 = scmp.ne.s32.totalorder %s231, %s232
    %p241 = scmp.eq.s32.totalorder %s22, 0
    %p242 = por %p240, %p241
    %p243 = scmp.ne.s32.totalorder %s231, %s232
    %p244 = scmp.eq.s32.totalorder %s23, 1
    %p245 = por %p243, %p244
    %p247 = scmp.ne.s32.totalorder %s232, %s246
    %p248 = scmp.eq.s32.totalorder %s23, 0
    %p249 = por %p247, %p248
    %s251 = sadd.s32 %s250, 1
    %p254 = scmp.eq.s32.totalorder %s17, 1
    %p255 = scmp.ne.s32.totalorder %s250, %s252
    %p256 = scmp.eq.s32.totalorder %s17, 0
    %p257 = por %p255, %p256
    %p258 = scmp.ne.s32.totalorder %s250, %s252
    %p259 = scmp.eq.s32.totalorder %s22, 1
    %p260 = por %p258, %p259
    %p261 = scmp.ne.s32.totalorder %s252, %s253
    %p262 = scmp.eq.s32.totalorder %s22, 0
    %p263 = por %p261, %p262
    %p264 = scmp.ne.s32.totalorder %s252, %s253
    %p265 = scmp.eq.s32.totalorder %s23, 1
    %p266 = por %p264, %p265
    %p268 = scmp.ne.s32.totalorder %s253, %s267
    %p269 = scmp.eq.s32.totalorder %s23, 0
    %p270 = por %p268, %p269
    %s271 = ssub.s32 %s17, %s24
    %p272 = scmp.eq.s32.totalorder %s271, 0
    %s274 = sadd.s32 %s273, 1
    %s275 = scalar_select %p272, %s273, %s274
    %p278 = pneg %p272
    %p279 = scmp.eq.s32.totalorder %s17, 1
    %p280 = por %p278, %p279
    %p281 = scmp.ne.s32.totalorder %s273, %s276
    %p282 = scmp.eq.s32.totalorder %s17, 0
    %p283 = por %p281, %p282
    %p284 = scmp.ne.s32.totalorder %s273, %s276
    %p285 = scmp.eq.s32.totalorder %s22, 1
    %p286 = por %p284, %p285
    %p287 = scmp.ne.s32.totalorder %s276, %s277
    %p288 = scmp.eq.s32.totalorder %s22, 0
    %p289 = por %p287, %p288
    %p290 = scmp.ne.s32.totalorder %s276, %s277
    %p291 = scmp.eq.s32.totalorder %s23, 1
    %p292 = por %p290, %p291
    %p294 = scmp.ne.s32.totalorder %s277, %s293
    %p295 = scmp.eq.s32.totalorder %s23, 0
    %p296 = por %p294, %p295
    %p297 = scmp.le.s32.totalorder 1, %s17
    %p298 = scmp.lt.s32.totalorder %s17, 3
    %p299 = pnand %p297, %p298
    %p300 = pneg %p299
    // Predicated region
    $region9: #{decoder_block_forward.3} parent=5 // pred_check
      _
    $region10: #{decoder_block_forward.3} parent=5 // pred_check_branch
      %302 = sbr.rel (%p299) target = $region12
    $region11: #{decoder_block_forward.3} parent=5 // pred_region
      %s303 = ssub.s32 %s17, 1
      // Predicated region
      $region13: #{decoder_block_forward.3} parent=11 // pred_check
        %p304 = pneg %p116
      $region14: #{decoder_block_forward.3} parent=11 // pred_check_branch
        %306 = sbr.rel (%p304) target = $region16
      $region15: #{decoder_block_forward.3} parent=11 // pred_region
        _
      $region16: #{decoder_block_forward.3} parent=11 // pred_fallthru
        _
      // Predicated region
      $region17: #{decoder_block_forward.3} parent=11 // pred_check
        %p307 = pneg %p137
      $region18: #{decoder_block_forward.3} parent=11 // pred_check_branch
        %309 = sbr.rel (%p307) target = $region20
      $region19: #{decoder_block_forward.3} parent=11 // pred_region
        _
      $region20: #{decoder_block_forward.3} parent=11 // pred_fallthru
        _
      // Predicated region
      $region21: #{decoder_block_forward.3} parent=11 // pred_check
        %p310 = pneg %p158
      $region22: #{decoder_block_forward.3} parent=11 // pred_check_branch
        %312 = sbr.rel (%p310) target = $region24
      $region23: #{decoder_block_forward.3} parent=11 // pred_region
        _
      $region24: #{decoder_block_forward.3} parent=11 // pred_fallthru
        _
      // Predicated region
      $region25: #{decoder_block_forward.3} parent=11 // pred_check
        %p313 = pneg %p179
      $region26: #{decoder_block_forward.3} parent=11 // pred_check_branch
        %315 = sbr.rel (%p313) target = $region28
      $region27: #{decoder_block_forward.3} parent=11 // pred_region
        _
      $region28: #{decoder_block_forward.3} parent=11 // pred_fallthru
        _
      // Predicated region
      $region29: #{decoder_block_forward.3} parent=11 // pred_check
        %p316 = pneg %p200
      $region30: #{decoder_block_forward.3} parent=11 // pred_check_branch
        %318 = sbr.rel (%p316) target = $region32
      $region31: #{decoder_block_forward.3} parent=11 // pred_region
        _
      $region32: #{decoder_block_forward.3} parent=11 // pred_fallthru
        _
      // Predicated region
      $region33: #{decoder_block_forward.3} parent=11 // pred_check
        %p319 = pneg %p221
      $region34: #{decoder_block_forward.3} parent=11 // pred_check_branch
        %321 = sbr.rel (%p319) target = $region36
      $region35: #{decoder_block_forward.3} parent=11 // pred_region
        _
      $region36: #{decoder_block_forward.3} parent=11 // pred_fallthru
        _
      // Predicated region
      $region37: #{decoder_block_forward.3} parent=11 // pred_check
        %p322 = pneg %p242
      $region38: #{decoder_block_forward.3} parent=11 // pred_check_branch
        %324 = sbr.rel (%p322) target = $region40
      $region39: #{decoder_block_forward.3} parent=11 // pred_region
        _
      $region40: #{decoder_block_forward.3} parent=11 // pred_fallthru
        _
      // Predicated region
      $region41: #{decoder_block_forward.3} parent=11 // pred_check
        %p325 = pneg %p263
      $region42: #{decoder_block_forward.3} parent=11 // pred_check_branch
        %327 = sbr.rel (%p325) target = $region44
      $region43: #{decoder_block_forward.3} parent=11 // pred_region
        _
      $region44: #{decoder_block_forward.3} parent=11 // pred_fallthru
        _
    $region12: #{decoder_block_forward.3} parent=5 // pred_fallthru
      _
    %p328 = scmp.lt.s32.totalorder %s17, 2
    // Predicated region
    $region45: #{decoder_block_forward.3} parent=5 // pred_check
      %p329 = pneg %p328
    $region46: #{decoder_block_forward.3} parent=5 // pred_check_branch
      %331 = sbr.rel (%p329) target = $region48
    $region47: #{decoder_block_forward.3} parent=5 // pred_region
      // Predicated region
      $region49: #{decoder_block_forward.3} parent=47 // pred_check
        %p332 = pneg %p37
      $region50: #{decoder_block_forward.3} parent=47 // pred_check_branch
        %334 = sbr.rel (%p332) target = $region52
      $region51: #{decoder_block_forward.3} parent=47 // pred_region
        %p335 = scmp.lt.s32.totalorder %s17, 1
        %s336 = scalar_select %p335, %s17, 1
        %s337 = smul.addr %s336, 8
        %s338 = scalar_lea.vmem %s0, %s337
      $region52: #{decoder_block_forward.3} parent=47 // pred_fallthru
        _
      // Predicated region
      $region53: #{decoder_block_forward.3} parent=47 // pred_check
        %p339 = pneg %p63
      $region54: #{decoder_block_forward.3} parent=47 // pred_check_branch
        %341 = sbr.rel (%p339) target = $region56
      $region55: #{decoder_block_forward.3} parent=47 // pred_region
        %p342 = scmp.lt.s32.totalorder %s17, 1
        %s343 = scalar_select %p342, %s17, 1
        %s344 = smul.addr %s343, 8
        %s345 = scalar_lea.vmem %s1, %s344
      $region56: #{decoder_block_forward.3} parent=47 // pred_fallthru
        _
      // Predicated region
      $region57: #{decoder_block_forward.3} parent=47 // pred_check
        %p346 = pneg %p89
      $region58: #{decoder_block_forward.3} parent=47 // pred_check_branch
        %348 = sbr.rel (%p346) target = $region60
      $region59: #{decoder_block_forward.3} parent=47 // pred_region
        %p349 = scmp.lt.s32.totalorder %s17, 1
        %s350 = scalar_select %p349, %s17, 1
        %s351 = smul.addr %s350, 8
        %s352 = scalar_lea.vmem %s2, %s351
      $region60: #{decoder_block_forward.3} parent=47 // pred_fallthru
        _
    $region48: #{decoder_block_forward.3} parent=5 // pred_fallthru
      _
    %p353 = scmp.le.s32.totalorder 1, %s17
    %p354 = scmp.lt.s32.totalorder %s17, 3
    %p355 = pnand %p353, %p354
    %p356 = pneg %p355
    // Predicated region
    $region61: #{decoder_block_forward.3} parent=5 // pred_check
      _
    $region62: #{decoder_block_forward.3} parent=5 // pred_check_branch
      %358 = sbr.rel (%p355) target = $region64
    $region63: #{decoder_block_forward.3} parent=5 // pred_region
      %s359 = ssub.s32 %s17, 1
      %p360 = scmp.lt.s32.totalorder %s22, 1
      %s361 = scalar_select %p360, %s22, 1
      %s362 = smul.addr %s361, 8
      %s363 = scalar_lea.vmem %s0, %s362
      %p364 = pneg %p43
      %p365 = pneg %p40
      %p366 = scmp.lt.s32.totalorder %s22, 1
      %s367 = scalar_select %p366, %s22, 1
      %s368 = smul.addr %s367, 8
      %s369 = scalar_lea.vmem %s1, %s368
      %p370 = pneg %p69
      %p371 = pneg %p66
      %p372 = scmp.lt.s32.totalorder %s22, 1
      %s373 = scalar_select %p372, %s22, 1
      %s374 = smul.addr %s373, 8
      %s375 = scalar_lea.vmem %s2, %s374
      %p376 = pneg %p95
      %p377 = pneg %p92
      %p378 = pneg %p116
      %p379 = pneg %p113
      %p380 = pneg %p137
      %p381 = pneg %p134
      %p382 = pneg %p158
      %p383 = pneg %p155
      %p384 = pneg %p179
      %p385 = pneg %p176
      %p386 = pneg %p200
      %p387 = pneg %p197
      %p388 = pneg %p221
      %p389 = pneg %p218
      %p390 = pneg %p242
      %p391 = pneg %p239
      %p392 = pneg %p263
      %p393 = pneg %p260
      %p394 = pneg %p289
      %p395 = pneg %p286
      %p396 = scmp.lt.s32.totalorder %s22, 1
      %s397 = scalar_select %p396, %s22, 1
      %s398 = smul.addr %s397, 8
      %s399 = scalar_lea.vmem %s11, %s398
      %p400 = scmp.lt.s32.totalorder %s22, 1
      %s401 = scalar_select %p400, %s22, 1
      %s402 = smul.addr %s401, 8
      %s403 = scalar_lea.vmem %s0, %s402
      %p404 = scmp.lt.s32.totalorder %s22, 1
      %s405 = scalar_select %p404, %s22, 1
      %s406 = smul.addr %s405, 8
      %s407 = scalar_lea.vmem %s1, %s406
      %p408 = scmp.lt.s32.totalorder %s22, 1
      %s409 = scalar_select %p408, %s22, 1
      %s410 = smul.addr %s409, 8
      %s411 = scalar_lea.vmem %s2, %s410
      %p412 = scmp.lt.s32.totalorder %s22, 1
      %s413 = scalar_select %p412, %s22, 1
      %s414 = smul.addr %s413, 8
      %s415 = scalar_lea.vmem %s11, %s414
      %v416 = vld [vmem:[%s403] sm:$0xff]
      %v417 = vld [vmem:[%s3] sm:$0x1]
      %v418 = vld [vmem:[%s4] sm:$0x1]
      %vm419 = vcmask 261120
      %v420 = vsel %vm419, %v416, 0.0
      %421 = vadd.xlane.f32.xlu0 %v420
      %v422 = vpop.xlane.xlu0 %421
      %v423 = vrcp.pop 32.0
      %v424 = vmul.f32 %v422, %v423
      %v425 = vsub.f32 %v416, %v424
      %v426 = vmul.f32 %v425, %v425
      %v427 = vsel %vm419, %v426, 0.0
      %428 = vadd.xlane.f32.xlu0 %v427
      %v429 = vpop.xlane.xlu0 %428
      %v430 = vmul.f32 %v429, %v423
      %v431 = vadd.f32 %v430, 1e-05
      %v432 = vrsqrt.pop %v431
      %v433 = vmul.f32 %v425, %v432
      %v435 = vlaneseq
      %v436 = vshrl.u32 %v435, 7
      %v437 = vsub.s32 0, %v436
      %v438 = vrot.slane %v417, %v437
      %v440 = vmul.f32 %v433, %v438
      %v442 = vlaneseq
      %v443 = vshrl.u32 %v442, 7
      %v444 = vsub.s32 0, %v443
      %v445 = vrot.slane %v418, %v444
      %v447 = vadd.f32 %v440, %v445
      %v448 = vld [vmem:[%s5] sm:$0xff]
      %v449 = vld [vmem:[%s5 + $0x8] sm:$0xff]
      %v450 = vld [vmem:[%s5 + $0x10] sm:$0xff]
      %v451 = vld [vmem:[%s5 + $0x18] sm:$0xff]
      %v452 = vld [vmem:[%s6] sm:$0x1]
      %v454 = vlaneseq
      %v455 = vshrl.u32 %v454, 7
      %v456 = vsub.s32 0, %v455
      %v457 = vrot.slane %v452, %v456
      %v460 = vsel %vm419, %v447, 0
      %462 = vmatprep.subr.mxu0 0.0
      %463 = vmatpush1.msra.mxu0 %v448
      %464 = vmatprep.subr.mxu0 0.0
      %465 = vmatpush1.msra.mxu0 %v449
      %466 = vmatprep.subr.mxu0 0.0
      %467 = vmatpush1.msra.mxu0 %v450
      %468 = vmatprep.subr.mxu0 0.0
      %469 = vmatpush1.msra.mxu0 %v451
      %470 = vmatprep.subr.mxu0 0.0
      %471 = vmatpush1.msra.mxu0 0.0
      %472 = vmatprep.subr.mxu0 0.0
      %473 = vmatpush1.msra.mxu0 0.0
      %474 = vmatprep.subr.mxu0 0.0
      %475 = vmatpush1.msra.mxu0 0.0
      %476 = vmatprep.subr.mxu0 0.0
      %477 = vmatpush1.msra.mxu0 0.0
      %478 = vmatprep.subr.mxu0 0.0
      %479 = vmatpush1.msra.mxu0 0.0
      %480 = vmatprep.subr.mxu0 0.0
      %481 = vmatpush1.msra.mxu0 0.0
      %482 = vmatprep.subr.mxu0 0.0
      %483 = vmatpush1.msra.mxu0 0.0
      %484 = vmatprep.subr.mxu0 0.0
      %485 = vmatpush1.msra.mxu0 0.0
      %486 = vmatprep.subr.mxu0 0.0
      %487 = vmatpush1.msra.mxu0 0.0
      %488 = vmatprep.subr.mxu0 0.0
      %489 = vmatpush1.msra.mxu0 0.0
      %490 = vmatprep.subr.mxu0 0.0
      %491 = vmatpush1.msra.mxu0 0.0
      %492 = vmatprep.subr.mxu0 0.0
      %493 = vmatpush1.msra.mxu0 0.0
      %494 = vmatprep.subr.mxu0 0.0
      %495 = vmatpush1.msra.mxu0 0.0
      %496 = vmatprep.subr.mxu0 0.0
      %497 = vmatpush1.msra.mxu0 0.0
      %498 = vmatprep.subr.mxu0 0.0
      %499 = vmatpush1.msra.mxu0 0.0
      %500 = vmatprep.subr.mxu0 0.0
      %501 = vmatpush1.msra.mxu0 0.0
      %502 = vmatprep.subr.mxu0 0.0
      %503 = vmatpush1.msra.mxu0 0.0
      %504 = vmatprep.subr.mxu0 0.0
      %505 = vmatpush1.msra.mxu0 0.0
      %506 = vmatprep.subr.mxu0 0.0
      %507 = vmatpush1.msra.mxu0 0.0
      %508 = vmatprep.subr.mxu0 0.0
      %509 = vmatpush1.msra.mxu0 0.0
      %510 = vmatprep.subr.mxu0 0.0
      %511 = vmatpush1.msra.mxu0 0.0
      %512 = vmatprep.subr.mxu0 0.0
      %513 = vmatpush1.msra.mxu0 0.0
      %514 = vmatprep.subr.mxu0 0.0
      %515 = vmatpush1.msra.mxu0 0.0
      %516 = vmatprep.subr.mxu0 0.0
      %517 = vmatpush1.msra.mxu0 0.0
      %518 = vmatprep.subr.mxu0 0.0
      %519 = vmatpush1.msra.mxu0 0.0
      %520 = vmatprep.subr.mxu0 0.0
      %521 = vmatpush1.msra.mxu0 0.0
      %522 = vmatprep.subr.mxu0 0.0
      %523 = vmatpush1.msra.mxu0 0.0
      %524 = vmatprep.subr.mxu0 0.0
      %525 = vmatpush1.msra.mxu0 0.0
      %526 = vmatprep.mubr.f32.mxu0 0.0
      %527 = vmatmul.mubr.f32.gmra.mrb[0].mxu0 %v460
      %v528 = vpop.f32.mrb[0].mxu0
      %v529 = vadd.f32 %v457, %v528
      %v530 = vpop.f32.mrb[0].mxu0
      %531 = vdwg.mxu0
      %v532 = vld [vmem:[%s7] sm:$0xff]
      %v533 = vld [vmem:[%s7 + $0x8] sm:$0xff]
      %v534 = vld [vmem:[%s7 + $0x10] sm:$0xff]
      %v535 = vld [vmem:[%s7 + $0x18] sm:$0xff]
      %v536 = vld [vmem:[%s8] sm:$0x1]
      %v538 = vlaneseq
      %v539 = vshrl.u32 %v538, 7
      %v540 = vsub.s32 0, %v539
      %v541 = vrot.slane %v536, %v540
      %543 = vmatprep.subr.mxu0 0.0
      %544 = vmatpush1.msra.mxu0 %v532
      %545 = vmatprep.subr.mxu0 0.0
      %546 = vmatpush1.msra.mxu0 %v533
      %547 = vmatprep.subr.mxu0 0.0
      %548 = vmatpush1.msra.mxu0 %v534
      %549 = vmatprep.subr.mxu0 0.0
      %550 = vmatpush1.msra.mxu0 %v535
      %551 = vmatprep.subr.mxu0 0.0
      %552 = vmatpush1.msra.mxu0 0.0
      %553 = vmatprep.subr.mxu0 0.0
      %554 = vmatpush1.msra.mxu0 0.0
      %555 = vmatprep.subr.mxu0 0.0
      %556 = vmatpush1.msra.mxu0 0.0
      %557 = vmatprep.subr.mxu0 0.0
      %558 = vmatpush1.msra.mxu0 0.0
      %559 = vmatprep.subr.mxu0 0.0
      %560 = vmatpush1.msra.mxu0 0.0
      %561 = vmatprep.subr.mxu0 0.0
      %562 = vmatpush1.msra.mxu0 0.0
      %563 = vmatprep.subr.mxu0 0.0
      %564 = vmatpush1.msra.mxu0 0.0
      %565 = vmatprep.subr.mxu0 0.0
      %566 = vmatpush1.msra.mxu0 0.0
      %567 = vmatprep.subr.mxu0 0.0
      %568 = vmatpush1.msra.mxu0 0.0
      %569 = vmatprep.subr.mxu0 0.0
      %570 = vmatpush1.msra.mxu0 0.0
      %571 = vmatprep.subr.mxu0 0.0
      %572 = vmatpush1.msra.mxu0 0.0
      %573 = vmatprep.subr.mxu0 0.0
      %574 = vmatpush1.msra.mxu0 0.0
      %575 = vmatprep.subr.mxu0 0.0
      %576 = vmatpush1.msra.mxu0 0.0
      %577 = vmatprep.subr.mxu0 0.0
      %578 = vmatpush1.msra.mxu0 0.0
      %579 = vmatprep.subr.mxu0 0.0
      %580 = vmatpush1.msra.mxu0 0.0
      %581 = vmatprep.subr.mxu0 0.0
      %582 = vmatpush1.msra.mxu0 0.0
      %583 = vmatprep.subr.mxu0 0.0
      %584 = vmatpush1.msra.mxu0 0.0
      %585 = vmatprep.subr.mxu0 0.0
      %586 = vmatpush1.msra.mxu0 0.0
      %587 = vmatprep.subr.mxu0 0.0
      %588 = vmatpush1.msra.mxu0 0.0
      %589 = vmatprep.subr.mxu0 0.0
      %590 = vmatpush1.msra.mxu0 0.0
      %591 = vmatprep.subr.mxu0 0.0
      %592 = vmatpush1.msra.mxu0 0.0
      %593 = vmatprep.subr.mxu0 0.0
      %594 = vmatpush1.msra.mxu0 0.0
      %595 = vmatprep.subr.mxu0 0.0
      %596 = vmatpush1.msra.mxu0 0.0
      %597 = vmatprep.subr.mxu0 0.0
      %598 = vmatpush1.msra.mxu0 0.0
      %599 = vmatprep.subr.mxu0 0.0
      %600 = vmatpush1.msra.mxu0 0.0
      %601 = vmatprep.subr.mxu0 0.0
      %602 = vmatpush1.msra.mxu0 0.0
      %603 = vmatprep.subr.mxu0 0.0
      %604 = vmatpush1.msra.mxu0 0.0
      %605 = vmatprep.subr.mxu0 0.0
      %606 = vmatpush1.msra.mxu0 0.0
      %607 = vmatprep.mubr.f32.mxu0 0.0
      %608 = vmatmul.mubr.f32.gmra.mrb[0].mxu0 %v460
      %v609 = vpop.f32.mrb[0].mxu0
      %v610 = vadd.f32 %v541, %v609
      %v611 = vpop.f32.mrb[0].mxu0
      %612 = vdwg.mxu0
      %v613 = vld [vmem:[%s411] sm:$0xff]
      %vm614 = vcmask 64512
      %v616 = vsel %vm614, %v529, 0
      %v619 = vsel %vm614, %v610, 0
      %621 = vmatprep.subr.mxu0 0.0
      %622 = vmatpush1.xpose.msra.mxu0 %v619
      %623 = vmatprep.subr.mxu0 0.0
      %624 = vmatpush1.xpose.msra.mxu0 0.0
      %625 = vmatprep.subr.mxu0 0.0
      %626 = vmatpush1.xpose.msra.mxu0 0.0
      %627 = vmatprep.subr.mxu0 0.0
      %628 = vmatpush1.xpose.msra.mxu0 0.0
      %629 = vmatprep.subr.mxu0 0.0
      %630 = vmatpush1.xpose.msra.mxu0 0.0
      %631 = vmatprep.subr.mxu0 0.0
      %632 = vmatpush1.xpose.msra.mxu0 0.0
      %633 = vmatprep.subr.mxu0 0.0
      %634 = vmatpush1.xpose.msra.mxu0 0.0
      %635 = vmatprep.subr.mxu0 0.0
      %636 = vmatpush1.xpose.msra.mxu0 0.0
      %637 = vmatprep.subr.mxu0 0.0
      %638 = vmatpush1.xpose.msra.mxu0 0.0
      %639 = vmatprep.subr.mxu0 0.0
      %640 = vmatpush1.xpose.msra.mxu0 0.0
      %641 = vmatprep.subr.mxu0 0.0
      %642 = vmatpush1.xpose.msra.mxu0 0.0
      %643 = vmatprep.subr.mxu0 0.0
      %644 = vmatpush1.xpose.msra.mxu0 0.0
      %645 = vmatprep.subr.mxu0 0.0
      %646 = vmatpush1.xpose.msra.mxu0 0.0
      %647 = vmatprep.subr.mxu0 0.0
      %648 = vmatpush1.xpose.msra.mxu0 0.0
      %649 = vmatprep.subr.mxu0 0.0
      %650 = vmatpush1.xpose.msra.mxu0 0.0
      %651 = vmatprep.subr.mxu0 0.0
      %652 = vmatpush1.xpose.msra.mxu0 0.0
      %653 = vmatprep.subr.mxu0 0.0
      %654 = vmatpush1.xpose.msra.mxu0 0.0
      %655 = vmatprep.subr.mxu0 0.0
      %656 = vmatpush1.xpose.msra.mxu0 0.0
      %657 = vmatprep.subr.mxu0 0.0
      %658 = vmatpush1.xpose.msra.mxu0 0.0
      %659 = vmatprep.subr.mxu0 0.0
      %660 = vmatpush1.xpose.msra.mxu0 0.0
      %661 = vmatprep.subr.mxu0 0.0
      %662 = vmatpush1.xpose.msra.mxu0 0.0
      %663 = vmatprep.subr.mxu0 0.0
      %664 = vmatpush1.xpose.msra.mxu0 0.0
      %665 = vmatprep.subr.mxu0 0.0
      %666 = vmatpush1.xpose.msra.mxu0 0.0
      %667 = vmatprep.subr.mxu0 0.0
      %668 = vmatpush1.xpose.msra.mxu0 0.0
      %669 = vmatprep.subr.mxu0 0.0
      %670 = vmatpush1.xpose.msra.mxu0 0.0
      %671 = vmatprep.subr.mxu0 0.0
      %672 = vmatpush1.xpose.msra.mxu0 0.0
      %673 = vmatprep.subr.mxu0 0.0
      %674 = vmatpush1.xpose.msra.mxu0 0.0
      %675 = vmatprep.subr.mxu0 0.0
      %676 = vmatpush1.xpose.msra.mxu0 0.0
      %677 = vmatprep.subr.mxu0 0.0
      %678 = vmatpush1.xpose.msra.mxu0 0.0
      %679 = vmatprep.subr.mxu0 0.0
      %680 = vmatpush1.xpose.msra.mxu0 0.0
      %681 = vmatprep.subr.mxu0 0.0
      %682 = vmatpush1.xpose.msra.mxu0 0.0
      %683 = vmatprep.subr.mxu0 0.0
      %684 = vmatpush1.xpose.msra.mxu0 0.0
      %685 = vmatprep.mubr.f32.mxu0 0.0
      %686 = vmatmul.mubr.f32.gmra.mrb[0].mxu0 %v616
      %v687 = vpop.f32.mrb[0].mxu0
      %v688 = vadd.f32 0.0, %v687
      %v689 = vpop.f32.mrb[0].mxu0
      %690 = vdwg.mxu0
      %vm691 = vcmp.eq.s32.totalorder %v613, 0
      %v692 = vsel %vm691, -1e+09, %v688
      %v693 = vsel %vm614, %v692, -inf
      %694 = vmax.xlane.f32.xlu0 %v693
      %v695 = vpop.xlane.xlu0 %694
      %v696 = vsub.f32 %v692, %v695
      %v697 = vmul.f32 %v696, 1.442695
      %v698 = vpow.pop %v697
      %v699 = vsel %vm614, %v698, 0.0
      %700 = vadd.xlane.f32.xlu0 %v699
      %v701 = vpop.xlane.xlu0 %700
      %v702 = vrcp.pop %v701
      %703 = vrot.lane.b32.xlu0 %v610, 96
      %v704 = vpop.permute.xlu0 %703
      %v707 = vsel %vm614, %v698, 0
      %709 = vmatprep.subr.mxu0 0.0
      %710 = vmatpush1.msra.mxu0 %v704
      %711 = vmatprep.subr.mxu0 0.0
      %712 = vmatpush1.msra.mxu0 0.0
      %713 = vmatprep.subr.mxu0 0.0
      %714 = vmatpush1.msra.mxu0 0.0
      %715 = vmatprep.subr.mxu0 0.0
      %716 = vmatpush1.msra.mxu0 0.0
      %717 = vmatprep.subr.mxu0 0.0
      %718 = vmatpush1.msra.mxu0 0.0
      %719 = vmatprep.subr.mxu0 0.0
      %720 = vmatpush1.msra.mxu0 0.0
      %721 = vmatprep.subr.mxu0 0.0
      %722 = vmatpush1.msra.mxu0 0.0
      %723 = vmatprep.subr.mxu0 0.0
      %724 = vmatpush1.msra.mxu0 0.0
      %725 = vmatprep.subr.mxu0 0.0
      %726 = vmatpush1.msra.mxu0 0.0
      %727 = vmatprep.subr.mxu0 0.0
      %728 = vmatpush1.msra.mxu0 0.0
      %729 = vmatprep.subr.mxu0 0.0
      %730 = vmatpush1.msra.mxu0 0.0
      %731 = vmatprep.subr.mxu0 0.0
      %732 = vmatpush1.msra.mxu0 0.0
      %733 = vmatprep.subr.mxu0 0.0
      %734 = vmatpush1.msra.mxu0 0.0
      %735 = vmatprep.subr.mxu0 0.0
      %736 = vmatpush1.msra.mxu0 0.0
      %737 = vmatprep.subr.mxu0 0.0
      %738 = vmatpush1.msra.mxu0 0.0
      %739 = vmatprep.subr.mxu0 0.0
      %740 = vmatpush1.msra.mxu0 0.0
      %741 = vmatprep.subr.mxu0 0.0
      %742 = vmatpush1.msra.mxu0 0.0
      %743 = vmatprep.subr.mxu0 0.0
      %744 = vmatpush1.msra.mxu0 0.0
      %745 = vmatprep.subr.mxu0 0.0
      %746 = vmatpush1.msra.mxu0 0.0
      %747 = vmatprep.subr.mxu0 0.0
      %748 = vmatpush1.msra.mxu0 0.0
      %749 = vmatprep.subr.mxu0 0.0
      %750 = vmatpush1.msra.mxu0 0.0
      %751 = vmatprep.subr.mxu0 0.0
      %752 = vmatpush1.msra.mxu0 0.0
      %753 = vmatprep.subr.mxu0 0.0
      %754 = vmatpush1.msra.mxu0 0.0
      %755 = vmatprep.subr.mxu0 0.0
      %756 = vmatpush1.msra.mxu0 0.0
      %757 = vmatprep.subr.mxu0 0.0
      %758 = vmatpush1.msra.mxu0 0.0
      %759 = vmatprep.subr.mxu0 0.0
      %760 = vmatpush1.msra.mxu0 0.0
      %761 = vmatprep.subr.mxu0 0.0
      %762 = vmatpush1.msra.mxu0 0.0
      %763 = vmatprep.subr.mxu0 0.0
      %764 = vmatpush1.msra.mxu0 0.0
      %765 = vmatprep.subr.mxu0 0.0
      %766 = vmatpush1.msra.mxu0 0.0
      %767 = vmatprep.subr.mxu0 0.0
      %768 = vmatpush1.msra.mxu0 0.0
      %769 = vmatprep.subr.mxu0 0.0
      %770 = vmatpush1.msra.mxu0 0.0
      %771 = vmatprep.subr.mxu0 0.0
      %772 = vmatpush1.msra.mxu0 0.0
      %773 = vmatprep.mubr.f32.mxu0 0.0
      %774 = vmatmul.mubr.f32.gmra.mrb[0].mxu0 %v707
      %v775 = vpop.f32.mrb[0].mxu0
      %v776 = vadd.f32 0.0, %v775
      %v777 = vpop.f32.mrb[0].mxu0
      %778 = vdwg.mxu0
      %v779 = vmul.f32 %v776, %v702
      %780 = vrot.lane.b32.xlu0 %v529, 120
      %v781 = vpop.permute.xlu0 %780
      %782 = vrot.lane.b32.xlu0 %v610, 120
      %v783 = vpop.permute.xlu0 %782
      %v784 = vsel %vm614, %v781, 0
      %v786 = vsel %vm614, %v783, 0
      %788 = vmatprep.subr.mxu0 0.0
      %789 = vmatpush1.xpose.msra.mxu0 %v786
      %790 = vmatprep.subr.mxu0 0.0
      %791 = vmatpush1.xpose.msra.mxu0 0.0
      %792 = vmatprep.subr.mxu0 0.0
      %793 = vmatpush1.xpose.msra.mxu0 0.0
      %794 = vmatprep.subr.mxu0 0.0
      %795 = vmatpush1.xpose.msra.mxu0 0.0
      %796 = vmatprep.subr.mxu0 0.0
      %797 = vmatpush1.xpose.msra.mxu0 0.0
      %798 = vmatprep.subr.mxu0 0.0
      %799 = vmatpush1.xpose.msra.mxu0 0.0
      %800 = vmatprep.subr.mxu0 0.0
      %801 = vmatpush1.xpose.msra.mxu0 0.0
      %802 = vmatprep.subr.mxu0 0.0
      %803 = vmatpush1.xpose.msra.mxu0 0.0
      %804 = vmatprep.subr.mxu0 0.0
      %805 = vmatpush1.xpose.msra.mxu0 0.0
      %806 = vmatprep.subr.mxu0 0.0
      %807 = vmatpush1.xpose.msra.mxu0 0.0
      %808 = vmatprep.subr.mxu0 0.0
      %809 = vmatpush1.xpose.msra.mxu0 0.0
      %810 = vmatprep.subr.mxu0 0.0
      %811 = vmatpush1.xpose.msra.mxu0 0.0
      %812 = vmatprep.subr.mxu0 0.0
      %813 = vmatpush1.xpose.msra.mxu0 0.0
      %814 = vmatprep.subr.mxu0 0.0
      %815 = vmatpush1.xpose.msra.mxu0 0.0
      %816 = vmatprep.subr.mxu0 0.0
      %817 = vmatpush1.xpose.msra.mxu0 0.0
      %818 = vmatprep.subr.mxu0 0.0
      %819 = vmatpush1.xpose.msra.mxu0 0.0
      %820 = vmatprep.subr.mxu0 0.0
      %821 = vmatpush1.xpose.msra.mxu0 0.0
      %822 = vmatprep.subr.mxu0 0.0
      %823 = vmatpush1.xpose.msra.mxu0 0.0
      %824 = vmatprep.subr.mxu0 0.0
      %825 = vmatpush1.xpose.msra.mxu0 0.0
      %826 = vmatprep.subr.mxu0 0.0
      %827 = vmatpush1.xpose.msra.mxu0 0.0
      %828 = vmatprep.subr.mxu0 0.0
      %829 = vmatpush1.xpose.msra.mxu0 0.0
      %830 = vmatprep.subr.mxu0 0.0
      %831 = vmatpush1.xpose.msra.mxu0 0.0
      %832 = vmatprep.subr.mxu0 0.0
      %833 = vmatpush1.xpose.msra.mxu0 0.0
      %834 = vmatprep.subr.mxu0 0.0
      %835 = vmatpush1.xpose.msra.mxu0 0.0
      %836 = vmatprep.subr.mxu0 0.0
      %837 = vmatpush1.xpose.msra.mxu0 0.0
      %838 = vmatprep.subr.mxu0 0.0
      %839 = vmatpush1.xpose.msra.mxu0 0.0
      %840 = vmatprep.subr.mxu0 0.0
      %841 = vmatpush1.xpose.msra.mxu0 0.0
      %842 = vmatprep.subr.mxu0 0.0
      %843 = vmatpush1.xpose.msra.mxu0 0.0
      %844 = vmatprep.subr.mxu0 0.0
      %845 = vmatpush1.xpose.msra.mxu0 0.0
      %846 = vmatprep.subr.mxu0 0.0
      %847 = vmatpush1.xpose.msra.mxu0 0.0
      %848 = vmatprep.subr.mxu0 0.0
      %849 = vmatpush1.xpose.msra.mxu0 0.0
      %850 = vmatprep.subr.mxu0 0.0
      %851 = vmatpush1.xpose.msra.mxu0 0.0
      %852 = vmatprep.mubr.f32.mxu0 0.0
      %853 = vmatmul.mubr.f32.gmra.mrb[0].mxu0 %v784
      %v854 = vpop.f32.mrb[0].mxu0
      %v855 = vadd.f32 0.0, %v854
      %v856 = vpop.f32.mrb[0].mxu0
      %857 = vdwg.mxu0
      %v858 = vsel %vm691, -1e+09, %v855
      %v859 = vsel %vm614, %v858, -inf
      %860 = vmax.xlane.f32.xlu0 %v859
      %v861 = vpop.xlane.xlu0 %860
      %v862 = vsub.f32 %v858, %v861
      %v863 = vmul.f32 %v862, 1.442695
      %v864 = vpow.pop %v863
      %v865 = vsel %vm614, %v864, 0.0
      %866 = vadd.xlane.f32.xlu0 %v865
      %v867 = vpop.xlane.xlu0 %866
      %v868 = vrcp.pop %v867
      %869 = vrot.lane.b32.xlu0 %v610, 88
      %v870 = vpop.permute.xlu0 %869
      %v873 = vsel %vm614, %v864, 0
      %875 = vmatprep.subr.mxu0 0.0
      %876 = vmatpush1.msra.mxu0 %v870
      %877 = vmatprep.subr.mxu0 0.0
      %878 = vmatpush1.msra.mxu0 0.0
      %879 = vmatprep.subr.mxu0 0.0
      %880 = vmatpush1.msra.mxu0 0.0
      %881 = vmatprep.subr.mxu0 0.0
      %882 = vmatpush1.msra.mxu0 0.0
      %883 = vmatprep.subr.mxu0 0.0
      %884 = vmatpush1.msra.mxu0 0.0
      %885 = vmatprep.subr.mxu0 0.0
      %886 = vmatpush1.msra.mxu0 0.0
      %887 = vmatprep.subr.mxu0 0.0
      %888 = vmatpush1.msra.mxu0 0.0
      %889 = vmatprep.subr.mxu0 0.0
      %890 = vmatpush1.msra.mxu0 0.0
      %891 = vmatprep.subr.mxu0 0.0
      %892 = vmatpush1.msra.mxu0 0.0
      %893 = vmatprep.subr.mxu0 0.0
      %894 = vmatpush1.msra.mxu0 0.0
      %895 = vmatprep.subr.mxu0 0.0
      %896 = vmatpush1.msra.mxu0 0.0
      %897 = vmatprep.subr.mxu0 0.0
      %898 = vmatpush1.msra.mxu0 0.0
      %899 = vmatprep.subr.mxu0 0.0
      %900 = vmatpush1.msra.mxu0 0.0
      %901 = vmatprep.subr.mxu0 0.0
      %902 = vmatpush1.msra.mxu0 0.0
      %903 = vmatprep.subr.mxu0 0.0
      %904 = vmatpush1.msra.mxu0 0.0
      %905 = vmatprep.subr.mxu0 0.0
      %906 = vmatpush1.msra.mxu0 0.0
      %907 = vmatprep.subr.mxu0 0.0
      %908 = vmatpush1.msra.mxu0 0.0
      %909 = vmatprep.subr.mxu0 0.0
      %910 = vmatpush1.msra.mxu0 0.0
      %911 = vmatprep.subr.mxu0 0.0
      %912 = vmatpush1.msra.mxu0 0.0
      %913 = vmatprep.subr.mxu0 0.0
      %914 = vmatpush1.msra.mxu0 0.0
      %915 = vmatprep.subr.mxu0 0.0
      %916 = vmatpush1.msra.mxu0 0.0
      %917 = vmatprep.subr.mxu0 0.0
      %918 = vmatpush1.msra.mxu0 0.0
      %919 = vmatprep.subr.mxu0 0.0
      %920 = vmatpush1.msra.mxu0 0.0
      %921 = vmatprep.subr.mxu0 0.0
      %922 = vmatpush1.msra.mxu0 0.0
      %923 = vmatprep.subr.mxu0 0.0
      %924 = vmatpush1.msra.mxu0 0.0
      %925 = vmatprep.subr.mxu0 0.0
      %926 = vmatpush1.msra.mxu0 0.0
      %927 = vmatprep.subr.mxu0 0.0
      %928 = vmatpush1.msra.mxu0 0.0
      %929 = vmatprep.subr.mxu0 0.0
      %930 = vmatpush1.msra.mxu0 0.0
      %931 = vmatprep.subr.mxu0 0.0
      %932 = vmatpush1.msra.mxu0 0.0
      %933 = vmatprep.subr.mxu0 0.0
      %934 = vmatpush1.msra.mxu0 0.0
      %935 = vmatprep.subr.mxu0 0.0
      %936 = vmatpush1.msra.mxu0 0.0
      %937 = vmatprep.subr.mxu0 0.0
      %938 = vmatpush1.msra.mxu0 0.0
      %939 = vmatprep.mubr.f32.mxu0 0.0
      %940 = vmatmul.mubr.f32.gmra.mrb[0].mxu0 %v873
      %v941 = vpop.f32.mrb[0].mxu0
      %v942 = vadd.f32 0.0, %v941
      %v943 = vpop.f32.mrb[0].mxu0
      %944 = vdwg.mxu0
      %v945 = vmul.f32 %v942, %v868
      %946 = vrot.lane.b32.xlu0 %v529, 112
      %v947 = vpop.permute.xlu0 %946
      %948 = vrot.lane.b32.xlu0 %v610, 112
      %v949 = vpop.permute.xlu0 %948
      %v950 = vsel %vm614, %v947, 0
      %v952 = vsel %vm614, %v949, 0
      %954 = vmatprep.subr.mxu0 0.0
      %955 = vmatpush1.xpose.msra.mxu0 %v952
      %956 = vmatprep.subr.mxu0 0.0
      %957 = vmatpush1.xpose.msra.mxu0 0.0
      %958 = vmatprep.subr.mxu0 0.0
      %959 = vmatpush1.xpose.msra.mxu0 0.0
      %960 = vmatprep.subr.mxu0 0.0
      %961 = vmatpush1.xpose.msra.mxu0 0.0
      %962 = vmatprep.subr.mxu0 0.0
      %963 = vmatpush1.xpose.msra.mxu0 0.0
      %964 = vmatprep.subr.mxu0 0.0
      %965 = vmatpush1.xpose.msra.mxu0 0.0
      %966 = vmatprep.subr.mxu0 0.0
      %967 = vmatpush1.xpose.msra.mxu0 0.0
      %968 = vmatprep.subr.mxu0 0.0
      %969 = vmatpush1.xpose.msra.mxu0 0.0
      %970 = vmatprep.subr.mxu0 0.0
      %971 = vmatpush1.xpose.msra.mxu0 0.0
      %972 = vmatprep.subr.mxu0 0.0
      %973 = vmatpush1.xpose.msra.mxu0 0.0
      %974 = vmatprep.subr.mxu0 0.0
      %975 = vmatpush1.xpose.msra.mxu0 0.0
      %976 = vmatprep.subr.mxu0 0.0
      %977 = vmatpush1.xpose.msra.mxu0 0.0
      %978 = vmatprep.subr.mxu0 0.0
      %979 = vmatpush1.xpose.msra.mxu0 0.0
      %980 = vmatprep.subr.mxu0 0.0
      %981 = vmatpush1.xpose.msra.mxu0 0.0
      %982 = vmatprep.subr.mxu0 0.0
      %983 = vmatpush1.xpose.msra.mxu0 0.0
      %984 = vmatprep.subr.mxu0 0.0
      %985 = vmatpush1.xpose.msra.mxu0 0.0
      %986 = vmatprep.subr.mxu0 0.0
      %987 = vmatpush1.xpose.msra.mxu0 0.0
      %988 = vmatprep.subr.mxu0 0.0
      %989 = vmatpush1.xpose.msra.mxu0 0.0
      %990 = vmatprep.subr.mxu0 0.0
      %991 = vmatpush1.xpose.msra.mxu0 0.0
      %992 = vmatprep.subr.mxu0 0.0
      %993 = vmatpush1.xpose.msra.mxu0 0.0
      %994 = vmatprep.subr.mxu0 0.0
      %995 = vmatpush1.xpose.msra.mxu0 0.0
      %996 = vmatprep.subr.mxu0 0.0
      %997 = vmatpush1.xpose.msra.mxu0 0.0
      %998 = vmatprep.subr.mxu0 0.0
      %999 = vmatpush1.xpose.msra.mxu0 0.0
      %1000 = vmatprep.subr.mxu0 0.0
      %1001 = vmatpush1.xpose.msra.mxu0 0.0
      %1002 = vmatprep.subr.mxu0 0.0
      %1003 = vmatpush1.xpose.msra.mxu0 0.0
      %1004 = vmatprep.subr.mxu0 0.0
      %1005 = vmatpush1.xpose.msra.mxu0 0.0
      %1006 = vmatprep.subr.mxu0 0.0
      %1007 = vmatpush1.xpose.msra.mxu0 0.0
      %1008 = vmatprep.subr.mxu0 0.0
      %1009 = vmatpush1.xpose.msra.mxu0 0.0
      %1010 = vmatprep.subr.mxu0 0.0
      %1011 = vmatpush1.xpose.msra.mxu0 0.0
      %1012 = vmatprep.subr.mxu0 0.0
      %1013 = vmatpush1.xpose.msra.mxu0 0.0
      %1014 = vmatprep.subr.mxu0 0.0
      %1015 = vmatpush1.xpose.msra.mxu0 0.0
      %1016 = vmatprep.subr.mxu0 0.0
      %1017 = vmatpush1.xpose.msra.mxu0 0.0
      %1018 = vmatprep.mubr.f32.mxu0 0.0
      %1019 = vmatmul.mubr.f32.gmra.mrb[0].mxu0 %v950
      %v1020 = vpop.f32.mrb[0].mxu0
      %v1021 = vadd.f32 0.0, %v1020
      %v1022 = vpop.f32.mrb[0].mxu0
      %1023 = vdwg.mxu0
      %v1024 = vsel %vm691, -1e+09, %v1021
      %v1025 = vsel %vm614, %v1024, -inf
      %1026 = vmax.xlane.f32.xlu0 %v1025
      %v1027 = vpop.xlane.xlu0 %1026
      %v1028 = vsub.f32 %v1024, %v1027
      %v1029 = vmul.f32 %v1028, 1.442695
      %v1030 = vpow.pop %v1029
      %v1031 = vsel %vm614, %v1030, 0.0
      %1032 = vadd.xlane.f32.xlu0 %v1031
      %v1033 = vpop.xlane.xlu0 %1032
      %v1034 = vrcp.pop %v1033
      %1035 = vrot.lane.b32.xlu0 %v610, 80
      %v1036 = vpop.permute.xlu0 %1035
      %v1039 = vsel %vm614, %v1030, 0
      %1041 = vmatprep.subr.mxu0 0.0
      %1042 = vmatpush1.msra.mxu0 %v1036
      %1043 = vmatprep.subr.mxu0 0.0
      %1044 = vmatpush1.msra.mxu0 0.0
      %1045 = vmatprep.subr.mxu0 0.0
      %1046 = vmatpush1.msra.mxu0 0.0
      %1047 = vmatprep.subr.mxu0 0.0
      %1048 = vmatpush1.msra.mxu0 0.0
      %1049 = vmatprep.subr.mxu0 0.0
      %1050 = vmatpush1.msra.mxu0 0.0
      %1051 = vmatprep.subr.mxu0 0.0
      %1052 = vmatpush1.msra.mxu0 0.0
      %1053 = vmatprep.subr.mxu0 0.0
      %1054 = vmatpush1.msra.mxu0 0.0
      %1055 = vmatprep.subr.mxu0 0.0
      %1056 = vmatpush1.msra.mxu0 0.0
      %1057 = vmatprep.subr.mxu0 0.0
      %1058 = vmatpush1.msra.mxu0 0.0
      %1059 = vmatprep.subr.mxu0 0.0
      %1060 = vmatpush1.msra.mxu0 0.0
      %1061 = vmatprep.subr.mxu0 0.0
      %1062 = vmatpush1.msra.mxu0 0.0
      %1063 = vmatprep.subr.mxu0 0.0
      %1064 = vmatpush1.msra.mxu0 0.0
      %1065 = vmatprep.subr.mxu0 0.0
      %1066 = vmatpush1.msra.mxu0 0.0
      %1067 = vmatprep.subr.mxu0 0.0
      %1068 = vmatpush1.msra.mxu0 0.0
      %1069 = vmatprep.subr.mxu0 0.0
      %1070 = vmatpush1.msra.mxu0 0.0
      %1071 = vmatprep.subr.mxu0 0.0
      %1072 = vmatpush1.msra.mxu0 0.0
      %1073 = vmatprep.subr.mxu0 0.0
      %1074 = vmatpush1.msra.mxu0 0.0
      %1075 = vmatprep.subr.mxu0 0.0
      %1076 = vmatpush1.msra.mxu0 0.0
      %1077 = vmatprep.subr.mxu0 0.0
      %1078 = vmatpush1.msra.mxu0 0.0
      %1079 = vmatprep.subr.mxu0 0.0
      %1080 = vmatpush1.msra.mxu0 0.0
      %1081 = vmatprep.subr.mxu0 0.0
      %1082 = vmatpush1.msra.mxu0 0.0
      %1083 = vmatprep.subr.mxu0 0.0
      %1084 = vmatpush1.msra.mxu0 0.0
      %1085 = vmatprep.subr.mxu0 0.0
      %1086 = vmatpush1.msra.mxu0 0.0
      %1087 = vmatprep.subr.mxu0 0.0
      %1088 = vmatpush1.msra.mxu0 0.0
      %1089 = vmatprep.subr.mxu0 0.0
      %1090 = vmatpush1.msra.mxu0 0.0
      %1091 = vmatprep.subr.mxu0 0.0
      %1092 = vmatpush1.msra.mxu0 0.0
      %1093 = vmatprep.subr.mxu0 0.0
      %1094 = vmatpush1.msra.mxu0 0.0
      %1095 = vmatprep.subr.mxu0 0.0
      %1096 = vmatpush1.msra.mxu0 0.0
      %1097 = vmatprep.subr.mxu0 0.0
      %1098 = vmatpush1.msra.mxu0 0.0
      %1099 = vmatprep.subr.mxu0 0.0
      %1100 = vmatpush1.msra.mxu0 0.0
      %1101 = vmatprep.subr.mxu0 0.0
      %1102 = vmatpush1.msra.mxu0 0.0
      %1103 = vmatprep.subr.mxu0 0.0
      %1104 = vmatpush1.msra.mxu0 0.0
      %1105 = vmatprep.mubr.f32.mxu0 0.0
      %1106 = vmatmul.mubr.f32.gmra.mrb[0].mxu0 %v1039
      %v1107 = vpop.f32.mrb[0].mxu0
      %v1108 = vadd.f32 0.0, %v1107
      %v1109 = vpop.f32.mrb[0].mxu0
      %1110 = vdwg.mxu0
      %v1111 = vmul.f32 %v1108, %v1034
      %1112 = vrot.lane.b32.xlu0 %v529, 104
      %v1113 = vpop.permute.xlu0 %1112
      %1114 = vrot.lane.b32.xlu0 %v610, 104
      %v1115 = vpop.permute.xlu0 %1114
      %v1116 = vsel %vm614, %v1113, 0
      %v1118 = vsel %vm614, %v1115, 0
      %1120 = vmatprep.subr.mxu0 0.0
      %1121 = vmatpush1.xpose.msra.mxu0 %v1118
      %1122 = vmatprep.subr.mxu0 0.0
      %1123 = vmatpush1.xpose.msra.mxu0 0.0
      %1124 = vmatprep.subr.mxu0 0.0
      %1125 = vmatpush1.xpose.msra.mxu0 0.0
      %1126 = vmatprep.subr.mxu0 0.0
      %1127 = vmatpush1.xpose.msra.mxu0 0.0
      %1128 = vmatprep.subr.mxu0 0.0
      %1129 = vmatpush1.xpose.msra.mxu0 0.0
      %1130 = vmatprep.subr.mxu0 0.0
      %1131 = vmatpush1.xpose.msra.mxu0 0.0
      %1132 = vmatprep.subr.mxu0 0.0
      %1133 = vmatpush1.xpose.msra.mxu0 0.0
      %1134 = vmatprep.subr.mxu0 0.0
      %1135 = vmatpush1.xpose.msra.mxu0 0.0
      %1136 = vmatprep.subr.mxu0 0.0
      %1137 = vmatpush1.xpose.msra.mxu0 0.0
      %1138 = vmatprep.subr.mxu0 0.0
      %1139 = vmatpush1.xpose.msra.mxu0 0.0
      %1140 = vmatprep.subr.mxu0 0.0
      %1141 = vmatpush1.xpose.msra.mxu0 0.0
      %1142 = vmatprep.subr.mxu0 0.0
      %1143 = vmatpush1.xpose.msra.mxu0 0.0
      %1144 = vmatprep.subr.mxu0 0.0
      %1145 = vmatpush1.xpose.msra.mxu0 0.0
      %1146 = vmatprep.subr.mxu0 0.0
      %1147 = vmatpush1.xpose.msra.mxu0 0.0
      %1148 = vmatprep.subr.mxu0 0.0
      %1149 = vmatpush1.xpose.msra.mxu0 0.0
      %1150 = vmatprep.subr.mxu0 0.0
      %1151 = vmatpush1.xpose.msra.mxu0 0.0
      %1152 = vmatprep.subr.mxu0 0.0
      %1153 = vmatpush1.xpose.msra.mxu0 0.0
      %1154 = vmatprep.subr.mxu0 0.0
      %1155 = vmatpush1.xpose.msra.mxu0 0.0
      %1156 = vmatprep.subr.mxu0 0.0
      %1157 = vmatpush1.xpose.msra.mxu0 0.0
      %1158 = vmatprep.subr.mxu0 0.0
      %1159 = vmatpush1.xpose.msra.mxu0 0.0
      %1160 = vmatprep.subr.mxu0 0.0
      %1161 = vmatpush1.xpose.msra.mxu0 0.0
      %1162 = vmatprep.subr.mxu0 0.0
      %1163 = vmatpush1.xpose.msra.mxu0 0.0
      %1164 = vmatprep.subr.mxu0 0.0
      %1165 = vmatpush1.xpose.msra.mxu0 0.0
      %1166 = vmatprep.subr.mxu0 0.0
      %1167 = vmatpush1.xpose.msra.mxu0 0.0
      %1168 = vmatprep.subr.mxu0 0.0
      %1169 = vmatpush1.xpose.msra.mxu0 0.0
      %1170 = vmatprep.subr.mxu0 0.0
      %1171 = vmatpush1.xpose.msra.mxu0 0.0
      %1172 = vmatprep.subr.mxu0 0.0
      %1173 = vmatpush1.xpose.msra.mxu0 0.0
      %1174 = vmatprep.subr.mxu0 0.0
      %1175 = vmatpush1.xpose.msra.mxu0 0.0
      %1176 = vmatprep.subr.mxu0 0.0
      %1177 = vmatpush1.xpose.msra.mxu0 0.0
      %1178 = vmatprep.subr.mxu0 0.0
      %1179 = vmatpush1.xpose.msra.mxu0 0.0
      %1180 = vmatprep.subr.mxu0 0.0
      %1181 = vmatpush1.xpose.msra.mxu0 0.0
      %1182 = vmatprep.subr.mxu0 0.0
      %1183 = vmatpush1.xpose.msra.mxu0 0.0
      %1184 = vmatprep.mubr.f32.mxu0 0.0
      %1185 = vmatmul.mubr.f32.gmra.mrb[0].mxu0 %v1116
      %v1186 = vpop.f32.mrb[0].mxu0
      %v1187 = vadd.f32 0.0, %v1186
      %v1188 = vpop.f32.mrb[0].mxu0
      %1189 = vdwg.mxu0
      %v1190 = vsel %vm691, -1e+09, %v1187
      %v1191 = vsel %vm614, %v1190, -inf
      %1192 = vmax.xlane.f32.xlu0 %v1191
      %v1193 = vpop.xlane.xlu0 %1192
      %v1194 = vsub.f32 %v1190, %v1193
      %v1195 = vmul.f32 %v1194, 1.442695
      %v1196 = vpow.pop %v1195
      %v1197 = vsel %vm614, %v1196, 0.0
      %1198 = vadd.xlane.f32.xlu0 %v1197
      %v1199 = vpop.xlane.xlu0 %1198
      %v1200 = vrcp.pop %v1199
      %1201 = vrot.lane.b32.xlu0 %v610, 72
      %v1202 = vpop.permute.xlu0 %1201
      %v1205 = vsel %vm614, %v1196, 0
      %1207 = vmatprep.subr.mxu0 0.0
      %1208 = vmatpush1.msra.mxu0 %v1202
      %1209 = vmatprep.subr.mxu0 0.0
      %1210 = vmatpush1.msra.mxu0 0.0
      %1211 = vmatprep.subr.mxu0 0.0
      %1212 = vmatpush1.msra.mxu0 0.0
      %1213 = vmatprep.subr.mxu0 0.0
      %1214 = vmatpush1.msra.mxu0 0.0
      %1215 = vmatprep.subr.mxu0 0.0
      %1216 = vmatpush1.msra.mxu0 0.0
      %1217 = vmatprep.subr.mxu0 0.0
      %1218 = vmatpush1.msra.mxu0 0.0
      %1219 = vmatprep.subr.mxu0 0.0
      %1220 = vmatpush1.msra.mxu0 0.0
      %1221 = vmatprep.subr.mxu0 0.0
      %1222 = vmatpush1.msra.mxu0 0.0
      %1223 = vmatprep.subr.mxu0 0.0
      %1224 = vmatpush1.msra.mxu0 0.0
      %1225 = vmatprep.subr.mxu0 0.0
      %1226 = vmatpush1.msra.mxu0 0.0
      %1227 = vmatprep.subr.mxu0 0.0
      %1228 = vmatpush1.msra.mxu0 0.0
      %1229 = vmatprep.subr.mxu0 0.0
      %1230 = vmatpush1.msra.mxu0 0.0
      %1231 = vmatprep.subr.mxu0 0.0
      %1232 = vmatpush1.msra.mxu0 0.0
      %1233 = vmatprep.subr.mxu0 0.0
      %1234 = vmatpush1.msra.mxu0 0.0
      %1235 = vmatprep.subr.mxu0 0.0
      %1236 = vmatpush1.msra.mxu0 0.0
      %1237 = vmatprep.subr.mxu0 0.0
      %1238 = vmatpush1.msra.mxu0 0.0
      %1239 = vmatprep.subr.mxu0 0.0
      %1240 = vmatpush1.msra.mxu0 0.0
      %1241 = vmatprep.subr.mxu0 0.0
      %1242 = vmatpush1.msra.mxu0 0.0
      %1243 = vmatprep.subr.mxu0 0.0
      %1244 = vmatpush1.msra.mxu0 0.0
      %1245 = vmatprep.subr.mxu0 0.0
      %1246 = vmatpush1.msra.mxu0 0.0
      %1247 = vmatprep.subr.mxu0 0.0
      %1248 = vmatpush1.msra.mxu0 0.0
      %1249 = vmatprep.subr.mxu0 0.0
      %1250 = vmatpush1.msra.mxu0 0.0
      %1251 = vmatprep.subr.mxu0 0.0
      %1252 = vmatpush1.msra.mxu0 0.0
      %1253 = vmatprep.subr.mxu0 0.0
      %1254 = vmatpush1.msra.mxu0 0.0
      %1255 = vmatprep.subr.mxu0 0.0
      %1256 = vmatpush1.msra.mxu0 0.0
      %1257 = vmatprep.subr.mxu0 0.0
      %1258 = vmatpush1.msra.mxu0 0.0
      %1259 = vmatprep.subr.mxu0 0.0
      %1260 = vmatpush1.msra.mxu0 0.0
      %1261 = vmatprep.subr.mxu0 0.0
      %1262 = vmatpush1.msra.mxu0 0.0
      %1263 = vmatprep.subr.mxu0 0.0
      %1264 = vmatpush1.msra.mxu0 0.0
      %1265 = vmatprep.subr.mxu0 0.0
      %1266 = vmatpush1.msra.mxu0 0.0
      %1267 = vmatprep.subr.mxu0 0.0
      %1268 = vmatpush1.msra.mxu0 0.0
      %1269 = vmatprep.subr.mxu0 0.0
      %1270 = vmatpush1.msra.mxu0 0.0
      %1271 = vmatprep.mubr.f32.mxu0 0.0
      %1272 = vmatmul.mubr.f32.gmra.mrb[0].mxu0 %v1205
      %v1273 = vpop.f32.mrb[0].mxu0
      %v1274 = vadd.f32 0.0, %v1273
      %v1275 = vpop.f32.mrb[0].mxu0
      %1276 = vdwg.mxu0
      %v1277 = vmul.f32 %v1274, %v1200
      %1279 = vrot.lane.b32.xlu0 %v945, 8
      %v1280 = vpop.permute.xlu0 %1279
      %1283 = vrot.lane.b32.xlu0 %v1111, 16
      %v1284 = vpop.permute.xlu0 %1283
      %1287 = vrot.lane.b32.xlu0 %v1277, 24
      %v1288 = vpop.permute.xlu0 %1287
      %v1290 = vsel %vm614, %v779, %v1280
      %vm1291 = vcmask 130048
      %v1292 = vsel %vm1291, %v1290, %v1284
      %vm1293 = vcmask 195584
      %v1294 = vsel %vm1293, %v1292, %v1288
      %v1295 = vld [vmem:[%s9] sm:$0xff]
      %v1296 = vld [vmem:[%s9 + $0x8] sm:$0xff]
      %v1297 = vld [vmem:[%s9 + $0x10] sm:$0xff]
      %v1298 = vld [vmem:[%s9 + $0x18] sm:$0xff]
      %v1300 = vsel %vm419, %v1294, 0
      %1302 = vmatprep.subr.mxu0 0.0
      %1303 = vmatpush1.msra.mxu0 %v1295
      %1304 = vmatprep.subr.mxu0 0.0
      %1305 = vmatpush1.msra.mxu0 %v1296
      %1306 = vmatprep.subr.mxu0 0.0
      %1307 = vmatpush1.msra.mxu0 %v1297
      %1308 = vmatprep.subr.mxu0 0.0
      %1309 = vmatpush1.msra.mxu0 %v1298
      %1310 = vmatprep.subr.mxu0 0.0
      %1311 = vmatpush1.msra.mxu0 0.0
      %1312 = vmatprep.subr.mxu0 0.0
      %1313 = vmatpush1.msra.mxu0 0.0
      %1314 = vmatprep.subr.mxu0 0.0
      %1315 = vmatpush1.msra.mxu0 0.0
      %1316 = vmatprep.subr.mxu0 0.0
      %1317 = vmatpush1.msra.mxu0 0.0
      %1318 = vmatprep.subr.mxu0 0.0
      %1319 = vmatpush1.msra.mxu0 0.0
      %1320 = vmatprep.subr.mxu0 0.0
      %1321 = vmatpush1.msra.mxu0 0.0
      %1322 = vmatprep.subr.mxu0 0.0
      %1323 = vmatpush1.msra.mxu0 0.0
      %1324 = vmatprep.subr.mxu0 0.0
      %1325 = vmatpush1.msra.mxu0 0.0
      %1326 = vmatprep.subr.mxu0 0.0
      %1327 = vmatpush1.msra.mxu0 0.0
      %1328 = vmatprep.subr.mxu0 0.0
      %1329 = vmatpush1.msra.mxu0 0.0
      %1330 = vmatprep.subr.mxu0 0.0
      %1331 = vmatpush1.msra.mxu0 0.0
      %1332 = vmatprep.subr.mxu0 0.0
      %1333 = vmatpush1.msra.mxu0 0.0
      %1334 = vmatprep.subr.mxu0 0.0
      %1335 = vmatpush1.msra.mxu0 0.0
      %1336 = vmatprep.subr.mxu0 0.0
      %1337 = vmatpush1.msra.mxu0 0.0
      %1338 = vmatprep.subr.mxu0 0.0
      %1339 = vmatpush1.msra.mxu0 0.0
      %1340 = vmatprep.subr.mxu0 0.0
      %1341 = vmatpush1.msra.mxu0 0.0
      %1342 = vmatprep.subr.mxu0 0.0
      %1343 = vmatpush1.msra.mxu0 0.0
      %1344 = vmatprep.subr.mxu0 0.0
      %1345 = vmatpush1.msra.mxu0 0.0
      %1346 = vmatprep.subr.mxu0 0.0
      %1347 = vmatpush1.msra.mxu0 0.0
      %1348 = vmatprep.subr.mxu0 0.0
      %1349 = vmatpush1.msra.mxu0 0.0
      %1350 = vmatprep.subr.mxu0 0.0
      %1351 = vmatpush1.msra.mxu0 0.0
      %1352 = vmatprep.subr.mxu0 0.0
      %1353 = vmatpush1.msra.mxu0 0.0
      %1354 = vmatprep.subr.mxu0 0.0
      %1355 = vmatpush1.msra.mxu0 0.0
      %1356 = vmatprep.subr.mxu0 0.0
      %1357 = vmatpush1.msra.mxu0 0.0
      %1358 = vmatprep.subr.mxu0 0.0
      %1359 = vmatpush1.msra.mxu0 0.0
      %1360 = vmatprep.subr.mxu0 0.0
      %1361 = vmatpush1.msra.mxu0 0.0
      %1362 = vmatprep.subr.mxu0 0.0
      %1363 = vmatpush1.msra.mxu0 0.0
      %1364 = vmatprep.subr.mxu0 0.0
      %1365 = vmatpush1.msra.mxu0 0.0
      %1366 = vmatprep.mubr.f32.mxu0 0.0
      %1367 = vmatmul.mubr.f32.gmra.mrb[0].mxu0 %v1300
      %v1368 = vpop.f32.mrb[0].mxu0
      %v1369 = vadd.f32 0.0, %v1368
      %v1370 = vpop.f32.mrb[0].mxu0
      %1371 = vdwg.mxu0
      %v1372 = vadd.f32 %v416, %v1369
      %v1373 = vld [vmem:[%s10] sm:$0x1]
      %v1375 = vlaneseq
      %v1376 = vshrl.u32 %v1375, 7
      %v1377 = vsub.s32 0, %v1376
      %v1378 = vrot.slane %v1373, %v1377
      %v1380 = vadd.f32 %v1372, %v1378
      %1381 = vst.msk [vmem:[%s415] sm:$0xff] %vm419, %v1380
      %p1382 = scmp.lt.s32.totalorder %s22, 1
      %s1383 = scalar_select %p1382, %s22, 1
      %s1384 = smul.addr %s1383, 8
      %s1385 = scalar_lea.vmem %s11, %s1384
      // Predicated region
      $region65: #{decoder_block_forward.3} parent=63 // pred_check
        %p1386 = pneg %p286
      $region66: #{decoder_block_forward.3} parent=63 // pred_check_branch
        %1388 = sbr.rel (%p1386) target = $region68
      $region67: #{decoder_block_forward.3} parent=63 // pred_region
        _
      $region68: #{decoder_block_forward.3} parent=63 // pred_fallthru
        _
    $region64: #{decoder_block_forward.3} parent=5 // pred_fallthru
      _
    %p1389 = scmp.le.s32.totalorder 2, %s17
    // Predicated region
    $region69: #{decoder_block_forward.3} parent=5 // pred_check
      %p1390 = pneg %p1389
    $region70: #{decoder_block_forward.3} parent=5 // pred_check_branch
      %1392 = sbr.rel (%p1390) target = $region72
    $region71: #{decoder_block_forward.3} parent=5 // pred_region
      %s1393 = ssub.s32 %s17, 2
      // Predicated region
      $region73: #{decoder_block_forward.3} parent=71 // pred_check
        %p1394 = pneg %p292
      $region74: #{decoder_block_forward.3} parent=71 // pred_check_branch
        %1396 = sbr.rel (%p1394) target = $region76
      $region75: #{decoder_block_forward.3} parent=71 // pred_region
        %p1397 = scmp.lt.s32.totalorder %s23, 1
        %s1398 = scalar_select %p1397, %s23, 1
        %s1399 = smul.addr %s1398, 8
        %s1400 = scalar_lea.vmem %s11, %s1399
      $region76: #{decoder_block_forward.3} parent=71 // pred_fallthru
        _
    $region72: #{decoder_block_forward.3} parent=5 // pred_fallthru
      _
  $region6: #{decoder_block_forward.3} parent=0 // loop_footer
    %s21 = sadd.s32 1, %s17
  $region7: #{decoder_block_forward.3} parent=0 // loop_footer_branch
    %16 = sbr.rel target = $region3
  $region8: #{decoder_block_forward.3} parent=0 // loop_exit
    _

</llo_original>
